<compile_context>
chip_gen: v7x
topology: tpu7x:2x2x1
jax: 0.10.0
libtpu: 0.0.40
codegen_flags: <defaults>
</compile_context>

<pallas_src>
import jax
import jax.numpy as jnp
import numpy as np
from jax import lax
from jax.experimental import pallas as pl
from jax.experimental.pallas import tpu as pltpu

LANES = 128
VMEM_LIMIT = 32 * 1024 * 1024


def _round_up(x, m):
    return (x + m - 1) // m * m


def _pick_row_chunk(l_pad, max_rows=128):
    """Largest multiple of 8 (<=128) dividing l_pad: keeps pool+acc vreg-resident."""
    best = 8
    for c in range(8, min(l_pad, max_rows) + 1, 8):
        if l_pad % c == 0:
            best = c
    return best


def _pick_block_b(n):
    """Images per conv grid step: >=2 steps (v7x megacore) while amortizing
    per-step overhead with several images per step for larger batches."""
    for b in (16, 8, 4, 2):
        if n >= 2 * b:
            return b
    return 1


# ----------------------------------------------------------------------------
# Wrapper-side pooled-phase im2col (tap folding into the MXU contraction dim)
# ----------------------------------------------------------------------------
def _pool_phase_patches(x, k):
    """x: (N, H, W, C).  Returns (N, 4, hp*wp, k*k*C) where
    patch[n, rp*2+cp, ph*wp+pw, (di*k+dj)*C + c] = x[n, 2ph+rp+di, 2pw+cp+dj, c]
    i.e. the kxk 'valid'-conv patch for conv-output position (2ph+rp, 2pw+cp),
    grouped by the 2x2-maxpool phase (rp, cp)."""
    n, h, w, c = x.shape
    hp, wp = (h - k + 1) // 2, (w - k + 1) // 2
    phases = []
    for rp in (0, 1):
        for cp in (0, 1):
            taps = []
            for di in range(k):
                for dj in range(k):
                    r0, c0 = rp + di, cp + dj
                    taps.append(x[:, r0:r0 + 2 * hp - 1:2,
                                  c0:c0 + 2 * wp - 1:2, :])      # (N, hp, wp, C)
            patch = jnp.stack(taps, axis=-2)                     # (N, hp, wp, k*k, C)
            phases.append(patch.reshape(n, hp * wp, k * k * c))
    return jnp.stack(phases, axis=1)                             # (N, 4, hp*wp, k*k*C)


# ----------------------------------------------------------------------------
# Fused conv (via pooled-phase im2col) + bias + ReLU + 2x2 maxpool kernel
# ----------------------------------------------------------------------------
def _make_conv_pool_kernel(block_b, l_pad, row_chunk):
    """One matmul per pooling phase per row chunk; running max over the 4
    phases, then bias + ReLU, all on register-resident matmul results."""
    n_chunks = l_pad // row_chunk

    def kernel(x_ref, w_ref, b_ref, o_ref):
        # x_ref: (B, 4, l_pad, k_pad) bf16 -- pooled-phase im2col patches
        # w_ref: (k_pad, 128) bf16         -- im2col weight, Cout padded to 128
        # b_ref: (1, 128) f32              -- bias (zero-padded)
        # o_ref: (B, l_pad, 128) bf16      -- pooled output, row = ph*Wp + pw
        for i in range(block_b):            # static unroll over images in block
            for c in range(n_chunks):       # row chunks bound live vregs
                r0 = c * row_chunk
                pool = jnp.dot(x_ref[i, 0, pl.ds(r0, row_chunk), :],
                               w_ref[...], preferred_element_type=jnp.float32)
                for p in range(1, 4):       # fused 2x2 maxpool over phases
                    acc = jnp.dot(x_ref[i, p, pl.ds(r0, row_chunk), :],
                                  w_ref[...],
                                  preferred_element_type=jnp.float32)
                    pool = jnp.maximum(pool, acc)
                out = jnp.maximum(pool + b_ref[...], 0.0)   # bias + ReLU (f32)
                o_ref[i, pl.ds(r0, row_chunk), :] = out.astype(o_ref.dtype)

    return kernel


def conv_relu_pool(x_nhwc, w_oihw, b, k):
    """'valid' kxk conv (stride 1) + bias + ReLU + 2x2/2 maxpool.

    x_nhwc: (N, H, W, Cin).  Returns (N, Hp, Wp, Cout) bf16.
    """
    n, h, w, cin = x_nhwc.shape
    cout = w_oihw.shape[0]
    hp, wp = (h - k + 1) // 2, (w - k + 1) // 2
    l_real, k_real = hp * wp, k * k * cin
    l_pad = _round_up(l_real, 16)             # bf16 sublane packing
    k_pad = _round_up(k_real, LANES)          # lane-dense contraction dim
    block_b = _pick_block_b(n)
    n_pad = _round_up(n, block_b)
    row_chunk = _pick_row_chunk(l_pad)

    # glue: fold all k*k taps into K so the kernel does ONE matmul per phase.
    patches = _pool_phase_patches(x_nhwc, k).astype(jnp.bfloat16)
    patches = jnp.pad(patches, ((0, n_pad - n), (0, 0),
                                (0, l_pad - l_real), (0, k_pad - k_real)))

    # weight as (k*k*Cin, Cout) in (di, dj, c) order, padded to (k_pad, 128).
    w_mat = jnp.transpose(w_oihw, (2, 3, 1, 0)).reshape(k_real, cout)
    w_mat = jnp.pad(w_mat, ((0, k_pad - k_real), (0, LANES - cout)))
    w_mat = w_mat.astype(jnp.bfloat16)
    b_pad = jnp.pad(b.astype(jnp.float32), (0, LANES - cout)).reshape(1, LANES)

    flops = 2 * n * 4 * l_real * k_real * cout        # real work (16/32 Cout)
    bytes_accessed = (patches.size * 2 + w_mat.size * 2 + b_pad.size * 4
                      + n_pad * l_pad * LANES * 2)

    out = pl.pallas_call(
        _make_conv_pool_kernel(block_b, l_pad, row_chunk),
        out_shape=jax.ShapeDtypeStruct((n_pad, l_pad, LANES), jnp.bfloat16),
        grid=(n_pad // block_b,),
        in_specs=[
            pl.BlockSpec((block_b, 4, l_pad, k_pad), lambda i: (i, 0, 0, 0)),
            pl.BlockSpec((k_pad, LANES), lambda i: (0, 0)),
            pl.BlockSpec((1, LANES), lambda i: (0, 0)),
        ],
        out_specs=pl.BlockSpec((block_b, l_pad, LANES), lambda i: (i, 0, 0)),
        compiler_params=pltpu.CompilerParams(
            dimension_semantics=("parallel",),
            vmem_limit_bytes=VMEM_LIMIT),
        cost_estimate=pl.CostEstimate(flops=flops, transcendentals=0,
                                      bytes_accessed=bytes_accessed),
    )(patches, w_mat, b_pad)

    # drop row / lane / batch padding; rows are ph*Wp + pw (row-major).
    return out[:n, :l_real, :cout].reshape(n, hp, wp, cout)


# ----------------------------------------------------------------------------
# Fused fc1+ReLU -> fc2+ReLU -> fc3 kernel (intermediates stay in VMEM/vregs)
# ----------------------------------------------------------------------------
def _fc_fused_kernel(x_ref, w1_ref, b1_ref, w2_ref, b2_ref, w3_ref, b3_ref,
                     o_ref):
    h = jnp.dot(x_ref[...], w1_ref[...], preferred_element_type=jnp.float32)
    h = jnp.maximum(h + b1_ref[...], 0.0)
    h = jnp.dot(h.astype(jnp.bfloat16), w2_ref[...],
                preferred_element_type=jnp.float32)
    h = jnp.maximum(h + b2_ref[...], 0.0)
    out = jnp.dot(h.astype(jnp.bfloat16), w3_ref[...],
                  preferred_element_type=jnp.float32)
    o_ref[...] = out + b3_ref[...]


def fc_forward(x_flat, params):
    """x_flat: (N, 800) -> (N, 3) f32 via one fused pallas_call."""
    n, kin = x_flat.shape
    d1 = params["fc1_w"].shape[0]   # 120
    d2 = params["fc2_w"].shape[0]   # 84
    d3 = params["fc3_w"].shape[0]   # 3

    # tm=128 caps padding waste for large batches; for small batches split into
    # (up to) two row tiles so both v7x TensorCores get work.
    if n >= 256:
        tm = 128
    else:
        tm = max(8, _round_up((n + 1) // 2, 8))
    n_pad = _round_up(n, tm)
    x_p = jnp.pad(x_flat.astype(jnp.bfloat16), ((0, n_pad - n), (0, 0)))

    w1 = jnp.pad(params["fc1_w"].T, ((0, 0), (0, LANES - d1))).astype(jnp.bfloat16)
    b1 = jnp.pad(params["fc1_b"], (0, LANES - d1)).reshape(1, LANES).astype(jnp.float32)
    w2 = jnp.pad(params["fc2_w"].T, ((0, LANES - d1), (0, LANES - d2))).astype(jnp.bfloat16)
    b2 = jnp.pad(params["fc2_b"], (0, LANES - d2)).reshape(1, LANES).astype(jnp.float32)
    w3 = jnp.pad(params["fc3_w"].T, ((0, LANES - d2), (0, LANES - d3))).astype(jnp.bfloat16)
    b3 = jnp.pad(params["fc3_b"], (0, LANES - d3)).reshape(1, LANES).astype(jnp.float32)

    flops = 2 * n * (kin * d1 + d1 * d2 + d2 * d3)     # real fc work
    bytes_accessed = (x_p.size * 2 + (w1.size + w2.size + w3.size) * 2
                      + (b1.size + b2.size + b3.size) * 4 + n_pad * LANES * 4)

    out = pl.pallas_call(
        _fc_fused_kernel,
        out_shape=jax.ShapeDtypeStruct((n_pad, LANES), jnp.float32),
        grid=(n_pad // tm,),
        in_specs=[
            pl.BlockSpec((tm, kin), lambda i: (i, 0)),
            pl.BlockSpec((kin, LANES), lambda i: (0, 0)),
            pl.BlockSpec((1, LANES), lambda i: (0, 0)),
            pl.BlockSpec((LANES, LANES), lambda i: (0, 0)),
            pl.BlockSpec((1, LANES), lambda i: (0, 0)),
            pl.BlockSpec((LANES, LANES), lambda i: (0, 0)),
            pl.BlockSpec((1, LANES), lambda i: (0, 0)),
        ],
        out_specs=pl.BlockSpec((tm, LANES), lambda i: (i, 0)),
        compiler_params=pltpu.CompilerParams(
            dimension_semantics=("parallel",),
            vmem_limit_bytes=VMEM_LIMIT),
        cost_estimate=pl.CostEstimate(flops=flops, transcendentals=0,
                                      bytes_accessed=bytes_accessed),
    )(x_p, w1, b1, w2, b2, w3, b3)
    return out[:n, :d3]


# ----------------------------------------------------------------------------
# Parameters and forward pass
# ----------------------------------------------------------------------------
def init_params(key):
    """Deterministic params, PyTorch-default-style uniform(+-1/sqrt(fan_in))."""
    def uinit(k_, shape, fan_in):
        bound = 1.0 / jnp.sqrt(float(fan_in))
        return jax.random.uniform(k_, shape, jnp.float32, -bound, bound)

    ks = jax.random.split(key, 10)
    return {
        "conv1_w": uinit(ks[0], (16, 3, 5, 5), 3 * 5 * 5),
        "conv1_b": uinit(ks[1], (16,), 3 * 5 * 5),
        "conv2_w": uinit(ks[2], (32, 16, 5, 5), 16 * 5 * 5),
        "conv2_b": uinit(ks[3], (32,), 16 * 5 * 5),
        "fc1_w": uinit(ks[4], (120, 800), 800),
        "fc1_b": uinit(ks[5], (120,), 800),
        "fc2_w": uinit(ks[6], (84, 120), 120),
        "fc2_b": uinit(ks[7], (84,), 120),
        "fc3_w": uinit(ks[8], (3, 84), 84),
        "fc3_b": uinit(ks[9], (3,), 84),
    }


@jax.jit
def convnet_forward(params, x_nchw):
    """Forward matching ConvNet.forward.  x_nchw: (N, 3, 32, 32) -> (N, 3)."""
    n = x_nchw.shape[0]
    x = jnp.transpose(x_nchw, (0, 2, 3, 1)).astype(jnp.float32)     # NCHW -> NHWC

    # conv1 + relu + pool : (N,32,32,3)  -> (N,14,14,16)
    x = conv_relu_pool(x, params["conv1_w"], params["conv1_b"], 5)
    # conv2 + relu + pool : (N,14,14,16) -> (N,5,5,32)
    x = conv_relu_pool(x, params["conv2_w"], params["conv2_b"], 5)

    # flatten in PyTorch (C, H, W) order.
    x = jnp.transpose(x, (0, 3, 1, 2)).reshape(n, 32 * 5 * 5)

    return fc_forward(x, params)                                     # (N, 3)


def reference_forward(params, x):
    """Pure-JAX f32 reference mirroring the PyTorch module (self-check only)."""
    dn = ("NCHW", "OIHW", "NCHW")
    y = lax.conv_general_dilated(x, params["conv1_w"], (1, 1), "VALID",
                                 dimension_numbers=dn)
    y = jax.nn.relu(y + params["conv1_b"][None, :, None, None])
    y = lax.reduce_window(y, -jnp.inf, lax.max, (1, 1, 2, 2), (1, 1, 2, 2),
                          "VALID")
    y = lax.conv_general_dilated(y, params["conv2_w"], (1, 1), "VALID",
                                 dimension_numbers=dn)
    y = jax.nn.relu(y + params["conv2_b"][None, :, None, None])
    y = lax.reduce_window(y, -jnp.inf, lax.max, (1, 1, 2, 2), (1, 1, 2, 2),
                          "VALID")
    y = y.reshape(y.shape[0], -1)
    y = jax.nn.relu(y @ params["fc1_w"].T + params["fc1_b"])
    y = jax.nn.relu(y @ params["fc2_w"].T + params["fc2_b"])
    return y @ params["fc3_w"].T + params["fc3_b"]


if __name__ == "__main__":
    key = jax.random.PRNGKey(0)
    pkey, xkey = jax.random.split(key)
    params = init_params(pkey)
    # Module implies 32x32 spatial input (CIFAR-like): 32 -5+1=28 ->14 ->10 ->5.
    x = jax.random.normal(xkey, (2, 3, 32, 32), dtype=jnp.float32)

    out = jax.block_until_ready(convnet_forward(params, x))
    assert out.shape == (2, 3)

    # loose-tolerance self-check vs f32 reference (kernels use bf16 MXU inputs
    # with f32 accumulation, so small deviations are expected).
    ref = jax.block_until_ready(reference_forward(params, x))
    np.testing.assert_allclose(np.asarray(out), np.asarray(ref),
                               rtol=0.1, atol=0.1)
    print("KERNEL_OK")
</pallas_src>

<mosaic_0001>
module attributes {stable_mosaic.version = 11 : i64} {
  func.func @kernel(%arg0: i32, %arg1: memref<1x4x208x128xbf16, #tpu.memory_space<vmem>>, %arg2: memref<128x128xbf16, #tpu.memory_space<vmem>>, %arg3: memref<1x128xf32, #tpu.memory_space<vmem>>, %arg4: memref<1x208x128xbf16, #tpu.memory_space<vmem>>) attributes {dimension_semantics = [#tpu.dimension_semantics<parallel>], iteration_bounds = array<i64: 2>, scalar_prefetch = 0 : i64, scratch_operands = 0 : i64, tpu.core_type = #tpu.core_type<tc>, window_params = [{transform_indices = @transform_0, window_bounds = array<i64: 1, 4, 208, 128>}, {pipeline_mode = #tpu.pipeline_mode<synchronous>, transform_indices = @transform_1, window_bounds = array<i64: 128, 128>}, {pipeline_mode = #tpu.pipeline_mode<synchronous>, transform_indices = @transform_2, window_bounds = array<i64: 1, 128>}, {transform_indices = @transform_3, window_bounds = array<i64: 1, 208, 128>}]} {
    %c0 = arith.constant 0 : index
    %c0_0 = arith.constant 0 : index
    %c0_1 = arith.constant 0 : index
    %c0_2 = arith.constant 0 : index
    %0 = vector.load %arg1[%c0, %c0_0, %c0_1, %c0_2] : memref<1x4x208x128xbf16, #tpu.memory_space<vmem>>, vector<1x1x104x128xbf16>
    %1 = vector.shape_cast %0 : vector<1x1x104x128xbf16> to vector<104x128xbf16>
    %c0_3 = arith.constant 0 : index
    %c0_4 = arith.constant 0 : index
    %2 = vector.load %arg2[%c0_3, %c0_4] : memref<128x128xbf16, #tpu.memory_space<vmem>>, vector<128x128xbf16>
    %cst = arith.constant dense<0.000000e+00> : vector<104x128xf32>
    %3 = tpu.matmul %1, %2, %cst {dimension_numbers = #tpu.dot_dimension_numbers<[1], [0], [0], [1], [0, 0, 1, 1], [], []>} : vector<104x128xbf16>, vector<128x128xbf16>, vector<104x128xf32> -> vector<104x128xf32>
    %c0_5 = arith.constant 0 : index
    %c1 = arith.constant 1 : index
    %c0_6 = arith.constant 0 : index
    %c0_7 = arith.constant 0 : index
    %4 = vector.load %arg1[%c0_5, %c1, %c0_6, %c0_7] : memref<1x4x208x128xbf16, #tpu.memory_space<vmem>>, vector<1x1x104x128xbf16>
    %5 = vector.shape_cast %4 : vector<1x1x104x128xbf16> to vector<104x128xbf16>
    %c0_8 = arith.constant 0 : index
    %c0_9 = arith.constant 0 : index
    %6 = vector.load %arg2[%c0_8, %c0_9] : memref<128x128xbf16, #tpu.memory_space<vmem>>, vector<128x128xbf16>
    %cst_10 = arith.constant dense<0.000000e+00> : vector<104x128xf32>
    %7 = tpu.matmul %5, %6, %cst_10 {dimension_numbers = #tpu.dot_dimension_numbers<[1], [0], [0], [1], [0, 0, 1, 1], [], []>} : vector<104x128xbf16>, vector<128x128xbf16>, vector<104x128xf32> -> vector<104x128xf32>
    %8 = arith.maximumf %3, %7 : vector<104x128xf32>
    %c0_11 = arith.constant 0 : index
    %c2 = arith.constant 2 : index
    %c0_12 = arith.constant 0 : index
    %c0_13 = arith.constant 0 : index
    %9 = vector.load %arg1[%c0_11, %c2, %c0_12, %c0_13] : memref<1x4x208x128xbf16, #tpu.memory_space<vmem>>, vector<1x1x104x128xbf16>
    %10 = vector.shape_cast %9 : vector<1x1x104x128xbf16> to vector<104x128xbf16>
    %c0_14 = arith.constant 0 : index
    %c0_15 = arith.constant 0 : index
    %11 = vector.load %arg2[%c0_14, %c0_15] : memref<128x128xbf16, #tpu.memory_space<vmem>>, vector<128x128xbf16>
    %cst_16 = arith.constant dense<0.000000e+00> : vector<104x128xf32>
    %12 = tpu.matmul %10, %11, %cst_16 {dimension_numbers = #tpu.dot_dimension_numbers<[1], [0], [0], [1], [0, 0, 1, 1], [], []>} : vector<104x128xbf16>, vector<128x128xbf16>, vector<104x128xf32> -> vector<104x128xf32>
    %13 = arith.maximumf %8, %12 : vector<104x128xf32>
    %c0_17 = arith.constant 0 : index
    %c3 = arith.constant 3 : index
    %c0_18 = arith.constant 0 : index
    %c0_19 = arith.constant 0 : index
    %14 = vector.load %arg1[%c0_17, %c3, %c0_18, %c0_19] : memref<1x4x208x128xbf16, #tpu.memory_space<vmem>>, vector<1x1x104x128xbf16>
    %15 = vector.shape_cast %14 : vector<1x1x104x128xbf16> to vector<104x128xbf16>
    %c0_20 = arith.constant 0 : index
    %c0_21 = arith.constant 0 : index
    %16 = vector.load %arg2[%c0_20, %c0_21] : memref<128x128xbf16, #tpu.memory_space<vmem>>, vector<128x128xbf16>
    %cst_22 = arith.constant dense<0.000000e+00> : vector<104x128xf32>
    %17 = tpu.matmul %15, %16, %cst_22 {dimension_numbers = #tpu.dot_dimension_numbers<[1], [0], [0], [1], [0, 0, 1, 1], [], []>} : vector<104x128xbf16>, vector<128x128xbf16>, vector<104x128xf32> -> vector<104x128xf32>
    %18 = arith.maximumf %13, %17 : vector<104x128xf32>
    %c0_23 = arith.constant 0 : index
    %c0_24 = arith.constant 0 : index
    %19 = vector.load %arg3[%c0_23, %c0_24] : memref<1x128xf32, #tpu.memory_space<vmem>>, vector<1x128xf32>
    %20 = vector.broadcast %19 : vector<1x128xf32> to vector<104x128xf32>
    %21 = arith.addf %18, %20 : vector<104x128xf32>
    %cst_25 = arith.constant 0.000000e+00 : f32
    %22 = vector.broadcast %cst_25 : f32 to vector<104x128xf32>
    %23 = arith.maximumf %21, %22 : vector<104x128xf32>
    %24 = arith.truncf %23 : vector<104x128xf32> to vector<104x128xbf16>
    %c0_26 = arith.constant 0 : index
    %c0_27 = arith.constant 0 : index
    %c0_28 = arith.constant 0 : index
    %25 = vector.load %arg4[%c0_26, %c0_27, %c0_28] : memref<1x208x128xbf16, #tpu.memory_space<vmem>>, vector<1x104x128xbf16>
    %26 = vector.shape_cast %25 : vector<1x104x128xbf16> to vector<104x128xbf16>
    %27 = vector.shape_cast %24 : vector<104x128xbf16> to vector<1x104x128xbf16>
    tpu.vector_store %arg4[%c0_26, %c0_27, %c0_28], %27 {strides = array<i32>} : memref<1x208x128xbf16, #tpu.memory_space<vmem>>, vector<1x104x128xbf16>,
    %c0_29 = arith.constant 0 : index
    %c0_30 = arith.constant 0 : index
    %c104 = arith.constant 104 : index
    %c0_31 = arith.constant 0 : index
    %28 = vector.load %arg1[%c0_29, %c0_30, %c104, %c0_31] : memref<1x4x208x128xbf16, #tpu.memory_space<vmem>>, vector<1x1x104x128xbf16>
    %29 = vector.shape_cast %28 : vector<1x1x104x128xbf16> to vector<104x128xbf16>
    %c0_32 = arith.constant 0 : index
    %c0_33 = arith.constant 0 : index
    %30 = vector.load %arg2[%c0_32, %c0_33] : memref<128x128xbf16, #tpu.memory_space<vmem>>, vector<128x128xbf16>
    %cst_34 = arith.constant dense<0.000000e+00> : vector<104x128xf32>
    %31 = tpu.matmul %29, %30, %cst_34 {dimension_numbers = #tpu.dot_dimension_numbers<[1], [0], [0], [1], [0, 0, 1, 1], [], []>} : vector<104x128xbf16>, vector<128x128xbf16>, vector<104x128xf32> -> vector<104x128xf32>
    %c0_35 = arith.constant 0 : index
    %c1_36 = arith.constant 1 : index
    %c104_37 = arith.constant 104 : index
    %c0_38 = arith.constant 0 : index
    %32 = vector.load %arg1[%c0_35, %c1_36, %c104_37, %c0_38] : memref<1x4x208x128xbf16, #tpu.memory_space<vmem>>, vector<1x1x104x128xbf16>
    %33 = vector.shape_cast %32 : vector<1x1x104x128xbf16> to vector<104x128xbf16>
    %c0_39 = arith.constant 0 : index
    %c0_40 = arith.constant 0 : index
    %34 = vector.load %arg2[%c0_39, %c0_40] : memref<128x128xbf16, #tpu.memory_space<vmem>>, vector<128x128xbf16>
    %cst_41 = arith.constant dense<0.000000e+00> : vector<104x128xf32>
    %35 = tpu.matmul %33, %34, %cst_41 {dimension_numbers = #tpu.dot_dimension_numbers<[1], [0], [0], [1], [0, 0, 1, 1], [], []>} : vector<104x128xbf16>, vector<128x128xbf16>, vector<104x128xf32> -> vector<104x128xf32>
    %36 = arith.maximumf %31, %35 : vector<104x128xf32>
    %c0_42 = arith.constant 0 : index
    %c2_43 = arith.constant 2 : index
    %c104_44 = arith.constant 104 : index
    %c0_45 = arith.constant 0 : index
    %37 = vector.load %arg1[%c0_42, %c2_43, %c104_44, %c0_45] : memref<1x4x208x128xbf16, #tpu.memory_space<vmem>>, vector<1x1x104x128xbf16>
    %38 = vector.shape_cast %37 : vector<1x1x104x128xbf16> to vector<104x128xbf16>
    %c0_46 = arith.constant 0 : index
    %c0_47 = arith.constant 0 : index
    %39 = vector.load %arg2[%c0_46, %c0_47] : memref<128x128xbf16, #tpu.memory_space<vmem>>, vector<128x128xbf16>
    %cst_48 = arith.constant dense<0.000000e+00> : vector<104x128xf32>
    %40 = tpu.matmul %38, %39, %cst_48 {dimension_numbers = #tpu.dot_dimension_numbers<[1], [0], [0], [1], [0, 0, 1, 1], [], []>} : vector<104x128xbf16>, vector<128x128xbf16>, vector<104x128xf32> -> vector<104x128xf32>
    %41 = arith.maximumf %36, %40 : vector<104x128xf32>
    %c0_49 = arith.constant 0 : index
    %c3_50 = arith.constant 3 : index
    %c104_51 = arith.constant 104 : index
    %c0_52 = arith.constant 0 : index
    %42 = vector.load %arg1[%c0_49, %c3_50, %c104_51, %c0_52] : memref<1x4x208x128xbf16, #tpu.memory_space<vmem>>, vector<1x1x104x128xbf16>
    %43 = vector.shape_cast %42 : vector<1x1x104x128xbf16> to vector<104x128xbf16>
    %c0_53 = arith.constant 0 : index
    %c0_54 = arith.constant 0 : index
    %44 = vector.load %arg2[%c0_53, %c0_54] : memref<128x128xbf16, #tpu.memory_space<vmem>>, vector<128x128xbf16>
    %cst_55 = arith.constant dense<0.000000e+00> : vector<104x128xf32>
    %45 = tpu.matmul %43, %44, %cst_55 {dimension_numbers = #tpu.dot_dimension_numbers<[1], [0], [0], [1], [0, 0, 1, 1], [], []>} : vector<104x128xbf16>, vector<128x128xbf16>, vector<104x128xf32> -> vector<104x128xf32>
    %46 = arith.maximumf %41, %45 : vector<104x128xf32>
    %c0_56 = arith.constant 0 : index
    %c0_57 = arith.constant 0 : index
    %47 = vector.load %arg3[%c0_56, %c0_57] : memref<1x128xf32, #tpu.memory_space<vmem>>, vector<1x128xf32>
    %48 = vector.broadcast %47 : vector<1x128xf32> to vector<104x128xf32>
    %49 = arith.addf %46, %48 : vector<104x128xf32>
    %cst_58 = arith.constant 0.000000e+00 : f32
    %50 = vector.broadcast %cst_58 : f32 to vector<104x128xf32>
    %51 = arith.maximumf %49, %50 : vector<104x128xf32>
    %52 = arith.truncf %51 : vector<104x128xf32> to vector<104x128xbf16>
    %c0_59 = arith.constant 0 : index
    %c104_60 = arith.constant 104 : index
    %c0_61 = arith.constant 0 : index
    %53 = vector.load %arg4[%c0_59, %c104_60, %c0_61] : memref<1x208x128xbf16, #tpu.memory_space<vmem>>, vector<1x104x128xbf16>
    %54 = vector.shape_cast %53 : vector<1x104x128xbf16> to vector<104x128xbf16>
    %55 = vector.shape_cast %52 : vector<104x128xbf16> to vector<1x104x128xbf16>
    tpu.vector_store %arg4[%c0_59, %c104_60, %c0_61], %55 {strides = array<i32>} : memref<1x208x128xbf16, #tpu.memory_space<vmem>>, vector<1x104x128xbf16>,
    return
  }
  func.func @transform_0(%arg0: i32) -> (i32, i32, i32, i32) {
    %c0_i32 = arith.constant 0 : i32
    %c0_i32_0 = arith.constant 0 : i32
    %c0_i32_1 = arith.constant 0 : i32
    %c0_i32_2 = arith.constant 0 : i32
    return %arg0, %c0_i32, %c0_i32_0, %c0_i32_1 : i32, i32, i32, i32
  }
  func.func @transform_1(%arg0: i32) -> (i32, i32) {
    %c0_i32 = arith.constant 0 : i32
    %c0_i32_0 = arith.constant 0 : i32
    %c0_i32_1 = arith.constant 0 : i32
    return %c0_i32, %c0_i32_0 : i32, i32
  }
  func.func @transform_2(%arg0: i32) -> (i32, i32) {
    %c0_i32 = arith.constant 0 : i32
    %c0_i32_0 = arith.constant 0 : i32
    %c0_i32_1 = arith.constant 0 : i32
    return %c0_i32, %c0_i32_0 : i32, i32
  }
  func.func @transform_3(%arg0: i32) -> (i32, i32, i32) {
    %c0_i32 = arith.constant 0 : i32
    %c0_i32_0 = arith.constant 0 : i32
    %c0_i32_1 = arith.constant 0 : i32
    return %arg0, %c0_i32, %c0_i32_0 : i32, i32, i32
  }
}

module attributes {stable_mosaic.version = 11 : i64} {
  func.func @kernel(%arg0: i32, %arg1: memref<1x4x32x512xbf16, #tpu.memory_space<vmem>>, %arg2: memref<512x128xbf16, #tpu.memory_space<vmem>>, %arg3: memref<1x128xf32, #tpu.memory_space<vmem>>, %arg4: memref<1x32x128xbf16, #tpu.memory_space<vmem>>) attributes {dimension_semantics = [#tpu.dimension_semantics<parallel>], iteration_bounds = array<i64: 2>, scalar_prefetch = 0 : i64, scratch_operands = 0 : i64, tpu.core_type = #tpu.core_type<tc>, window_params = [{transform_indices = @transform_0, window_bounds = array<i64: 1, 4, 32, 512>}, {pipeline_mode = #tpu.pipeline_mode<synchronous>, transform_indices = @transform_1, window_bounds = array<i64: 512, 128>}, {pipeline_mode = #tpu.pipeline_mode<synchronous>, transform_indices = @transform_2, window_bounds = array<i64: 1, 128>}, {transform_indices = @transform_3, window_bounds = array<i64: 1, 32, 128>}]} {
    %c0 = arith.constant 0 : index
    %c0_0 = arith.constant 0 : index
    %c0_1 = arith.constant 0 : index
    %c0_2 = arith.constant 0 : index
    %0 = vector.load %arg1[%c0, %c0_0, %c0_1, %c0_2] : memref<1x4x32x512xbf16, #tpu.memory_space<vmem>>, vector<1x1x32x512xbf16>
    %1 = vector.shape_cast %0 : vector<1x1x32x512xbf16> to vector<32x512xbf16>
    %c0_3 = arith.constant 0 : index
    %c0_4 = arith.constant 0 : index
    %2 = vector.load %arg2[%c0_3, %c0_4] : memref<512x128xbf16, #tpu.memory_space<vmem>>, vector<512x128xbf16>
    %cst = arith.constant dense<0.000000e+00> : vector<32x128xf32>
    %3 = tpu.matmul %1, %2, %cst {dimension_numbers = #tpu.dot_dimension_numbers<[1], [0], [0], [1], [0, 0, 1, 1], [], []>} : vector<32x512xbf16>, vector<512x128xbf16>, vector<32x128xf32> -> vector<32x128xf32>
    %c0_5 = arith.constant 0 : index
    %c1 = arith.constant 1 : index
    %c0_6 = arith.constant 0 : index
    %c0_7 = arith.constant 0 : index
    %4 = vector.load %arg1[%c0_5, %c1, %c0_6, %c0_7] : memref<1x4x32x512xbf16, #tpu.memory_space<vmem>>, vector<1x1x32x512xbf16>
    %5 = vector.shape_cast %4 : vector<1x1x32x512xbf16> to vector<32x512xbf16>
    %c0_8 = arith.constant 0 : index
    %c0_9 = arith.constant 0 : index
    %6 = vector.load %arg2[%c0_8, %c0_9] : memref<512x128xbf16, #tpu.memory_space<vmem>>, vector<512x128xbf16>
    %cst_10 = arith.constant dense<0.000000e+00> : vector<32x128xf32>
    %7 = tpu.matmul %5, %6, %cst_10 {dimension_numbers = #tpu.dot_dimension_numbers<[1], [0], [0], [1], [0, 0, 1, 1], [], []>} : vector<32x512xbf16>, vector<512x128xbf16>, vector<32x128xf32> -> vector<32x128xf32>
    %8 = arith.maximumf %3, %7 : vector<32x128xf32>
    %c0_11 = arith.constant 0 : index
    %c2 = arith.constant 2 : index
    %c0_12 = arith.constant 0 : index
    %c0_13 = arith.constant 0 : index
    %9 = vector.load %arg1[%c0_11, %c2, %c0_12, %c0_13] : memref<1x4x32x512xbf16, #tpu.memory_space<vmem>>, vector<1x1x32x512xbf16>
    %10 = vector.shape_cast %9 : vector<1x1x32x512xbf16> to vector<32x512xbf16>
    %c0_14 = arith.constant 0 : index
    %c0_15 = arith.constant 0 : index
    %11 = vector.load %arg2[%c0_14, %c0_15] : memref<512x128xbf16, #tpu.memory_space<vmem>>, vector<512x128xbf16>
    %cst_16 = arith.constant dense<0.000000e+00> : vector<32x128xf32>
    %12 = tpu.matmul %10, %11, %cst_16 {dimension_numbers = #tpu.dot_dimension_numbers<[1], [0], [0], [1], [0, 0, 1, 1], [], []>} : vector<32x512xbf16>, vector<512x128xbf16>, vector<32x128xf32> -> vector<32x128xf32>
    %13 = arith.maximumf %8, %12 : vector<32x128xf32>
    %c0_17 = arith.constant 0 : index
    %c3 = arith.constant 3 : index
    %c0_18 = arith.constant 0 : index
    %c0_19 = arith.constant 0 : index
    %14 = vector.load %arg1[%c0_17, %c3, %c0_18, %c0_19] : memref<1x4x32x512xbf16, #tpu.memory_space<vmem>>, vector<1x1x32x512xbf16>
    %15 = vector.shape_cast %14 : vector<1x1x32x512xbf16> to vector<32x512xbf16>
    %c0_20 = arith.constant 0 : index
    %c0_21 = arith.constant 0 : index
    %16 = vector.load %arg2[%c0_20, %c0_21] : memref<512x128xbf16, #tpu.memory_space<vmem>>, vector<512x128xbf16>
    %cst_22 = arith.constant dense<0.000000e+00> : vector<32x128xf32>
    %17 = tpu.matmul %15, %16, %cst_22 {dimension_numbers = #tpu.dot_dimension_numbers<[1], [0], [0], [1], [0, 0, 1, 1], [], []>} : vector<32x512xbf16>, vector<512x128xbf16>, vector<32x128xf32> -> vector<32x128xf32>
    %18 = arith.maximumf %13, %17 : vector<32x128xf32>
    %c0_23 = arith.constant 0 : index
    %c0_24 = arith.constant 0 : index
    %19 = vector.load %arg3[%c0_23, %c0_24] : memref<1x128xf32, #tpu.memory_space<vmem>>, vector<1x128xf32>
    %20 = vector.broadcast %19 : vector<1x128xf32> to vector<32x128xf32>
    %21 = arith.addf %18, %20 : vector<32x128xf32>
    %cst_25 = arith.constant 0.000000e+00 : f32
    %22 = vector.broadcast %cst_25 : f32 to vector<32x128xf32>
    %23 = arith.maximumf %21, %22 : vector<32x128xf32>
    %24 = arith.truncf %23 : vector<32x128xf32> to vector<32x128xbf16>
    %c0_26 = arith.constant 0 : index
    %c0_27 = arith.constant 0 : index
    %c0_28 = arith.constant 0 : index
    %25 = vector.load %arg4[%c0_26, %c0_27, %c0_28] : memref<1x32x128xbf16, #tpu.memory_space<vmem>>, vector<1x32x128xbf16>
    %26 = vector.shape_cast %25 : vector<1x32x128xbf16> to vector<32x128xbf16>
    %27 = vector.shape_cast %24 : vector<32x128xbf16> to vector<1x32x128xbf16>
    tpu.vector_store %arg4[%c0_26, %c0_27, %c0_28], %27 {strides = array<i32>} : memref<1x32x128xbf16, #tpu.memory_space<vmem>>, vector<1x32x128xbf16>,
    return
  }
  func.func @transform_0(%arg0: i32) -> (i32, i32, i32, i32) {
    %c0_i32 = arith.constant 0 : i32
    %c0_i32_0 = arith.constant 0 : i32
    %c0_i32_1 = arith.constant 0 : i32
    %c0_i32_2 = arith.constant 0 : i32
    return %arg0, %c0_i32, %c0_i32_0, %c0_i32_1 : i32, i32, i32, i32
  }
  func.func @transform_1(%arg0: i32) -> (i32, i32) {
    %c0_i32 = arith.constant 0 : i32
    %c0_i32_0 = arith.constant 0 : i32
    %c0_i32_1 = arith.constant 0 : i32
    return %c0_i32, %c0_i32_0 : i32, i32
  }
  func.func @transform_2(%arg0: i32) -> (i32, i32) {
    %c0_i32 = arith.constant 0 : i32
    %c0_i32_0 = arith.constant 0 : i32
    %c0_i32_1 = arith.constant 0 : i32
    return %c0_i32, %c0_i32_0 : i32, i32
  }
  func.func @transform_3(%arg0: i32) -> (i32, i32, i32) {
    %c0_i32 = arith.constant 0 : i32
    %c0_i32_0 = arith.constant 0 : i32
    %c0_i32_1 = arith.constant 0 : i32
    return %arg0, %c0_i32, %c0_i32_0 : i32, i32, i32
  }
}

module attributes {stable_mosaic.version = 11 : i64} {
  func.func @_fc_fused_kernel(%arg0: i32, %arg1: memref<8x800xbf16, #tpu.memory_space<vmem>>, %arg2: memref<800x128xbf16, #tpu.memory_space<vmem>>, %arg3: memref<1x128xf32, #tpu.memory_space<vmem>>, %arg4: memref<128x128xbf16, #tpu.memory_space<vmem>>, %arg5: memref<1x128xf32, #tpu.memory_space<vmem>>, %arg6: memref<128x128xbf16, #tpu.memory_space<vmem>>, %arg7: memref<1x128xf32, #tpu.memory_space<vmem>>, %arg8: memref<8x128xf32, #tpu.memory_space<vmem>>) attributes {dimension_semantics = [#tpu.dimension_semantics<parallel>], iteration_bounds = array<i64: 1>, scalar_prefetch = 0 : i64, scratch_operands = 0 : i64, tpu.core_type = #tpu.core_type<tc>, window_params = [{transform_indices = @transform_0, window_bounds = array<i64: 8, 800>}, {pipeline_mode = #tpu.pipeline_mode<synchronous>, transform_indices = @transform_1, window_bounds = array<i64: 800, 128>}, {pipeline_mode = #tpu.pipeline_mode<synchronous>, transform_indices = @transform_2, window_bounds = array<i64: 1, 128>}, {pipeline_mode = #tpu.pipeline_mode<synchronous>, transform_indices = @transform_3, window_bounds = array<i64: 128, 128>}, {pipeline_mode = #tpu.pipeline_mode<synchronous>, transform_indices = @transform_4, window_bounds = array<i64: 1, 128>}, {pipeline_mode = #tpu.pipeline_mode<synchronous>, transform_indices = @transform_5, window_bounds = array<i64: 128, 128>}, {pipeline_mode = #tpu.pipeline_mode<synchronous>, transform_indices = @transform_6, window_bounds = array<i64: 1, 128>}, {transform_indices = @transform_7, window_bounds = array<i64: 8, 128>}]} {
    %c0 = arith.constant 0 : index
    %c0_0 = arith.constant 0 : index
    %0 = vector.load %arg1[%c0, %c0_0] : memref<8x800xbf16, #tpu.memory_space<vmem>>, vector<8x800xbf16>
    %c0_1 = arith.constant 0 : index
    %c0_2 = arith.constant 0 : index
    %1 = vector.load %arg2[%c0_1, %c0_2] : memref<800x128xbf16, #tpu.memory_space<vmem>>, vector<800x128xbf16>
    %cst = arith.constant dense<0.000000e+00> : vector<8x128xf32>
    %2 = tpu.matmul %0, %1, %cst {dimension_numbers = #tpu.dot_dimension_numbers<[1], [0], [0], [1], [0, 0, 1, 1], [], []>} : vector<8x800xbf16>, vector<800x128xbf16>, vector<8x128xf32> -> vector<8x128xf32>
    %c0_3 = arith.constant 0 : index
    %c0_4 = arith.constant 0 : index
    %3 = vector.load %arg3[%c0_3, %c0_4] : memref<1x128xf32, #tpu.memory_space<vmem>>, vector<1x128xf32>
    %4 = vector.broadcast %3 : vector<1x128xf32> to vector<8x128xf32>
    %5 = arith.addf %2, %4 : vector<8x128xf32>
    %cst_5 = arith.constant 0.000000e+00 : f32
    %6 = vector.broadcast %cst_5 : f32 to vector<8x128xf32>
    %7 = arith.maximumf %5, %6 : vector<8x128xf32>
    %8 = arith.truncf %7 : vector<8x128xf32> to vector<8x128xbf16>
    %c0_6 = arith.constant 0 : index
    %c0_7 = arith.constant 0 : index
    %9 = vector.load %arg4[%c0_6, %c0_7] : memref<128x128xbf16, #tpu.memory_space<vmem>>, vector<128x128xbf16>
    %cst_8 = arith.constant dense<0.000000e+00> : vector<8x128xf32>
    %10 = tpu.matmul %8, %9, %cst_8 {dimension_numbers = #tpu.dot_dimension_numbers<[1], [0], [0], [1], [0, 0, 1, 1], [], []>} : vector<8x128xbf16>, vector<128x128xbf16>, vector<8x128xf32> -> vector<8x128xf32>
    %c0_9 = arith.constant 0 : index
    %c0_10 = arith.constant 0 : index
    %11 = vector.load %arg5[%c0_9, %c0_10] : memref<1x128xf32, #tpu.memory_space<vmem>>, vector<1x128xf32>
    %12 = vector.broadcast %11 : vector<1x128xf32> to vector<8x128xf32>
    %13 = arith.addf %10, %12 : vector<8x128xf32>
    %cst_11 = arith.constant 0.000000e+00 : f32
    %14 = vector.broadcast %cst_11 : f32 to vector<8x128xf32>
    %15 = arith.maximumf %13, %14 : vector<8x128xf32>
    %16 = arith.truncf %15 : vector<8x128xf32> to vector<8x128xbf16>
    %c0_12 = arith.constant 0 : index
    %c0_13 = arith.constant 0 : index
    %17 = vector.load %arg6[%c0_12, %c0_13] : memref<128x128xbf16, #tpu.memory_space<vmem>>, vector<128x128xbf16>
    %cst_14 = arith.constant dense<0.000000e+00> : vector<8x128xf32>
    %18 = tpu.matmul %16, %17, %cst_14 {dimension_numbers = #tpu.dot_dimension_numbers<[1], [0], [0], [1], [0, 0, 1, 1], [], []>} : vector<8x128xbf16>, vector<128x128xbf16>, vector<8x128xf32> -> vector<8x128xf32>
    %c0_15 = arith.constant 0 : index
    %c0_16 = arith.constant 0 : index
    %19 = vector.load %arg7[%c0_15, %c0_16] : memref<1x128xf32, #tpu.memory_space<vmem>>, vector<1x128xf32>
    %20 = vector.broadcast %19 : vector<1x128xf32> to vector<8x128xf32>
    %21 = arith.addf %18, %20 : vector<8x128xf32>
    %c0_17 = arith.constant 0 : index
    %c0_18 = arith.constant 0 : index
    %22 = vector.load %arg8[%c0_17, %c0_18] : memref<8x128xf32, #tpu.memory_space<vmem>>, vector<8x128xf32>
    tpu.vector_store %arg8[%c0_17, %c0_18], %21 {strides = array<i32>} : memref<8x128xf32, #tpu.memory_space<vmem>>, vector<8x128xf32>,
    return
  }
  func.func @transform_0(%arg0: i32) -> (i32, i32) {
    %c0_i32 = arith.constant 0 : i32
    %c0_i32_0 = arith.constant 0 : i32
    return %arg0, %c0_i32 : i32, i32
  }
  func.func @transform_1(%arg0: i32) -> (i32, i32) {
    %c0_i32 = arith.constant 0 : i32
    %c0_i32_0 = arith.constant 0 : i32
    %c0_i32_1 = arith.constant 0 : i32
    return %c0_i32, %c0_i32_0 : i32, i32
  }
  func.func @transform_2(%arg0: i32) -> (i32, i32) {
    %c0_i32 = arith.constant 0 : i32
    %c0_i32_0 = arith.constant 0 : i32
    %c0_i32_1 = arith.constant 0 : i32
    return %c0_i32, %c0_i32_0 : i32, i32
  }
  func.func @transform_3(%arg0: i32) -> (i32, i32) {
    %c0_i32 = arith.constant 0 : i32
    %c0_i32_0 = arith.constant 0 : i32
    %c0_i32_1 = arith.constant 0 : i32
    return %c0_i32, %c0_i32_0 : i32, i32
  }
  func.func @transform_4(%arg0: i32) -> (i32, i32) {
    %c0_i32 = arith.constant 0 : i32
    %c0_i32_0 = arith.constant 0 : i32
    %c0_i32_1 = arith.constant 0 : i32
    return %c0_i32, %c0_i32_0 : i32, i32
  }
  func.func @transform_5(%arg0: i32) -> (i32, i32) {
    %c0_i32 = arith.constant 0 : i32
    %c0_i32_0 = arith.constant 0 : i32
    %c0_i32_1 = arith.constant 0 : i32
    return %c0_i32, %c0_i32_0 : i32, i32
  }
  func.func @transform_6(%arg0: i32) -> (i32, i32) {
    %c0_i32 = arith.constant 0 : i32
    %c0_i32_0 = arith.constant 0 : i32
    %c0_i32_1 = arith.constant 0 : i32
    return %c0_i32, %c0_i32_0 : i32, i32
  }
  func.func @transform_7(%arg0: i32) -> (i32, i32) {
    %c0_i32 = arith.constant 0 : i32
    %c0_i32_0 = arith.constant 0 : i32
    return %arg0, %c0_i32 : i32, i32
  }
}

</mosaic_0001>

<llo_original>
// kernel: convnet_forward.3
$region0: #{convnet_forward.3}
  #allocation0 [shape = 'u32[]', space=smem, size = 0x4, offset = 0x4, fixed_abs, tag = 'smem constant byte address 0x4 - core index']
  #allocation1 [shape = 'u32[144,128]{1,0:T(1,128)}', space=vmem, size = 0x12000, scoped, tag = 'internal scratch']
  %s0 = inlined_call_operand.vmem [shape: bf16[2,4,208,128], index: 0, kind: input, shape index: {}]
  %s1 = inlined_call_operand.vmem [shape: bf16[128,128], index: 1, kind: input, shape index: {}]
  %s2 = inlined_call_operand.vmem [shape: f32[1,128], index: 2, kind: input, shape index: {}]
  %s3 = inlined_call_operand.vmem [shape: bf16[2,208,128], index: 3, kind: output, shape index: {}]
  %s4 = sld [smem:[#allocation0]]
  $region45: #{convnet_forward.3} parent=0
    _
  %s6 = ssub.s32 1, %s4
  %s7 = scalar_select 0, %s6, %s4
  loop: start=0, step=1, limit=4
  $region2: #{convnet_forward.3} parent=0 // loop_pre_header
    _
  $region3: #{convnet_forward.3} parent=0 // loop_header
    %s9 = sphi 0, %s13
    %p10 = scmp.ge.s32.totalorder %s9, 4
    %s19 = sphi 0, %s21
    %s22 = sphi 0, %s19
    %s23 = sphi 0, %s22
    %s39 = sphi 0, %s23
    %s43 = sphi 0, %s43
    %s45 = sphi 0, %s43
    %s46 = sphi 0, %s45
    %s60 = sphi 0, %s46
    %s64 = sphi 0, %s64
    %s66 = sphi 0, %s64
    %s67 = sphi 0, %s66
    %s81 = sphi 0, %s67
    %s87 = sphi 0, %s89
    %s90 = sphi 0, %s87
    %s91 = sphi 0, %s90
    %s107 = sphi 0, %s91
  $region4: #{convnet_forward.3} parent=0 // loop_header_branch
    %12 = sbr.rel (%p10) target = $region8
  $region5: #{convnet_forward.3} parent=0 // loop_body
    %s14 = ssub.s32 %s9, 1
    %s15 = ssub.s32 %s9, 2
    %s16 = sadd.s32 %s9, 1
    %s17 = ssub.s32 %s9, %s16
    %p18 = scmp.eq.s32.totalorder %s17, 0
    %s20 = sadd.s32 %s19, 1
    %s21 = scalar_select %p18, %s19, %s20
    %p24 = pneg %p18
    %p25 = scmp.eq.s32.totalorder %s9, 1
    %p26 = por %p24, %p25
    %p27 = scmp.ne.s32.totalorder %s19, %s22
    %p28 = scmp.eq.s32.totalorder %s9, 0
    %p29 = por %p27, %p28
    %p30 = scmp.ne.s32.totalorder %s19, %s22
    %p31 = scmp.eq.s32.totalorder %s14, 1
    %p32 = por %p30, %p31
    %p33 = scmp.ne.s32.totalorder %s22, %s23
    %p34 = scmp.eq.s32.totalorder %s14, 0
    %p35 = por %p33, %p34
    %p36 = scmp.ne.s32.totalorder %s22, %s23
    %p37 = scmp.eq.s32.totalorder %s15, 1
    %p38 = por %p36, %p37
    %p40 = scmp.ne.s32.totalorder %s23, %s39
    %p41 = scmp.eq.s32.totalorder %s15, 0
    %p42 = por %p40, %p41
    %s44 = sadd.s32 %s43, 1
    %p47 = scmp.eq.s32.totalorder %s9, 1
    %p48 = scmp.ne.s32.totalorder %s43, %s45
    %p49 = scmp.eq.s32.totalorder %s9, 0
    %p50 = por %p48, %p49
    %p51 = scmp.ne.s32.totalorder %s43, %s45
    %p52 = scmp.eq.s32.totalorder %s14, 1
    %p53 = por %p51, %p52
    %p54 = scmp.ne.s32.totalorder %s45, %s46
    %p55 = scmp.eq.s32.totalorder %s14, 0
    %p56 = por %p54, %p55
    %p57 = scmp.ne.s32.totalorder %s45, %s46
    %p58 = scmp.eq.s32.totalorder %s15, 1
    %p59 = por %p57, %p58
    %p61 = scmp.ne.s32.totalorder %s46, %s60
    %p62 = scmp.eq.s32.totalorder %s15, 0
    %p63 = por %p61, %p62
    %s65 = sadd.s32 %s64, 1
    %p68 = scmp.eq.s32.totalorder %s9, 1
    %p69 = scmp.ne.s32.totalorder %s64, %s66
    %p70 = scmp.eq.s32.totalorder %s9, 0
    %p71 = por %p69, %p70
    %p72 = scmp.ne.s32.totalorder %s64, %s66
    %p73 = scmp.eq.s32.totalorder %s14, 1
    %p74 = por %p72, %p73
    %p75 = scmp.ne.s32.totalorder %s66, %s67
    %p76 = scmp.eq.s32.totalorder %s14, 0
    %p77 = por %p75, %p76
    %p78 = scmp.ne.s32.totalorder %s66, %s67
    %p79 = scmp.eq.s32.totalorder %s15, 1
    %p80 = por %p78, %p79
    %p82 = scmp.ne.s32.totalorder %s67, %s81
    %p83 = scmp.eq.s32.totalorder %s15, 0
    %p84 = por %p82, %p83
    %s85 = ssub.s32 %s9, %s16
    %p86 = scmp.eq.s32.totalorder %s85, 0
    %s88 = sadd.s32 %s87, 1
    %s89 = scalar_select %p86, %s87, %s88
    %p92 = pneg %p86
    %p93 = scmp.eq.s32.totalorder %s9, 1
    %p94 = por %p92, %p93
    %p95 = scmp.ne.s32.totalorder %s87, %s90
    %p96 = scmp.eq.s32.totalorder %s9, 0
    %p97 = por %p95, %p96
    %p98 = scmp.ne.s32.totalorder %s87, %s90
    %p99 = scmp.eq.s32.totalorder %s14, 1
    %p100 = por %p98, %p99
    %p101 = scmp.ne.s32.totalorder %s90, %s91
    %p102 = scmp.eq.s32.totalorder %s14, 0
    %p103 = por %p101, %p102
    %p104 = scmp.ne.s32.totalorder %s90, %s91
    %p105 = scmp.eq.s32.totalorder %s15, 1
    %p106 = por %p104, %p105
    %p108 = scmp.ne.s32.totalorder %s91, %s107
    %p109 = scmp.eq.s32.totalorder %s15, 0
    %p110 = por %p108, %p109
    %p111 = scmp.le.s32.totalorder 1, %s9
    %p112 = scmp.lt.s32.totalorder %s9, 3
    %p113 = pnand %p111, %p112
    %p114 = pneg %p113
    // Predicated region
    $region9: #{convnet_forward.3} parent=5 // pred_check
      _
    $region10: #{convnet_forward.3} parent=5 // pred_check_branch
      %116 = sbr.rel (%p113) target = $region12
    $region11: #{convnet_forward.3} parent=5 // pred_region
      %s117 = ssub.s32 %s9, 1
      // Predicated region
      $region13: #{convnet_forward.3} parent=11 // pred_check
        %p118 = pneg %p56
      $region14: #{convnet_forward.3} parent=11 // pred_check_branch
        %120 = sbr.rel (%p118) target = $region16
      $region15: #{convnet_forward.3} parent=11 // pred_region
        _
      $region16: #{convnet_forward.3} parent=11 // pred_fallthru
        _
      // Predicated region
      $region17: #{convnet_forward.3} parent=11 // pred_check
        %p121 = pneg %p77
      $region18: #{convnet_forward.3} parent=11 // pred_check_branch
        %123 = sbr.rel (%p121) target = $region20
      $region19: #{convnet_forward.3} parent=11 // pred_region
        _
      $region20: #{convnet_forward.3} parent=11 // pred_fallthru
        _
    $region12: #{convnet_forward.3} parent=5 // pred_fallthru
      _
    %p124 = scmp.lt.s32.totalorder %s9, 2
    // Predicated region
    $region21: #{convnet_forward.3} parent=5 // pred_check
      %p125 = pneg %p124
    $region22: #{convnet_forward.3} parent=5 // pred_check_branch
      %127 = sbr.rel (%p125) target = $region24
    $region23: #{convnet_forward.3} parent=5 // pred_region
      // Predicated region
      $region25: #{convnet_forward.3} parent=23 // pred_check
        %p128 = pneg %p29
      $region26: #{convnet_forward.3} parent=23 // pred_check_branch
        %130 = sbr.rel (%p128) target = $region28
      $region27: #{convnet_forward.3} parent=23 // pred_region
        %p131 = scmp.lt.s32.totalorder %s9, 1
        %s132 = scalar_select %p131, %s9, 1
        %s133 = smul.addr %s132, 104
        %s134 = smul.addr %s133, 4
        %s135 = scalar_lea.vmem %s0, %s134
      $region28: #{convnet_forward.3} parent=23 // pred_fallthru
        _
    $region24: #{convnet_forward.3} parent=5 // pred_fallthru
      _
    %p136 = scmp.le.s32.totalorder 1, %s9
    %p137 = scmp.lt.s32.totalorder %s9, 3
    %p138 = pnand %p136, %p137
    %p139 = pneg %p138
    // Predicated region
    $region29: #{convnet_forward.3} parent=5 // pred_check
      _
    $region30: #{convnet_forward.3} parent=5 // pred_check_branch
      %141 = sbr.rel (%p138) target = $region32
    $region31: #{convnet_forward.3} parent=5 // pred_region
      %s142 = ssub.s32 %s9, 1
      %p143 = scmp.lt.s32.totalorder %s14, 1
      %s144 = scalar_select %p143, %s14, 1
      %s145 = smul.addr %s144, 104
      %s146 = smul.addr %s145, 4
      %s147 = scalar_lea.vmem %s0, %s146
      %p148 = pneg %p35
      %p149 = pneg %p32
      %p150 = pneg %p56
      %p151 = pneg %p53
      %p152 = pneg %p77
      %p153 = pneg %p74
      %p154 = pneg %p103
      %p155 = pneg %p100
      %p156 = scmp.lt.s32.totalorder %s14, 1
      %s157 = scalar_select %p156, %s14, 1
      %s158 = smul.addr %s157, 26
      %s159 = smul.addr %s158, 4
      %s160 = scalar_lea.vmem %s3, %s159
      %p161 = scmp.lt.s32.totalorder %s14, 1
      %s162 = scalar_select %p161, %s14, 1
      %s163 = smul.addr %s162, 104
      %s164 = smul.addr %s163, 4
      %s165 = scalar_lea.vmem %s0, %s164
      %p166 = scmp.lt.s32.totalorder %s14, 1
      %s167 = scalar_select %p166, %s14, 1
      %s168 = smul.addr %s167, 26
      %s169 = smul.addr %s168, 4
      %s170 = scalar_lea.vmem %s3, %s169
      %v172 = vld [vmem:[%s165] sm:$0xf]
      %v173 = vld [vmem:[%s165 + $0x4] sm:$0xf]
      %v174 = vld [vmem:[%s165 + $0x8] sm:$0xf]
      %v175 = vld [vmem:[%s165 + $0xc] sm:$0xf]
      %v176 = vld [vmem:[%s165 + $0x10] sm:$0xf]
      %v177 = vld [vmem:[%s165 + $0x14] sm:$0xf]
      %v178 = vld [vmem:[%s165 + $0x18] sm:$0xf]
      %v179 = vld [vmem:[%s165 + $0x1c] sm:$0xf]
      %v180 = vld [vmem:[%s165 + $0x20] sm:$0xf]
      %v181 = vld [vmem:[%s165 + $0x24] sm:$0xf]
      %v182 = vld [vmem:[%s165 + $0x28] sm:$0xf]
      %v183 = vld [vmem:[%s165 + $0x2c] sm:$0xf]
      %v184 = vld [vmem:[%s165 + $0x30] sm:$0xf]
      %v185 = vld [vmem:[%s1] sm:$0xf]
      %v186 = vld [vmem:[%s1 + $0x4] sm:$0xf]
      %v187 = vld [vmem:[%s1 + $0x8] sm:$0xf]
      %v188 = vld [vmem:[%s1 + $0xc] sm:$0xf]
      %v189 = vld [vmem:[%s1 + $0x10] sm:$0xf]
      %v190 = vld [vmem:[%s1 + $0x14] sm:$0xf]
      %v191 = vld [vmem:[%s1 + $0x18] sm:$0xf]
      %v192 = vld [vmem:[%s1 + $0x1c] sm:$0xf]
      %v193 = vld [vmem:[%s1 + $0x20] sm:$0xf]
      %v194 = vld [vmem:[%s1 + $0x24] sm:$0xf]
      %v195 = vld [vmem:[%s1 + $0x28] sm:$0xf]
      %v196 = vld [vmem:[%s1 + $0x2c] sm:$0xf]
      %v197 = vld [vmem:[%s1 + $0x30] sm:$0xf]
      %v198 = vld [vmem:[%s1 + $0x34] sm:$0xf]
      %v199 = vld [vmem:[%s1 + $0x38] sm:$0xf]
      %v200 = vld [vmem:[%s1 + $0x3c] sm:$0xf]
      %v214 = vunpack.c.l.b16 %v172
      %v215 = vunpack.c.l.b16 %v173
      %v216 = vunpack.c.l.b16 %v174
      %v217 = vunpack.c.l.b16 %v175
      %v218 = vunpack.c.l.b16 %v176
      %v219 = vunpack.c.l.b16 %v177
      %v220 = vunpack.c.l.b16 %v178
      %v221 = vunpack.c.l.b16 %v179
      %v222 = vunpack.c.l.b16 %v180
      %v223 = vunpack.c.l.b16 %v181
      %v224 = vunpack.c.l.b16 %v182
      %v225 = vunpack.c.l.b16 %v183
      %v226 = vunpack.c.l.b16 %v184
      %v227 = vpack.c.b16 %v215, %v214
      %v228 = vpack.c.b16 %v217, %v216
      %v229 = vpack.c.b16 %v219, %v218
      %v230 = vpack.c.b16 %v221, %v220
      %v231 = vpack.c.b16 %v223, %v222
      %v232 = vpack.c.b16 %v225, %v224
      %v233 = vpack.c.b16 %v226, %v226
      %v257 = vunpack.c.l.b16 %v185
      %v258 = vunpack.c.l.b16 %v186
      %v259 = vunpack.c.l.b16 %v187
      %v260 = vunpack.c.l.b16 %v188
      %v261 = vunpack.c.l.b16 %v189
      %v262 = vunpack.c.l.b16 %v190
      %v263 = vunpack.c.l.b16 %v191
      %v264 = vunpack.c.l.b16 %v192
      %v265 = vunpack.c.l.b16 %v193
      %v266 = vunpack.c.l.b16 %v194
      %v267 = vunpack.c.l.b16 %v195
      %v268 = vunpack.c.l.b16 %v196
      %v269 = vunpack.c.l.b16 %v197
      %v270 = vunpack.c.l.b16 %v198
      %v271 = vunpack.c.l.b16 %v199
      %v272 = vunpack.c.l.b16 %v200
      %v273 = vpack.c.b16 %v258, %v257
      %v274 = vpack.c.b16 %v260, %v259
      %v275 = vpack.c.b16 %v262, %v261
      %v276 = vpack.c.b16 %v264, %v263
      %v277 = vpack.c.b16 %v266, %v265
      %v278 = vpack.c.b16 %v268, %v267
      %v279 = vpack.c.b16 %v270, %v269
      %v280 = vpack.c.b16 %v272, %v271
      %289 = vmatprep.subr.bf16.mxu0 0
      %290 = vmatpush1.bf16.msra.mxu0 %v273
      %291 = vmatprep.subr.bf16.mxu0 0
      %292 = vmatpush1.bf16.msra.mxu0 %v274
      %293 = vmatprep.subr.bf16.mxu0 0
      %294 = vmatpush1.bf16.msra.mxu0 %v275
      %295 = vmatprep.subr.bf16.mxu0 0
      %296 = vmatpush1.bf16.msra.mxu0 %v276
      %297 = vmatprep.subr.bf16.mxu0 0
      %298 = vmatpush1.bf16.msra.mxu0 %v277
      %299 = vmatprep.subr.bf16.mxu0 0
      %300 = vmatpush1.bf16.msra.mxu0 %v278
      %301 = vmatprep.subr.bf16.mxu0 0
      %302 = vmatpush1.bf16.msra.mxu0 %v279
      %303 = vmatprep.subr.bf16.mxu0 0
      %304 = vmatpush1.bf16.msra.mxu0 %v280
      %305 = vmatprep.subr.bf16.mxu0 0
      %306 = vmatpush1.bf16.msra.mxu0 0
      %307 = vmatprep.subr.bf16.mxu0 0
      %308 = vmatpush1.bf16.msra.mxu0 0
      %309 = vmatprep.subr.bf16.mxu0 0
      %310 = vmatpush1.bf16.msra.mxu0 0
      %311 = vmatprep.subr.bf16.mxu0 0
      %312 = vmatpush1.bf16.msra.mxu0 0
      %313 = vmatprep.subr.bf16.mxu0 0
      %314 = vmatpush1.bf16.msra.mxu0 0
      %315 = vmatprep.subr.bf16.mxu0 0
      %316 = vmatpush1.bf16.msra.mxu0 0
      %317 = vmatprep.subr.bf16.mxu0 0
      %318 = vmatpush1.bf16.msra.mxu0 0
      %319 = vmatprep.subr.bf16.mxu0 0
      %320 = vmatpush1.bf16.msra.mxu0 0
      %321 = vmatprep.mubr.bf16.mxu0 0
      %322 = vmatmul.mubr.bf16.gmra.mrb[0].mxu0 %v227
      %v323 = vpop.f32.mrb[0].mxu0
      %v324 = vadd.f32 0.0, %v323
      %v325 = vpop.f32.mrb[0].mxu0
      %v326 = vpop.f32.mrb[0].mxu0
      %v327 = vadd.f32 0.0, %v326
      %v328 = vpop.f32.mrb[0].mxu0
      %329 = vmatprep.mubr.bf16.mxu0 0
      %330 = vmatmul.mubr.bf16.gmra.mrb[0].mxu0 %v228
      %v331 = vpop.f32.mrb[0].mxu0
      %v332 = vadd.f32 0.0, %v331
      %v333 = vpop.f32.mrb[0].mxu0
      %v334 = vpop.f32.mrb[0].mxu0
      %v335 = vadd.f32 0.0, %v334
      %v336 = vpop.f32.mrb[0].mxu0
      %337 = vmatprep.mubr.bf16.mxu0 0
      %338 = vmatmul.mubr.bf16.gmra.mrb[0].mxu0 %v229
      %v339 = vpop.f32.mrb[0].mxu0
      %v340 = vadd.f32 0.0, %v339
      %v341 = vpop.f32.mrb[0].mxu0
      %v342 = vpop.f32.mrb[0].mxu0
      %v343 = vadd.f32 0.0, %v342
      %v344 = vpop.f32.mrb[0].mxu0
      %345 = vmatprep.mubr.bf16.mxu0 0
      %346 = vmatmul.mubr.bf16.gmra.mrb[0].mxu0 %v230
      %v347 = vpop.f32.mrb[0].mxu0
      %v348 = vadd.f32 0.0, %v347
      %v349 = vpop.f32.mrb[0].mxu0
      %v350 = vpop.f32.mrb[0].mxu0
      %v351 = vadd.f32 0.0, %v350
      %v352 = vpop.f32.mrb[0].mxu0
      %353 = vmatprep.mubr.bf16.mxu0 0
      %354 = vmatmul.mubr.bf16.gmra.mrb[0].mxu0 %v231
      %v355 = vpop.f32.mrb[0].mxu0
      %v356 = vadd.f32 0.0, %v355
      %v357 = vpop.f32.mrb[0].mxu0
      %v358 = vpop.f32.mrb[0].mxu0
      %v359 = vadd.f32 0.0, %v358
      %v360 = vpop.f32.mrb[0].mxu0
      %361 = vmatprep.mubr.bf16.mxu0 0
      %362 = vmatmul.mubr.bf16.gmra.mrb[0].mxu0 %v232
      %v363 = vpop.f32.mrb[0].mxu0
      %v364 = vadd.f32 0.0, %v363
      %v365 = vpop.f32.mrb[0].mxu0
      %v366 = vpop.f32.mrb[0].mxu0
      %v367 = vadd.f32 0.0, %v366
      %v368 = vpop.f32.mrb[0].mxu0
      %369 = vmatprep.mubr.bf16.mxu0 0
      %370 = vmatmul.mubr.bf16.gmra.mrb[0].mxu0 %v233
      %v371 = vpop.f32.mrb[0].mxu0
      %v372 = vadd.f32 0.0, %v371
      %v373 = vpop.f32.mrb[0].mxu0
      %v374 = vpop.f32.mrb[0].mxu0
      %v375 = vpop.f32.mrb[0].mxu0
      %376 = vdwg.mxu0
      %s377 = scalar_lea.vmem %s165, 104
      %v378 = vld [vmem:[%s377] sm:$0xf]
      %v379 = vld [vmem:[%s377 + $0x4] sm:$0xf]
      %v380 = vld [vmem:[%s377 + $0x8] sm:$0xf]
      %v381 = vld [vmem:[%s377 + $0xc] sm:$0xf]
      %v382 = vld [vmem:[%s377 + $0x10] sm:$0xf]
      %v383 = vld [vmem:[%s377 + $0x14] sm:$0xf]
      %v384 = vld [vmem:[%s377 + $0x18] sm:$0xf]
      %v385 = vld [vmem:[%s377 + $0x1c] sm:$0xf]
      %v386 = vld [vmem:[%s377 + $0x20] sm:$0xf]
      %v387 = vld [vmem:[%s377 + $0x24] sm:$0xf]
      %v388 = vld [vmem:[%s377 + $0x28] sm:$0xf]
      %v389 = vld [vmem:[%s377 + $0x2c] sm:$0xf]
      %v390 = vld [vmem:[%s377 + $0x30] sm:$0xf]
      %v404 = vunpack.c.l.b16 %v378
      %v405 = vunpack.c.l.b16 %v379
      %v406 = vunpack.c.l.b16 %v380
      %v407 = vunpack.c.l.b16 %v381
      %v408 = vunpack.c.l.b16 %v382
      %v409 = vunpack.c.l.b16 %v383
      %v410 = vunpack.c.l.b16 %v384
      %v411 = vunpack.c.l.b16 %v385
      %v412 = vunpack.c.l.b16 %v386
      %v413 = vunpack.c.l.b16 %v387
      %v414 = vunpack.c.l.b16 %v388
      %v415 = vunpack.c.l.b16 %v389
      %v416 = vunpack.c.l.b16 %v390
      %v417 = vpack.c.b16 %v405, %v404
      %v418 = vpack.c.b16 %v407, %v406
      %v419 = vpack.c.b16 %v409, %v408
      %v420 = vpack.c.b16 %v411, %v410
      %v421 = vpack.c.b16 %v413, %v412
      %v422 = vpack.c.b16 %v415, %v414
      %v423 = vpack.c.b16 %v416, %v416
      %431 = vmatprep.subr.bf16.mxu0 0
      %432 = vmatpush1.bf16.msra.mxu0 %v273
      %433 = vmatprep.subr.bf16.mxu0 0
      %434 = vmatpush1.bf16.msra.mxu0 %v274
      %435 = vmatprep.subr.bf16.mxu0 0
      %436 = vmatpush1.bf16.msra.mxu0 %v275
      %437 = vmatprep.subr.bf16.mxu0 0
      %438 = vmatpush1.bf16.msra.mxu0 %v276
      %439 = vmatprep.subr.bf16.mxu0 0
      %440 = vmatpush1.bf16.msra.mxu0 %v277
      %441 = vmatprep.subr.bf16.mxu0 0
      %442 = vmatpush1.bf16.msra.mxu0 %v278
      %443 = vmatprep.subr.bf16.mxu0 0
      %444 = vmatpush1.bf16.msra.mxu0 %v279
      %445 = vmatprep.subr.bf16.mxu0 0
      %446 = vmatpush1.bf16.msra.mxu0 %v280
      %447 = vmatprep.subr.bf16.mxu0 0
      %448 = vmatpush1.bf16.msra.mxu0 0
      %449 = vmatprep.subr.bf16.mxu0 0
      %450 = vmatpush1.bf16.msra.mxu0 0
      %451 = vmatprep.subr.bf16.mxu0 0
      %452 = vmatpush1.bf16.msra.mxu0 0
      %453 = vmatprep.subr.bf16.mxu0 0
      %454 = vmatpush1.bf16.msra.mxu0 0
      %455 = vmatprep.subr.bf16.mxu0 0
      %456 = vmatpush1.bf16.msra.mxu0 0
      %457 = vmatprep.subr.bf16.mxu0 0
      %458 = vmatpush1.bf16.msra.mxu0 0
      %459 = vmatprep.subr.bf16.mxu0 0
      %460 = vmatpush1.bf16.msra.mxu0 0
      %461 = vmatprep.subr.bf16.mxu0 0
      %462 = vmatpush1.bf16.msra.mxu0 0
      %463 = vmatprep.mubr.bf16.mxu0 0
      %464 = vmatmul.mubr.bf16.gmra.mrb[0].mxu0 %v417
      %v465 = vpop.f32.mrb[0].mxu0
      %v466 = vadd.f32 0.0, %v465
      %v467 = vpop.f32.mrb[0].mxu0
      %v468 = vpop.f32.mrb[0].mxu0
      %v469 = vadd.f32 0.0, %v468
      %v470 = vpop.f32.mrb[0].mxu0
      %471 = vmatprep.mubr.bf16.mxu0 0
      %472 = vmatmul.mubr.bf16.gmra.mrb[0].mxu0 %v418
      %v473 = vpop.f32.mrb[0].mxu0
      %v474 = vadd.f32 0.0, %v473
      %v475 = vpop.f32.mrb[0].mxu0
      %v476 = vpop.f32.mrb[0].mxu0
      %v477 = vadd.f32 0.0, %v476
      %v478 = vpop.f32.mrb[0].mxu0
      %479 = vmatprep.mubr.bf16.mxu0 0
      %480 = vmatmul.mubr.bf16.gmra.mrb[0].mxu0 %v419
      %v481 = vpop.f32.mrb[0].mxu0
      %v482 = vadd.f32 0.0, %v481
      %v483 = vpop.f32.mrb[0].mxu0
      %v484 = vpop.f32.mrb[0].mxu0
      %v485 = vadd.f32 0.0, %v484
      %v486 = vpop.f32.mrb[0].mxu0
      %487 = vmatprep.mubr.bf16.mxu0 0
      %488 = vmatmul.mubr.bf16.gmra.mrb[0].mxu0 %v420
      %v489 = vpop.f32.mrb[0].mxu0
      %v490 = vadd.f32 0.0, %v489
      %v491 = vpop.f32.mrb[0].mxu0
      %v492 = vpop.f32.mrb[0].mxu0
      %v493 = vadd.f32 0.0, %v492
      %v494 = vpop.f32.mrb[0].mxu0
      %495 = vmatprep.mubr.bf16.mxu0 0
      %496 = vmatmul.mubr.bf16.gmra.mrb[0].mxu0 %v421
      %v497 = vpop.f32.mrb[0].mxu0
      %v498 = vadd.f32 0.0, %v497
      %v499 = vpop.f32.mrb[0].mxu0
      %v500 = vpop.f32.mrb[0].mxu0
      %v501 = vadd.f32 0.0, %v500
      %v502 = vpop.f32.mrb[0].mxu0
      %503 = vmatprep.mubr.bf16.mxu0 0
      %504 = vmatmul.mubr.bf16.gmra.mrb[0].mxu0 %v422
      %v505 = vpop.f32.mrb[0].mxu0
      %v506 = vadd.f32 0.0, %v505
      %v507 = vpop.f32.mrb[0].mxu0
      %v508 = vpop.f32.mrb[0].mxu0
      %v509 = vadd.f32 0.0, %v508
      %v510 = vpop.f32.mrb[0].mxu0
      %511 = vmatprep.mubr.bf16.mxu0 0
      %512 = vmatmul.mubr.bf16.gmra.mrb[0].mxu0 %v423
      %v513 = vpop.f32.mrb[0].mxu0
      %v514 = vadd.f32 0.0, %v513
      %v515 = vpop.f32.mrb[0].mxu0
      %v516 = vpop.f32.mrb[0].mxu0
      %v517 = vpop.f32.mrb[0].mxu0
      %518 = vdwg.mxu0
      %v519 = vmax.f32 %v324, %v466
      %v520 = vmax.f32 %v327, %v469
      %v521 = vmax.f32 %v332, %v474
      %v522 = vmax.f32 %v335, %v477
      %v523 = vmax.f32 %v340, %v482
      %v524 = vmax.f32 %v343, %v485
      %v525 = vmax.f32 %v348, %v490
      %v526 = vmax.f32 %v351, %v493
      %v527 = vmax.f32 %v356, %v498
      %v528 = vmax.f32 %v359, %v501
      %v529 = vmax.f32 %v364, %v506
      %v530 = vmax.f32 %v367, %v509
      %v531 = vmax.f32 %v372, %v514
      %s532 = scalar_lea.vmem %s165, 208
      %v533 = vld [vmem:[%s532] sm:$0xf]
      %v534 = vld [vmem:[%s532 + $0x4] sm:$0xf]
      %v535 = vld [vmem:[%s532 + $0x8] sm:$0xf]
      %v536 = vld [vmem:[%s532 + $0xc] sm:$0xf]
      %v537 = vld [vmem:[%s532 + $0x10] sm:$0xf]
      %v538 = vld [vmem:[%s532 + $0x14] sm:$0xf]
      %v539 = vld [vmem:[%s532 + $0x18] sm:$0xf]
      %v540 = vld [vmem:[%s532 + $0x1c] sm:$0xf]
      %v541 = vld [vmem:[%s532 + $0x20] sm:$0xf]
      %v542 = vld [vmem:[%s532 + $0x24] sm:$0xf]
      %v543 = vld [vmem:[%s532 + $0x28] sm:$0xf]
      %v544 = vld [vmem:[%s532 + $0x2c] sm:$0xf]
      %v545 = vld [vmem:[%s532 + $0x30] sm:$0xf]
      %v559 = vunpack.c.l.b16 %v533
      %v560 = vunpack.c.l.b16 %v534
      %v561 = vunpack.c.l.b16 %v535
      %v562 = vunpack.c.l.b16 %v536
      %v563 = vunpack.c.l.b16 %v537
      %v564 = vunpack.c.l.b16 %v538
      %v565 = vunpack.c.l.b16 %v539
      %v566 = vunpack.c.l.b16 %v540
      %v567 = vunpack.c.l.b16 %v541
      %v568 = vunpack.c.l.b16 %v542
      %v569 = vunpack.c.l.b16 %v543
      %v570 = vunpack.c.l.b16 %v544
      %v571 = vunpack.c.l.b16 %v545
      %v572 = vpack.c.b16 %v560, %v559
      %v573 = vpack.c.b16 %v562, %v561
      %v574 = vpack.c.b16 %v564, %v563
      %v575 = vpack.c.b16 %v566, %v565
      %v576 = vpack.c.b16 %v568, %v567
      %v577 = vpack.c.b16 %v570, %v569
      %v578 = vpack.c.b16 %v571, %v571
      %586 = vmatprep.subr.bf16.mxu0 0
      %587 = vmatpush1.bf16.msra.mxu0 %v273
      %588 = vmatprep.subr.bf16.mxu0 0
      %589 = vmatpush1.bf16.msra.mxu0 %v274
      %590 = vmatprep.subr.bf16.mxu0 0
      %591 = vmatpush1.bf16.msra.mxu0 %v275
      %592 = vmatprep.subr.bf16.mxu0 0
      %593 = vmatpush1.bf16.msra.mxu0 %v276
      %594 = vmatprep.subr.bf16.mxu0 0
      %595 = vmatpush1.bf16.msra.mxu0 %v277
      %596 = vmatprep.subr.bf16.mxu0 0
      %597 = vmatpush1.bf16.msra.mxu0 %v278
      %598 = vmatprep.subr.bf16.mxu0 0
      %599 = vmatpush1.bf16.msra.mxu0 %v279
      %600 = vmatprep.subr.bf16.mxu0 0
      %601 = vmatpush1.bf16.msra.mxu0 %v280
      %602 = vmatprep.subr.bf16.mxu0 0
      %603 = vmatpush1.bf16.msra.mxu0 0
      %604 = vmatprep.subr.bf16.mxu0 0
      %605 = vmatpush1.bf16.msra.mxu0 0
      %606 = vmatprep.subr.bf16.mxu0 0
      %607 = vmatpush1.bf16.msra.mxu0 0
      %608 = vmatprep.subr.bf16.mxu0 0
      %609 = vmatpush1.bf16.msra.mxu0 0
      %610 = vmatprep.subr.bf16.mxu0 0
      %611 = vmatpush1.bf16.msra.mxu0 0
      %612 = vmatprep.subr.bf16.mxu0 0
      %613 = vmatpush1.bf16.msra.mxu0 0
      %614 = vmatprep.subr.bf16.mxu0 0
      %615 = vmatpush1.bf16.msra.mxu0 0
      %616 = vmatprep.subr.bf16.mxu0 0
      %617 = vmatpush1.bf16.msra.mxu0 0
      %618 = vmatprep.mubr.bf16.mxu0 0
      %619 = vmatmul.mubr.bf16.gmra.mrb[0].mxu0 %v572
      %v620 = vpop.f32.mrb[0].mxu0
      %v621 = vadd.f32 0.0, %v620
      %v622 = vpop.f32.mrb[0].mxu0
      %v623 = vpop.f32.mrb[0].mxu0
      %v624 = vadd.f32 0.0, %v623
      %v625 = vpop.f32.mrb[0].mxu0
      %626 = vmatprep.mubr.bf16.mxu0 0
      %627 = vmatmul.mubr.bf16.gmra.mrb[0].mxu0 %v573
      %v628 = vpop.f32.mrb[0].mxu0
      %v629 = vadd.f32 0.0, %v628
      %v630 = vpop.f32.mrb[0].mxu0
      %v631 = vpop.f32.mrb[0].mxu0
      %v632 = vadd.f32 0.0, %v631
      %v633 = vpop.f32.mrb[0].mxu0
      %634 = vmatprep.mubr.bf16.mxu0 0
      %635 = vmatmul.mubr.bf16.gmra.mrb[0].mxu0 %v574
      %v636 = vpop.f32.mrb[0].mxu0
      %v637 = vadd.f32 0.0, %v636
      %v638 = vpop.f32.mrb[0].mxu0
      %v639 = vpop.f32.mrb[0].mxu0
      %v640 = vadd.f32 0.0, %v639
      %v641 = vpop.f32.mrb[0].mxu0
      %642 = vmatprep.mubr.bf16.mxu0 0
      %643 = vmatmul.mubr.bf16.gmra.mrb[0].mxu0 %v575
      %v644 = vpop.f32.mrb[0].mxu0
      %v645 = vadd.f32 0.0, %v644
      %v646 = vpop.f32.mrb[0].mxu0
      %v647 = vpop.f32.mrb[0].mxu0
      %v648 = vadd.f32 0.0, %v647
      %v649 = vpop.f32.mrb[0].mxu0
      %650 = vmatprep.mubr.bf16.mxu0 0
      %651 = vmatmul.mubr.bf16.gmra.mrb[0].mxu0 %v576
      %v652 = vpop.f32.mrb[0].mxu0
      %v653 = vadd.f32 0.0, %v652
      %v654 = vpop.f32.mrb[0].mxu0
      %v655 = vpop.f32.mrb[0].mxu0
      %v656 = vadd.f32 0.0, %v655
      %v657 = vpop.f32.mrb[0].mxu0
      %658 = vmatprep.mubr.bf16.mxu0 0
      %659 = vmatmul.mubr.bf16.gmra.mrb[0].mxu0 %v577
      %v660 = vpop.f32.mrb[0].mxu0
      %v661 = vadd.f32 0.0, %v660
      %v662 = vpop.f32.mrb[0].mxu0
      %v663 = vpop.f32.mrb[0].mxu0
      %v664 = vadd.f32 0.0, %v663
      %v665 = vpop.f32.mrb[0].mxu0
      %666 = vmatprep.mubr.bf16.mxu0 0
      %667 = vmatmul.mubr.bf16.gmra.mrb[0].mxu0 %v578
      %v668 = vpop.f32.mrb[0].mxu0
      %v669 = vadd.f32 0.0, %v668
      %v670 = vpop.f32.mrb[0].mxu0
      %v671 = vpop.f32.mrb[0].mxu0
      %v672 = vpop.f32.mrb[0].mxu0
      %673 = vdwg.mxu0
      %v674 = vmax.f32 %v519, %v621
      %v675 = vmax.f32 %v520, %v624
      %v676 = vmax.f32 %v521, %v629
      %v677 = vmax.f32 %v522, %v632
      %v678 = vmax.f32 %v523, %v637
      %v679 = vmax.f32 %v524, %v640
      %v680 = vmax.f32 %v525, %v645
      %v681 = vmax.f32 %v526, %v648
      %v682 = vmax.f32 %v527, %v653
      %v683 = vmax.f32 %v528, %v656
      %v684 = vmax.f32 %v529, %v661
      %v685 = vmax.f32 %v530, %v664
      %v686 = vmax.f32 %v531, %v669
      %s687 = scalar_lea.vmem %s165, 312
      %v688 = vld [vmem:[%s687] sm:$0xf]
      %v689 = vld [vmem:[%s687 + $0x4] sm:$0xf]
      %v690 = vld [vmem:[%s687 + $0x8] sm:$0xf]
      %v691 = vld [vmem:[%s687 + $0xc] sm:$0xf]
      %v692 = vld [vmem:[%s687 + $0x10] sm:$0xf]
      %v693 = vld [vmem:[%s687 + $0x14] sm:$0xf]
      %v694 = vld [vmem:[%s687 + $0x18] sm:$0xf]
      %v695 = vld [vmem:[%s687 + $0x1c] sm:$0xf]
      %v696 = vld [vmem:[%s687 + $0x20] sm:$0xf]
      %v697 = vld [vmem:[%s687 + $0x24] sm:$0xf]
      %v698 = vld [vmem:[%s687 + $0x28] sm:$0xf]
      %v699 = vld [vmem:[%s687 + $0x2c] sm:$0xf]
      %v700 = vld [vmem:[%s687 + $0x30] sm:$0xf]
      %v714 = vunpack.c.l.b16 %v688
      %v715 = vunpack.c.l.b16 %v689
      %v716 = vunpack.c.l.b16 %v690
      %v717 = vunpack.c.l.b16 %v691
      %v718 = vunpack.c.l.b16 %v692
      %v719 = vunpack.c.l.b16 %v693
      %v720 = vunpack.c.l.b16 %v694
      %v721 = vunpack.c.l.b16 %v695
      %v722 = vunpack.c.l.b16 %v696
      %v723 = vunpack.c.l.b16 %v697
      %v724 = vunpack.c.l.b16 %v698
      %v725 = vunpack.c.l.b16 %v699
      %v726 = vunpack.c.l.b16 %v700
      %v727 = vpack.c.b16 %v715, %v714
      %v728 = vpack.c.b16 %v717, %v716
      %v729 = vpack.c.b16 %v719, %v718
      %v730 = vpack.c.b16 %v721, %v720
      %v731 = vpack.c.b16 %v723, %v722
      %v732 = vpack.c.b16 %v725, %v724
      %v733 = vpack.c.b16 %v726, %v726
      %741 = vmatprep.subr.bf16.mxu0 0
      %742 = vmatpush1.bf16.msra.mxu0 %v273
      %743 = vmatprep.subr.bf16.mxu0 0
      %744 = vmatpush1.bf16.msra.mxu0 %v274
      %745 = vmatprep.subr.bf16.mxu0 0
      %746 = vmatpush1.bf16.msra.mxu0 %v275
      %747 = vmatprep.subr.bf16.mxu0 0
      %748 = vmatpush1.bf16.msra.mxu0 %v276
      %749 = vmatprep.subr.bf16.mxu0 0
      %750 = vmatpush1.bf16.msra.mxu0 %v277
      %751 = vmatprep.subr.bf16.mxu0 0
      %752 = vmatpush1.bf16.msra.mxu0 %v278
      %753 = vmatprep.subr.bf16.mxu0 0
      %754 = vmatpush1.bf16.msra.mxu0 %v279
      %755 = vmatprep.subr.bf16.mxu0 0
      %756 = vmatpush1.bf16.msra.mxu0 %v280
      %757 = vmatprep.subr.bf16.mxu0 0
      %758 = vmatpush1.bf16.msra.mxu0 0
      %759 = vmatprep.subr.bf16.mxu0 0
      %760 = vmatpush1.bf16.msra.mxu0 0
      %761 = vmatprep.subr.bf16.mxu0 0
      %762 = vmatpush1.bf16.msra.mxu0 0
      %763 = vmatprep.subr.bf16.mxu0 0
      %764 = vmatpush1.bf16.msra.mxu0 0
      %765 = vmatprep.subr.bf16.mxu0 0
      %766 = vmatpush1.bf16.msra.mxu0 0
      %767 = vmatprep.subr.bf16.mxu0 0
      %768 = vmatpush1.bf16.msra.mxu0 0
      %769 = vmatprep.subr.bf16.mxu0 0
      %770 = vmatpush1.bf16.msra.mxu0 0
      %771 = vmatprep.subr.bf16.mxu0 0
      %772 = vmatpush1.bf16.msra.mxu0 0
      %773 = vmatprep.mubr.bf16.mxu0 0
      %774 = vmatmul.mubr.bf16.gmra.mrb[0].mxu0 %v727
      %v775 = vpop.f32.mrb[0].mxu0
      %v776 = vadd.f32 0.0, %v775
      %v777 = vpop.f32.mrb[0].mxu0
      %v778 = vpop.f32.mrb[0].mxu0
      %v779 = vadd.f32 0.0, %v778
      %v780 = vpop.f32.mrb[0].mxu0
      %781 = vmatprep.mubr.bf16.mxu0 0
      %782 = vmatmul.mubr.bf16.gmra.mrb[0].mxu0 %v728
      %v783 = vpop.f32.mrb[0].mxu0
      %v784 = vadd.f32 0.0, %v783
      %v785 = vpop.f32.mrb[0].mxu0
      %v786 = vpop.f32.mrb[0].mxu0
      %v787 = vadd.f32 0.0, %v786
      %v788 = vpop.f32.mrb[0].mxu0
      %789 = vmatprep.mubr.bf16.mxu0 0
      %790 = vmatmul.mubr.bf16.gmra.mrb[0].mxu0 %v729
      %v791 = vpop.f32.mrb[0].mxu0
      %v792 = vadd.f32 0.0, %v791
      %v793 = vpop.f32.mrb[0].mxu0
      %v794 = vpop.f32.mrb[0].mxu0
      %v795 = vadd.f32 0.0, %v794
      %v796 = vpop.f32.mrb[0].mxu0
      %797 = vmatprep.mubr.bf16.mxu0 0
      %798 = vmatmul.mubr.bf16.gmra.mrb[0].mxu0 %v730
      %v799 = vpop.f32.mrb[0].mxu0
      %v800 = vadd.f32 0.0, %v799
      %v801 = vpop.f32.mrb[0].mxu0
      %v802 = vpop.f32.mrb[0].mxu0
      %v803 = vadd.f32 0.0, %v802
      %v804 = vpop.f32.mrb[0].mxu0
      %805 = vmatprep.mubr.bf16.mxu0 0
      %806 = vmatmul.mubr.bf16.gmra.mrb[0].mxu0 %v731
      %v807 = vpop.f32.mrb[0].mxu0
      %v808 = vadd.f32 0.0, %v807
      %v809 = vpop.f32.mrb[0].mxu0
      %v810 = vpop.f32.mrb[0].mxu0
      %v811 = vadd.f32 0.0, %v810
      %v812 = vpop.f32.mrb[0].mxu0
      %813 = vmatprep.mubr.bf16.mxu0 0
      %814 = vmatmul.mubr.bf16.gmra.mrb[0].mxu0 %v732
      %v815 = vpop.f32.mrb[0].mxu0
      %v816 = vadd.f32 0.0, %v815
      %v817 = vpop.f32.mrb[0].mxu0
      %v818 = vpop.f32.mrb[0].mxu0
      %v819 = vadd.f32 0.0, %v818
      %v820 = vpop.f32.mrb[0].mxu0
      %821 = vmatprep.mubr.bf16.mxu0 0
      %822 = vmatmul.mubr.bf16.gmra.mrb[0].mxu0 %v733
      %v823 = vpop.f32.mrb[0].mxu0
      %v824 = vadd.f32 0.0, %v823
      %v825 = vpop.f32.mrb[0].mxu0
      %v826 = vpop.f32.mrb[0].mxu0
      %v827 = vpop.f32.mrb[0].mxu0
      %828 = vdwg.mxu0
      %v829 = vmax.f32 %v674, %v776
      %v830 = vmax.f32 %v675, %v779
      %v831 = vmax.f32 %v676, %v784
      %v832 = vmax.f32 %v677, %v787
      %v833 = vmax.f32 %v678, %v792
      %v834 = vmax.f32 %v679, %v795
      %v835 = vmax.f32 %v680, %v800
      %v836 = vmax.f32 %v681, %v803
      %v837 = vmax.f32 %v682, %v808
      %v838 = vmax.f32 %v683, %v811
      %v839 = vmax.f32 %v684, %v816
      %v840 = vmax.f32 %v685, %v819
      %v841 = vmax.f32 %v686, %v824
      %v842 = vld [vmem:[%s2] sm:$0x1]
      %v844 = vlaneseq
      %v845 = vshrl.u32 %v844, 7
      %v846 = vsub.s32 0, %v845
      %v847 = vrot.slane %v842, %v846
      %v849 = vadd.f32 %v829, %v847
      %v850 = vadd.f32 %v830, %v847
      %v851 = vadd.f32 %v831, %v847
      %v852 = vadd.f32 %v832, %v847
      %v853 = vadd.f32 %v833, %v847
      %v854 = vadd.f32 %v834, %v847
      %v855 = vadd.f32 %v835, %v847
      %v856 = vadd.f32 %v836, %v847
      %v857 = vadd.f32 %v837, %v847
      %v858 = vadd.f32 %v838, %v847
      %v859 = vadd.f32 %v839, %v847
      %v860 = vadd.f32 %v840, %v847
      %v861 = vadd.f32 %v841, %v847
      %v862 = vmax.f32 %v849, 0.0
      %v863 = vmax.f32 %v850, 0.0
      %v864 = vmax.f32 %v851, 0.0
      %v865 = vmax.f32 %v852, 0.0
      %v866 = vmax.f32 %v853, 0.0
      %v867 = vmax.f32 %v854, 0.0
      %v868 = vmax.f32 %v855, 0.0
      %v869 = vmax.f32 %v856, 0.0
      %v870 = vmax.f32 %v857, 0.0
      %v871 = vmax.f32 %v858, 0.0
      %v872 = vmax.f32 %v859, 0.0
      %v873 = vmax.f32 %v860, 0.0
      %v874 = vmax.f32 %v861, 0.0
      %v875 = vpack.c.bf16 %v863, %v862
      %v876 = vpack.c.bf16 %v865, %v864
      %v877 = vpack.c.bf16 %v867, %v866
      %v878 = vpack.c.bf16 %v869, %v868
      %v879 = vpack.c.bf16 %v871, %v870
      %v880 = vpack.c.bf16 %v873, %v872
      %v881 = vpack.c.bf16 %v874, %v874
      %v889 = vunpack.c.l.b16 %v875
      %v890 = vunpack.c.h.b16 %v875
      %v891 = vunpack.c.l.b16 %v876
      %v892 = vunpack.c.h.b16 %v876
      %v893 = vunpack.c.l.b16 %v877
      %v894 = vunpack.c.h.b16 %v877
      %v895 = vunpack.c.l.b16 %v878
      %v896 = vunpack.c.h.b16 %v878
      %v897 = vunpack.c.l.b16 %v879
      %v898 = vunpack.c.h.b16 %v879
      %v899 = vunpack.c.l.b16 %v880
      %v900 = vunpack.c.h.b16 %v880
      %v901 = vunpack.c.l.b16 %v881
      %v902 = vpack.c.b16 %v889, %v889
      %v903 = vpack.c.b16 %v890, %v890
      %v904 = vpack.c.b16 %v891, %v891
      %v905 = vpack.c.b16 %v892, %v892
      %v906 = vpack.c.b16 %v893, %v893
      %v907 = vpack.c.b16 %v894, %v894
      %v908 = vpack.c.b16 %v895, %v895
      %v909 = vpack.c.b16 %v896, %v896
      %v910 = vpack.c.b16 %v897, %v897
      %v911 = vpack.c.b16 %v898, %v898
      %v912 = vpack.c.b16 %v899, %v899
      %v913 = vpack.c.b16 %v900, %v900
      %v914 = vpack.c.b16 %v901, %v901
      %928 = vst [vmem:[%s170] sm:$0xf] %v902
      %929 = vst [vmem:[%s170 + $0x4] sm:$0xf] %v903
      %930 = vst [vmem:[%s170 + $0x8] sm:$0xf] %v904
      %931 = vst [vmem:[%s170 + $0xc] sm:$0xf] %v905
      %932 = vst [vmem:[%s170 + $0x10] sm:$0xf] %v906
      %933 = vst [vmem:[%s170 + $0x14] sm:$0xf] %v907
      %934 = vst [vmem:[%s170 + $0x18] sm:$0xf] %v908
      %935 = vst [vmem:[%s170 + $0x1c] sm:$0xf] %v909
      %936 = vst [vmem:[%s170 + $0x20] sm:$0xf] %v910
      %937 = vst [vmem:[%s170 + $0x24] sm:$0xf] %v911
      %938 = vst [vmem:[%s170 + $0x28] sm:$0xf] %v912
      %939 = vst [vmem:[%s170 + $0x2c] sm:$0xf] %v913
      %940 = vst [vmem:[%s170 + $0x30] sm:$0xf] %v914
      %v941 = vld [vmem:[%s165 + $0x34] sm:$0xf]
      %v942 = vld [vmem:[%s165 + $0x38] sm:$0xf]
      %v943 = vld [vmem:[%s165 + $0x3c] sm:$0xf]
      %v944 = vld [vmem:[%s165 + $0x40] sm:$0xf]
      %v945 = vld [vmem:[%s165 + $0x44] sm:$0xf]
      %v946 = vld [vmem:[%s165 + $0x48] sm:$0xf]
      %v947 = vld [vmem:[%s165 + $0x4c] sm:$0xf]
      %v948 = vld [vmem:[%s165 + $0x50] sm:$0xf]
      %v949 = vld [vmem:[%s165 + $0x54] sm:$0xf]
      %v950 = vld [vmem:[%s165 + $0x58] sm:$0xf]
      %v951 = vld [vmem:[%s165 + $0x5c] sm:$0xf]
      %v952 = vld [vmem:[%s165 + $0x60] sm:$0xf]
      %v953 = vld [vmem:[%s165 + $0x64] sm:$0xf]
      %v954 = vld [vmem:[%s1] sm:$0xf]
      %v955 = vld [vmem:[%s1 + $0x4] sm:$0xf]
      %v956 = vld [vmem:[%s1 + $0x8] sm:$0xf]
      %v957 = vld [vmem:[%s1 + $0xc] sm:$0xf]
      %v958 = vld [vmem:[%s1 + $0x10] sm:$0xf]
      %v959 = vld [vmem:[%s1 + $0x14] sm:$0xf]
      %v960 = vld [vmem:[%s1 + $0x18] sm:$0xf]
      %v961 = vld [vmem:[%s1 + $0x1c] sm:$0xf]
      %v962 = vld [vmem:[%s1 + $0x20] sm:$0xf]
      %v963 = vld [vmem:[%s1 + $0x24] sm:$0xf]
      %v964 = vld [vmem:[%s1 + $0x28] sm:$0xf]
      %v965 = vld [vmem:[%s1 + $0x2c] sm:$0xf]
      %v966 = vld [vmem:[%s1 + $0x30] sm:$0xf]
      %v967 = vld [vmem:[%s1 + $0x34] sm:$0xf]
      %v968 = vld [vmem:[%s1 + $0x38] sm:$0xf]
      %v969 = vld [vmem:[%s1 + $0x3c] sm:$0xf]
      %v983 = vunpack.c.l.b16 %v941
      %v984 = vunpack.c.l.b16 %v942
      %v985 = vunpack.c.l.b16 %v943
      %v986 = vunpack.c.l.b16 %v944
      %v987 = vunpack.c.l.b16 %v945
      %v988 = vunpack.c.l.b16 %v946
      %v989 = vunpack.c.l.b16 %v947
      %v990 = vunpack.c.l.b16 %v948
      %v991 = vunpack.c.l.b16 %v949
      %v992 = vunpack.c.l.b16 %v950
      %v993 = vunpack.c.l.b16 %v951
      %v994 = vunpack.c.l.b16 %v952
      %v995 = vunpack.c.l.b16 %v953
      %v996 = vpack.c.b16 %v984, %v983
      %v997 = vpack.c.b16 %v986, %v985
      %v998 = vpack.c.b16 %v988, %v987
      %v999 = vpack.c.b16 %v990, %v989
      %v1000 = vpack.c.b16 %v992, %v991
      %v1001 = vpack.c.b16 %v994, %v993
      %v1002 = vpack.c.b16 %v995, %v995
      %v1026 = vunpack.c.l.b16 %v954
      %v1027 = vunpack.c.l.b16 %v955
      %v1028 = vunpack.c.l.b16 %v956
      %v1029 = vunpack.c.l.b16 %v957
      %v1030 = vunpack.c.l.b16 %v958
      %v1031 = vunpack.c.l.b16 %v959
      %v1032 = vunpack.c.l.b16 %v960
      %v1033 = vunpack.c.l.b16 %v961
      %v1034 = vunpack.c.l.b16 %v962
      %v1035 = vunpack.c.l.b16 %v963
      %v1036 = vunpack.c.l.b16 %v964
      %v1037 = vunpack.c.l.b16 %v965
      %v1038 = vunpack.c.l.b16 %v966
      %v1039 = vunpack.c.l.b16 %v967
      %v1040 = vunpack.c.l.b16 %v968
      %v1041 = vunpack.c.l.b16 %v969
      %v1042 = vpack.c.b16 %v1027, %v1026
      %v1043 = vpack.c.b16 %v1029, %v1028
      %v1044 = vpack.c.b16 %v1031, %v1030
      %v1045 = vpack.c.b16 %v1033, %v1032
      %v1046 = vpack.c.b16 %v1035, %v1034
      %v1047 = vpack.c.b16 %v1037, %v1036
      %v1048 = vpack.c.b16 %v1039, %v1038
      %v1049 = vpack.c.b16 %v1041, %v1040
      %1058 = vmatprep.subr.bf16.mxu0 0
      %1059 = vmatpush1.bf16.msra.mxu0 %v1042
      %1060 = vmatprep.subr.bf16.mxu0 0
      %1061 = vmatpush1.bf16.msra.mxu0 %v1043
      %1062 = vmatprep.subr.bf16.mxu0 0
      %1063 = vmatpush1.bf16.msra.mxu0 %v1044
      %1064 = vmatprep.subr.bf16.mxu0 0
      %1065 = vmatpush1.bf16.msra.mxu0 %v1045
      %1066 = vmatprep.subr.bf16.mxu0 0
      %1067 = vmatpush1.bf16.msra.mxu0 %v1046
      %1068 = vmatprep.subr.bf16.mxu0 0
      %1069 = vmatpush1.bf16.msra.mxu0 %v1047
      %1070 = vmatprep.subr.bf16.mxu0 0
      %1071 = vmatpush1.bf16.msra.mxu0 %v1048
      %1072 = vmatprep.subr.bf16.mxu0 0
      %1073 = vmatpush1.bf16.msra.mxu0 %v1049
      %1074 = vmatprep.subr.bf16.mxu0 0
      %1075 = vmatpush1.bf16.msra.mxu0 0
      %1076 = vmatprep.subr.bf16.mxu0 0
      %1077 = vmatpush1.bf16.msra.mxu0 0
      %1078 = vmatprep.subr.bf16.mxu0 0
      %1079 = vmatpush1.bf16.msra.mxu0 0
      %1080 = vmatprep.subr.bf16.mxu0 0
      %1081 = vmatpush1.bf16.msra.mxu0 0
      %1082 = vmatprep.subr.bf16.mxu0 0
      %1083 = vmatpush1.bf16.msra.mxu0 0
      %1084 = vmatprep.subr.bf16.mxu0 0
      %1085 = vmatpush1.bf16.msra.mxu0 0
      %1086 = vmatprep.subr.bf16.mxu0 0
      %1087 = vmatpush1.bf16.msra.mxu0 0
      %1088 = vmatprep.subr.bf16.mxu0 0
      %1089 = vmatpush1.bf16.msra.mxu0 0
      %1090 = vmatprep.mubr.bf16.mxu0 0
      %1091 = vmatmul.mubr.bf16.gmra.mrb[0].mxu0 %v996
      %v1092 = vpop.f32.mrb[0].mxu0
      %v1093 = vadd.f32 0.0, %v1092
      %v1094 = vpop.f32.mrb[0].mxu0
      %v1095 = vpop.f32.mrb[0].mxu0
      %v1096 = vadd.f32 0.0, %v1095
      %v1097 = vpop.f32.mrb[0].mxu0
      %1098 = vmatprep.mubr.bf16.mxu0 0
      %1099 = vmatmul.mubr.bf16.gmra.mrb[0].mxu0 %v997
      %v1100 = vpop.f32.mrb[0].mxu0
      %v1101 = vadd.f32 0.0, %v1100
      %v1102 = vpop.f32.mrb[0].mxu0
      %v1103 = vpop.f32.mrb[0].mxu0
      %v1104 = vadd.f32 0.0, %v1103
      %v1105 = vpop.f32.mrb[0].mxu0
      %1106 = vmatprep.mubr.bf16.mxu0 0
      %1107 = vmatmul.mubr.bf16.gmra.mrb[0].mxu0 %v998
      %v1108 = vpop.f32.mrb[0].mxu0
      %v1109 = vadd.f32 0.0, %v1108
      %v1110 = vpop.f32.mrb[0].mxu0
      %v1111 = vpop.f32.mrb[0].mxu0
      %v1112 = vadd.f32 0.0, %v1111
      %v1113 = vpop.f32.mrb[0].mxu0
      %1114 = vmatprep.mubr.bf16.mxu0 0
      %1115 = vmatmul.mubr.bf16.gmra.mrb[0].mxu0 %v999
      %v1116 = vpop.f32.mrb[0].mxu0
      %v1117 = vadd.f32 0.0, %v1116
      %v1118 = vpop.f32.mrb[0].mxu0
      %v1119 = vpop.f32.mrb[0].mxu0
      %v1120 = vadd.f32 0.0, %v1119
      %v1121 = vpop.f32.mrb[0].mxu0
      %1122 = vmatprep.mubr.bf16.mxu0 0
      %1123 = vmatmul.mubr.bf16.gmra.mrb[0].mxu0 %v1000
      %v1124 = vpop.f32.mrb[0].mxu0
      %v1125 = vadd.f32 0.0, %v1124
      %v1126 = vpop.f32.mrb[0].mxu0
      %v1127 = vpop.f32.mrb[0].mxu0
      %v1128 = vadd.f32 0.0, %v1127
      %v1129 = vpop.f32.mrb[0].mxu0
      %1130 = vmatprep.mubr.bf16.mxu0 0
      %1131 = vmatmul.mubr.bf16.gmra.mrb[0].mxu0 %v1001
      %v1132 = vpop.f32.mrb[0].mxu0
      %v1133 = vadd.f32 0.0, %v1132
      %v1134 = vpop.f32.mrb[0].mxu0
      %v1135 = vpop.f32.mrb[0].mxu0
      %v1136 = vadd.f32 0.0, %v1135
      %v1137 = vpop.f32.mrb[0].mxu0
      %1138 = vmatprep.mubr.bf16.mxu0 0
      %1139 = vmatmul.mubr.bf16.gmra.mrb[0].mxu0 %v1002
      %v1140 = vpop.f32.mrb[0].mxu0
      %v1141 = vadd.f32 0.0, %v1140
      %v1142 = vpop.f32.mrb[0].mxu0
      %v1143 = vpop.f32.mrb[0].mxu0
      %v1144 = vpop.f32.mrb[0].mxu0
      %1145 = vdwg.mxu0
      %v1146 = vld [vmem:[%s377 + $0x34] sm:$0xf]
      %v1147 = vld [vmem:[%s377 + $0x38] sm:$0xf]
      %v1148 = vld [vmem:[%s377 + $0x3c] sm:$0xf]
      %v1149 = vld [vmem:[%s377 + $0x40] sm:$0xf]
      %v1150 = vld [vmem:[%s377 + $0x44] sm:$0xf]
      %v1151 = vld [vmem:[%s377 + $0x48] sm:$0xf]
      %v1152 = vld [vmem:[%s377 + $0x4c] sm:$0xf]
      %v1153 = vld [vmem:[%s377 + $0x50] sm:$0xf]
      %v1154 = vld [vmem:[%s377 + $0x54] sm:$0xf]
      %v1155 = vld [vmem:[%s377 + $0x58] sm:$0xf]
      %v1156 = vld [vmem:[%s377 + $0x5c] sm:$0xf]
      %v1157 = vld [vmem:[%s377 + $0x60] sm:$0xf]
      %v1158 = vld [vmem:[%s377 + $0x64] sm:$0xf]
      %v1172 = vunpack.c.l.b16 %v1146
      %v1173 = vunpack.c.l.b16 %v1147
      %v1174 = vunpack.c.l.b16 %v1148
      %v1175 = vunpack.c.l.b16 %v1149
      %v1176 = vunpack.c.l.b16 %v1150
      %v1177 = vunpack.c.l.b16 %v1151
      %v1178 = vunpack.c.l.b16 %v1152
      %v1179 = vunpack.c.l.b16 %v1153
      %v1180 = vunpack.c.l.b16 %v1154
      %v1181 = vunpack.c.l.b16 %v1155
      %v1182 = vunpack.c.l.b16 %v1156
      %v1183 = vunpack.c.l.b16 %v1157
      %v1184 = vunpack.c.l.b16 %v1158
      %v1185 = vpack.c.b16 %v1173, %v1172
      %v1186 = vpack.c.b16 %v1175, %v1174
      %v1187 = vpack.c.b16 %v1177, %v1176
      %v1188 = vpack.c.b16 %v1179, %v1178
      %v1189 = vpack.c.b16 %v1181, %v1180
      %v1190 = vpack.c.b16 %v1183, %v1182
      %v1191 = vpack.c.b16 %v1184, %v1184
      %1199 = vmatprep.subr.bf16.mxu0 0
      %1200 = vmatpush1.bf16.msra.mxu0 %v1042
      %1201 = vmatprep.subr.bf16.mxu0 0
      %1202 = vmatpush1.bf16.msra.mxu0 %v1043
      %1203 = vmatprep.subr.bf16.mxu0 0
      %1204 = vmatpush1.bf16.msra.mxu0 %v1044
      %1205 = vmatprep.subr.bf16.mxu0 0
      %1206 = vmatpush1.bf16.msra.mxu0 %v1045
      %1207 = vmatprep.subr.bf16.mxu0 0
      %1208 = vmatpush1.bf16.msra.mxu0 %v1046
      %1209 = vmatprep.subr.bf16.mxu0 0
      %1210 = vmatpush1.bf16.msra.mxu0 %v1047
      %1211 = vmatprep.subr.bf16.mxu0 0
      %1212 = vmatpush1.bf16.msra.mxu0 %v1048
      %1213 = vmatprep.subr.bf16.mxu0 0
      %1214 = vmatpush1.bf16.msra.mxu0 %v1049
      %1215 = vmatprep.subr.bf16.mxu0 0
      %1216 = vmatpush1.bf16.msra.mxu0 0
      %1217 = vmatprep.subr.bf16.mxu0 0
      %1218 = vmatpush1.bf16.msra.mxu0 0
      %1219 = vmatprep.subr.bf16.mxu0 0
      %1220 = vmatpush1.bf16.msra.mxu0 0
      %1221 = vmatprep.subr.bf16.mxu0 0
      %1222 = vmatpush1.bf16.msra.mxu0 0
      %1223 = vmatprep.subr.bf16.mxu0 0
      %1224 = vmatpush1.bf16.msra.mxu0 0
      %1225 = vmatprep.subr.bf16.mxu0 0
      %1226 = vmatpush1.bf16.msra.mxu0 0
      %1227 = vmatprep.subr.bf16.mxu0 0
      %1228 = vmatpush1.bf16.msra.mxu0 0
      %1229 = vmatprep.subr.bf16.mxu0 0
      %1230 = vmatpush1.bf16.msra.mxu0 0
      %1231 = vmatprep.mubr.bf16.mxu0 0
      %1232 = vmatmul.mubr.bf16.gmra.mrb[0].mxu0 %v1185
      %v1233 = vpop.f32.mrb[0].mxu0
      %v1234 = vadd.f32 0.0, %v1233
      %v1235 = vpop.f32.mrb[0].mxu0
      %v1236 = vpop.f32.mrb[0].mxu0
      %v1237 = vadd.f32 0.0, %v1236
      %v1238 = vpop.f32.mrb[0].mxu0
      %1239 = vmatprep.mubr.bf16.mxu0 0
      %1240 = vmatmul.mubr.bf16.gmra.mrb[0].mxu0 %v1186
      %v1241 = vpop.f32.mrb[0].mxu0
      %v1242 = vadd.f32 0.0, %v1241
      %v1243 = vpop.f32.mrb[0].mxu0
      %v1244 = vpop.f32.mrb[0].mxu0
      %v1245 = vadd.f32 0.0, %v1244
      %v1246 = vpop.f32.mrb[0].mxu0
      %1247 = vmatprep.mubr.bf16.mxu0 0
      %1248 = vmatmul.mubr.bf16.gmra.mrb[0].mxu0 %v1187
      %v1249 = vpop.f32.mrb[0].mxu0
      %v1250 = vadd.f32 0.0, %v1249
      %v1251 = vpop.f32.mrb[0].mxu0
      %v1252 = vpop.f32.mrb[0].mxu0
      %v1253 = vadd.f32 0.0, %v1252
      %v1254 = vpop.f32.mrb[0].mxu0
      %1255 = vmatprep.mubr.bf16.mxu0 0
      %1256 = vmatmul.mubr.bf16.gmra.mrb[0].mxu0 %v1188
      %v1257 = vpop.f32.mrb[0].mxu0
      %v1258 = vadd.f32 0.0, %v1257
      %v1259 = vpop.f32.mrb[0].mxu0
      %v1260 = vpop.f32.mrb[0].mxu0
      %v1261 = vadd.f32 0.0, %v1260
      %v1262 = vpop.f32.mrb[0].mxu0
      %1263 = vmatprep.mubr.bf16.mxu0 0
      %1264 = vmatmul.mubr.bf16.gmra.mrb[0].mxu0 %v1189
      %v1265 = vpop.f32.mrb[0].mxu0
      %v1266 = vadd.f32 0.0, %v1265
      %v1267 = vpop.f32.mrb[0].mxu0
      %v1268 = vpop.f32.mrb[0].mxu0
      %v1269 = vadd.f32 0.0, %v1268
      %v1270 = vpop.f32.mrb[0].mxu0
      %1271 = vmatprep.mubr.bf16.mxu0 0
      %1272 = vmatmul.mubr.bf16.gmra.mrb[0].mxu0 %v1190
      %v1273 = vpop.f32.mrb[0].mxu0
      %v1274 = vadd.f32 0.0, %v1273
      %v1275 = vpop.f32.mrb[0].mxu0
      %v1276 = vpop.f32.mrb[0].mxu0
      %v1277 = vadd.f32 0.0, %v1276
      %v1278 = vpop.f32.mrb[0].mxu0
      %1279 = vmatprep.mubr.bf16.mxu0 0
      %1280 = vmatmul.mubr.bf16.gmra.mrb[0].mxu0 %v1191
      %v1281 = vpop.f32.mrb[0].mxu0
      %v1282 = vadd.f32 0.0, %v1281
      %v1283 = vpop.f32.mrb[0].mxu0
      %v1284 = vpop.f32.mrb[0].mxu0
      %v1285 = vpop.f32.mrb[0].mxu0
      %1286 = vdwg.mxu0
      %v1287 = vmax.f32 %v1093, %v1234
      %v1288 = vmax.f32 %v1096, %v1237
      %v1289 = vmax.f32 %v1101, %v1242
      %v1290 = vmax.f32 %v1104, %v1245
      %v1291 = vmax.f32 %v1109, %v1250
      %v1292 = vmax.f32 %v1112, %v1253
      %v1293 = vmax.f32 %v1117, %v1258
      %v1294 = vmax.f32 %v1120, %v1261
      %v1295 = vmax.f32 %v1125, %v1266
      %v1296 = vmax.f32 %v1128, %v1269
      %v1297 = vmax.f32 %v1133, %v1274
      %v1298 = vmax.f32 %v1136, %v1277
      %v1299 = vmax.f32 %v1141, %v1282
      %v1300 = vld [vmem:[%s532 + $0x34] sm:$0xf]
      %v1301 = vld [vmem:[%s532 + $0x38] sm:$0xf]
      %v1302 = vld [vmem:[%s532 + $0x3c] sm:$0xf]
      %v1303 = vld [vmem:[%s532 + $0x40] sm:$0xf]
      %v1304 = vld [vmem:[%s532 + $0x44] sm:$0xf]
      %v1305 = vld [vmem:[%s532 + $0x48] sm:$0xf]
      %v1306 = vld [vmem:[%s532 + $0x4c] sm:$0xf]
      %v1307 = vld [vmem:[%s532 + $0x50] sm:$0xf]
      %v1308 = vld [vmem:[%s532 + $0x54] sm:$0xf]
      %v1309 = vld [vmem:[%s532 + $0x58] sm:$0xf]
      %v1310 = vld [vmem:[%s532 + $0x5c] sm:$0xf]
      %v1311 = vld [vmem:[%s532 + $0x60] sm:$0xf]
      %v1312 = vld [vmem:[%s532 + $0x64] sm:$0xf]
      %v1326 = vunpack.c.l.b16 %v1300
      %v1327 = vunpack.c.l.b16 %v1301
      %v1328 = vunpack.c.l.b16 %v1302
      %v1329 = vunpack.c.l.b16 %v1303
      %v1330 = vunpack.c.l.b16 %v1304
      %v1331 = vunpack.c.l.b16 %v1305
      %v1332 = vunpack.c.l.b16 %v1306
      %v1333 = vunpack.c.l.b16 %v1307
      %v1334 = vunpack.c.l.b16 %v1308
      %v1335 = vunpack.c.l.b16 %v1309
      %v1336 = vunpack.c.l.b16 %v1310
      %v1337 = vunpack.c.l.b16 %v1311
      %v1338 = vunpack.c.l.b16 %v1312
      %v1339 = vpack.c.b16 %v1327, %v1326
      %v1340 = vpack.c.b16 %v1329, %v1328
      %v1341 = vpack.c.b16 %v1331, %v1330
      %v1342 = vpack.c.b16 %v1333, %v1332
      %v1343 = vpack.c.b16 %v1335, %v1334
      %v1344 = vpack.c.b16 %v1337, %v1336
      %v1345 = vpack.c.b16 %v1338, %v1338
      %1353 = vmatprep.subr.bf16.mxu0 0
      %1354 = vmatpush1.bf16.msra.mxu0 %v1042
      %1355 = vmatprep.subr.bf16.mxu0 0
      %1356 = vmatpush1.bf16.msra.mxu0 %v1043
      %1357 = vmatprep.subr.bf16.mxu0 0
      %1358 = vmatpush1.bf16.msra.mxu0 %v1044
      %1359 = vmatprep.subr.bf16.mxu0 0
      %1360 = vmatpush1.bf16.msra.mxu0 %v1045
      %1361 = vmatprep.subr.bf16.mxu0 0
      %1362 = vmatpush1.bf16.msra.mxu0 %v1046
      %1363 = vmatprep.subr.bf16.mxu0 0
      %1364 = vmatpush1.bf16.msra.mxu0 %v1047
      %1365 = vmatprep.subr.bf16.mxu0 0
      %1366 = vmatpush1.bf16.msra.mxu0 %v1048
      %1367 = vmatprep.subr.bf16.mxu0 0
      %1368 = vmatpush1.bf16.msra.mxu0 %v1049
      %1369 = vmatprep.subr.bf16.mxu0 0
      %1370 = vmatpush1.bf16.msra.mxu0 0
      %1371 = vmatprep.subr.bf16.mxu0 0
      %1372 = vmatpush1.bf16.msra.mxu0 0
      %1373 = vmatprep.subr.bf16.mxu0 0
      %1374 = vmatpush1.bf16.msra.mxu0 0
      %1375 = vmatprep.subr.bf16.mxu0 0
      %1376 = vmatpush1.bf16.msra.mxu0 0
      %1377 = vmatprep.subr.bf16.mxu0 0
      %1378 = vmatpush1.bf16.msra.mxu0 0
      %1379 = vmatprep.subr.bf16.mxu0 0
      %1380 = vmatpush1.bf16.msra.mxu0 0
      %1381 = vmatprep.subr.bf16.mxu0 0
      %1382 = vmatpush1.bf16.msra.mxu0 0
      %1383 = vmatprep.subr.bf16.mxu0 0
      %1384 = vmatpush1.bf16.msra.mxu0 0
      %1385 = vmatprep.mubr.bf16.mxu0 0
      %1386 = vmatmul.mubr.bf16.gmra.mrb[0].mxu0 %v1339
      %v1387 = vpop.f32.mrb[0].mxu0
      %v1388 = vadd.f32 0.0, %v1387
      %v1389 = vpop.f32.mrb[0].mxu0
      %v1390 = vpop.f32.mrb[0].mxu0
      %v1391 = vadd.f32 0.0, %v1390
      %v1392 = vpop.f32.mrb[0].mxu0
      %1393 = vmatprep.mubr.bf16.mxu0 0
      %1394 = vmatmul.mubr.bf16.gmra.mrb[0].mxu0 %v1340
      %v1395 = vpop.f32.mrb[0].mxu0
      %v1396 = vadd.f32 0.0, %v1395
      %v1397 = vpop.f32.mrb[0].mxu0
      %v1398 = vpop.f32.mrb[0].mxu0
      %v1399 = vadd.f32 0.0, %v1398
      %v1400 = vpop.f32.mrb[0].mxu0
      %1401 = vmatprep.mubr.bf16.mxu0 0
      %1402 = vmatmul.mubr.bf16.gmra.mrb[0].mxu0 %v1341
      %v1403 = vpop.f32.mrb[0].mxu0
      %v1404 = vadd.f32 0.0, %v1403
      %v1405 = vpop.f32.mrb[0].mxu0
      %v1406 = vpop.f32.mrb[0].mxu0
      %v1407 = vadd.f32 0.0, %v1406
      %v1408 = vpop.f32.mrb[0].mxu0
      %1409 = vmatprep.mubr.bf16.mxu0 0
      %1410 = vmatmul.mubr.bf16.gmra.mrb[0].mxu0 %v1342
      %v1411 = vpop.f32.mrb[0].mxu0
      %v1412 = vadd.f32 0.0, %v1411
      %v1413 = vpop.f32.mrb[0].mxu0
      %v1414 = vpop.f32.mrb[0].mxu0
      %v1415 = vadd.f32 0.0, %v1414
      %v1416 = vpop.f32.mrb[0].mxu0
      %1417 = vmatprep.mubr.bf16.mxu0 0
      %1418 = vmatmul.mubr.bf16.gmra.mrb[0].mxu0 %v1343
      %v1419 = vpop.f32.mrb[0].mxu0
      %v1420 = vadd.f32 0.0, %v1419
      %v1421 = vpop.f32.mrb[0].mxu0
      %v1422 = vpop.f32.mrb[0].mxu0
      %v1423 = vadd.f32 0.0, %v1422
      %v1424 = vpop.f32.mrb[0].mxu0
      %1425 = vmatprep.mubr.bf16.mxu0 0
      %1426 = vmatmul.mubr.bf16.gmra.mrb[0].mxu0 %v1344
      %v1427 = vpop.f32.mrb[0].mxu0
      %v1428 = vadd.f32 0.0, %v1427
      %v1429 = vpop.f32.mrb[0].mxu0
      %v1430 = vpop.f32.mrb[0].mxu0
      %v1431 = vadd.f32 0.0, %v1430
      %v1432 = vpop.f32.mrb[0].mxu0
      %1433 = vmatprep.mubr.bf16.mxu0 0
      %1434 = vmatmul.mubr.bf16.gmra.mrb[0].mxu0 %v1345
      %v1435 = vpop.f32.mrb[0].mxu0
      %v1436 = vadd.f32 0.0, %v1435
      %v1437 = vpop.f32.mrb[0].mxu0
      %v1438 = vpop.f32.mrb[0].mxu0
      %v1439 = vpop.f32.mrb[0].mxu0
      %1440 = vdwg.mxu0
      %v1441 = vmax.f32 %v1287, %v1388
      %v1442 = vmax.f32 %v1288, %v1391
      %v1443 = vmax.f32 %v1289, %v1396
      %v1444 = vmax.f32 %v1290, %v1399
      %v1445 = vmax.f32 %v1291, %v1404
      %v1446 = vmax.f32 %v1292, %v1407
      %v1447 = vmax.f32 %v1293, %v1412
      %v1448 = vmax.f32 %v1294, %v1415
      %v1449 = vmax.f32 %v1295, %v1420
      %v1450 = vmax.f32 %v1296, %v1423
      %v1451 = vmax.f32 %v1297, %v1428
      %v1452 = vmax.f32 %v1298, %v1431
      %v1453 = vmax.f32 %v1299, %v1436
      %v1454 = vld [vmem:[%s687 + $0x34] sm:$0xf]
      %v1455 = vld [vmem:[%s687 + $0x38] sm:$0xf]
      %v1456 = vld [vmem:[%s687 + $0x3c] sm:$0xf]
      %v1457 = vld [vmem:[%s687 + $0x40] sm:$0xf]
      %v1458 = vld [vmem:[%s687 + $0x44] sm:$0xf]
      %v1459 = vld [vmem:[%s687 + $0x48] sm:$0xf]
      %v1460 = vld [vmem:[%s687 + $0x4c] sm:$0xf]
      %v1461 = vld [vmem:[%s687 + $0x50] sm:$0xf]
      %v1462 = vld [vmem:[%s687 + $0x54] sm:$0xf]
      %v1463 = vld [vmem:[%s687 + $0x58] sm:$0xf]
      %v1464 = vld [vmem:[%s687 + $0x5c] sm:$0xf]
      %v1465 = vld [vmem:[%s687 + $0x60] sm:$0xf]
      %v1466 = vld [vmem:[%s687 + $0x64] sm:$0xf]
      %v1480 = vunpack.c.l.b16 %v1454
      %v1481 = vunpack.c.l.b16 %v1455
      %v1482 = vunpack.c.l.b16 %v1456
      %v1483 = vunpack.c.l.b16 %v1457
      %v1484 = vunpack.c.l.b16 %v1458
      %v1485 = vunpack.c.l.b16 %v1459
      %v1486 = vunpack.c.l.b16 %v1460
      %v1487 = vunpack.c.l.b16 %v1461
      %v1488 = vunpack.c.l.b16 %v1462
      %v1489 = vunpack.c.l.b16 %v1463
      %v1490 = vunpack.c.l.b16 %v1464
      %v1491 = vunpack.c.l.b16 %v1465
      %v1492 = vunpack.c.l.b16 %v1466
      %v1493 = vpack.c.b16 %v1481, %v1480
      %v1494 = vpack.c.b16 %v1483, %v1482
      %v1495 = vpack.c.b16 %v1485, %v1484
      %v1496 = vpack.c.b16 %v1487, %v1486
      %v1497 = vpack.c.b16 %v1489, %v1488
      %v1498 = vpack.c.b16 %v1491, %v1490
      %v1499 = vpack.c.b16 %v1492, %v1492
      %1507 = vmatprep.subr.bf16.mxu0 0
      %1508 = vmatpush1.bf16.msra.mxu0 %v1042
      %1509 = vmatprep.subr.bf16.mxu0 0
      %1510 = vmatpush1.bf16.msra.mxu0 %v1043
      %1511 = vmatprep.subr.bf16.mxu0 0
      %1512 = vmatpush1.bf16.msra.mxu0 %v1044
      %1513 = vmatprep.subr.bf16.mxu0 0
      %1514 = vmatpush1.bf16.msra.mxu0 %v1045
      %1515 = vmatprep.subr.bf16.mxu0 0
      %1516 = vmatpush1.bf16.msra.mxu0 %v1046
      %1517 = vmatprep.subr.bf16.mxu0 0
      %1518 = vmatpush1.bf16.msra.mxu0 %v1047
      %1519 = vmatprep.subr.bf16.mxu0 0
      %1520 = vmatpush1.bf16.msra.mxu0 %v1048
      %1521 = vmatprep.subr.bf16.mxu0 0
      %1522 = vmatpush1.bf16.msra.mxu0 %v1049
      %1523 = vmatprep.subr.bf16.mxu0 0
      %1524 = vmatpush1.bf16.msra.mxu0 0
      %1525 = vmatprep.subr.bf16.mxu0 0
      %1526 = vmatpush1.bf16.msra.mxu0 0
      %1527 = vmatprep.subr.bf16.mxu0 0
      %1528 = vmatpush1.bf16.msra.mxu0 0
      %1529 = vmatprep.subr.bf16.mxu0 0
      %1530 = vmatpush1.bf16.msra.mxu0 0
      %1531 = vmatprep.subr.bf16.mxu0 0
      %1532 = vmatpush1.bf16.msra.mxu0 0
      %1533 = vmatprep.subr.bf16.mxu0 0
      %1534 = vmatpush1.bf16.msra.mxu0 0
      %1535 = vmatprep.subr.bf16.mxu0 0
      %1536 = vmatpush1.bf16.msra.mxu0 0
      %1537 = vmatprep.subr.bf16.mxu0 0
      %1538 = vmatpush1.bf16.msra.mxu0 0
      %1539 = vmatprep.mubr.bf16.mxu0 0
      %1540 = vmatmul.mubr.bf16.gmra.mrb[0].mxu0 %v1493
      %v1541 = vpop.f32.mrb[0].mxu0
      %v1542 = vadd.f32 0.0, %v1541
      %v1543 = vpop.f32.mrb[0].mxu0
      %v1544 = vpop.f32.mrb[0].mxu0
      %v1545 = vadd.f32 0.0, %v1544
      %v1546 = vpop.f32.mrb[0].mxu0
      %1547 = vmatprep.mubr.bf16.mxu0 0
      %1548 = vmatmul.mubr.bf16.gmra.mrb[0].mxu0 %v1494
      %v1549 = vpop.f32.mrb[0].mxu0
      %v1550 = vadd.f32 0.0, %v1549
      %v1551 = vpop.f32.mrb[0].mxu0
      %v1552 = vpop.f32.mrb[0].mxu0
      %v1553 = vadd.f32 0.0, %v1552
      %v1554 = vpop.f32.mrb[0].mxu0
      %1555 = vmatprep.mubr.bf16.mxu0 0
      %1556 = vmatmul.mubr.bf16.gmra.mrb[0].mxu0 %v1495
      %v1557 = vpop.f32.mrb[0].mxu0
      %v1558 = vadd.f32 0.0, %v1557
      %v1559 = vpop.f32.mrb[0].mxu0
      %v1560 = vpop.f32.mrb[0].mxu0
      %v1561 = vadd.f32 0.0, %v1560
      %v1562 = vpop.f32.mrb[0].mxu0
      %1563 = vmatprep.mubr.bf16.mxu0 0
      %1564 = vmatmul.mubr.bf16.gmra.mrb[0].mxu0 %v1496
      %v1565 = vpop.f32.mrb[0].mxu0
      %v1566 = vadd.f32 0.0, %v1565
      %v1567 = vpop.f32.mrb[0].mxu0
      %v1568 = vpop.f32.mrb[0].mxu0
      %v1569 = vadd.f32 0.0, %v1568
      %v1570 = vpop.f32.mrb[0].mxu0
      %1571 = vmatprep.mubr.bf16.mxu0 0
      %1572 = vmatmul.mubr.bf16.gmra.mrb[0].mxu0 %v1497
      %v1573 = vpop.f32.mrb[0].mxu0
      %v1574 = vadd.f32 0.0, %v1573
      %v1575 = vpop.f32.mrb[0].mxu0
      %v1576 = vpop.f32.mrb[0].mxu0
      %v1577 = vadd.f32 0.0, %v1576
      %v1578 = vpop.f32.mrb[0].mxu0
      %1579 = vmatprep.mubr.bf16.mxu0 0
      %1580 = vmatmul.mubr.bf16.gmra.mrb[0].mxu0 %v1498
      %v1581 = vpop.f32.mrb[0].mxu0
      %v1582 = vadd.f32 0.0, %v1581
      %v1583 = vpop.f32.mrb[0].mxu0
      %v1584 = vpop.f32.mrb[0].mxu0
      %v1585 = vadd.f32 0.0, %v1584
      %v1586 = vpop.f32.mrb[0].mxu0
      %1587 = vmatprep.mubr.bf16.mxu0 0
      %1588 = vmatmul.mubr.bf16.gmra.mrb[0].mxu0 %v1499
      %v1589 = vpop.f32.mrb[0].mxu0
      %v1590 = vadd.f32 0.0, %v1589
      %v1591 = vpop.f32.mrb[0].mxu0
      %v1592 = vpop.f32.mrb[0].mxu0
      %v1593 = vpop.f32.mrb[0].mxu0
      %1594 = vdwg.mxu0
      %v1595 = vmax.f32 %v1441, %v1542
      %v1596 = vmax.f32 %v1442, %v1545
      %v1597 = vmax.f32 %v1443, %v1550
      %v1598 = vmax.f32 %v1444, %v1553
      %v1599 = vmax.f32 %v1445, %v1558
      %v1600 = vmax.f32 %v1446, %v1561
      %v1601 = vmax.f32 %v1447, %v1566
      %v1602 = vmax.f32 %v1448, %v1569
      %v1603 = vmax.f32 %v1449, %v1574
      %v1604 = vmax.f32 %v1450, %v1577
      %v1605 = vmax.f32 %v1451, %v1582
      %v1606 = vmax.f32 %v1452, %v1585
      %v1607 = vmax.f32 %v1453, %v1590
      %v1608 = vld [vmem:[%s2] sm:$0x1]
      %v1610 = vlaneseq
      %v1611 = vshrl.u32 %v1610, 7
      %v1612 = vsub.s32 0, %v1611
      %v1613 = vrot.slane %v1608, %v1612
      %v1615 = vadd.f32 %v1595, %v1613
      %v1616 = vadd.f32 %v1596, %v1613
      %v1617 = vadd.f32 %v1597, %v1613
      %v1618 = vadd.f32 %v1598, %v1613
      %v1619 = vadd.f32 %v1599, %v1613
      %v1620 = vadd.f32 %v1600, %v1613
      %v1621 = vadd.f32 %v1601, %v1613
      %v1622 = vadd.f32 %v1602, %v1613
      %v1623 = vadd.f32 %v1603, %v1613
      %v1624 = vadd.f32 %v1604, %v1613
      %v1625 = vadd.f32 %v1605, %v1613
      %v1626 = vadd.f32 %v1606, %v1613
      %v1627 = vadd.f32 %v1607, %v1613
      %v1628 = vmax.f32 %v1615, 0.0
      %v1629 = vmax.f32 %v1616, 0.0
      %v1630 = vmax.f32 %v1617, 0.0
      %v1631 = vmax.f32 %v1618, 0.0
      %v1632 = vmax.f32 %v1619, 0.0
      %v1633 = vmax.f32 %v1620, 0.0
      %v1634 = vmax.f32 %v1621, 0.0
      %v1635 = vmax.f32 %v1622, 0.0
      %v1636 = vmax.f32 %v1623, 0.0
      %v1637 = vmax.f32 %v1624, 0.0
      %v1638 = vmax.f32 %v1625, 0.0
      %v1639 = vmax.f32 %v1626, 0.0
      %v1640 = vmax.f32 %v1627, 0.0
      %v1641 = vpack.c.bf16 %v1629, %v1628
      %v1642 = vpack.c.bf16 %v1631, %v1630
      %v1643 = vpack.c.bf16 %v1633, %v1632
      %v1644 = vpack.c.bf16 %v1635, %v1634
      %v1645 = vpack.c.bf16 %v1637, %v1636
      %v1646 = vpack.c.bf16 %v1639, %v1638
      %v1647 = vpack.c.bf16 %v1640, %v1640
      %v1655 = vunpack.c.l.b16 %v1641
      %v1656 = vunpack.c.h.b16 %v1641
      %v1657 = vunpack.c.l.b16 %v1642
      %v1658 = vunpack.c.h.b16 %v1642
      %v1659 = vunpack.c.l.b16 %v1643
      %v1660 = vunpack.c.h.b16 %v1643
      %v1661 = vunpack.c.l.b16 %v1644
      %v1662 = vunpack.c.h.b16 %v1644
      %v1663 = vunpack.c.l.b16 %v1645
      %v1664 = vunpack.c.h.b16 %v1645
      %v1665 = vunpack.c.l.b16 %v1646
      %v1666 = vunpack.c.h.b16 %v1646
      %v1667 = vunpack.c.l.b16 %v1647
      %v1668 = vpack.c.b16 %v1655, %v1655
      %v1669 = vpack.c.b16 %v1656, %v1656
      %v1670 = vpack.c.b16 %v1657, %v1657
      %v1671 = vpack.c.b16 %v1658, %v1658
      %v1672 = vpack.c.b16 %v1659, %v1659
      %v1673 = vpack.c.b16 %v1660, %v1660
      %v1674 = vpack.c.b16 %v1661, %v1661
      %v1675 = vpack.c.b16 %v1662, %v1662
      %v1676 = vpack.c.b16 %v1663, %v1663
      %v1677 = vpack.c.b16 %v1664, %v1664
      %v1678 = vpack.c.b16 %v1665, %v1665
      %v1679 = vpack.c.b16 %v1666, %v1666
      %v1680 = vpack.c.b16 %v1667, %v1667
      %1694 = vst [vmem:[%s170 + $0x34] sm:$0xf] %v1668
      %1695 = vst [vmem:[%s170 + $0x38] sm:$0xf] %v1669
      %1696 = vst [vmem:[%s170 + $0x3c] sm:$0xf] %v1670
      %1697 = vst [vmem:[%s170 + $0x40] sm:$0xf] %v1671
      %1698 = vst [vmem:[%s170 + $0x44] sm:$0xf] %v1672
      %1699 = vst [vmem:[%s170 + $0x48] sm:$0xf] %v1673
      %1700 = vst [vmem:[%s170 + $0x4c] sm:$0xf] %v1674
      %1701 = vst [vmem:[%s170 + $0x50] sm:$0xf] %v1675
      %1702 = vst [vmem:[%s170 + $0x54] sm:$0xf] %v1676
      %1703 = vst [vmem:[%s170 + $0x58] sm:$0xf] %v1677
      %1704 = vst [vmem:[%s170 + $0x5c] sm:$0xf] %v1678
      %1705 = vst [vmem:[%s170 + $0x60] sm:$0xf] %v1679
      %1706 = vst [vmem:[%s170 + $0x64] sm:$0xf] %v1680
      %p1707 = scmp.lt.s32.totalorder %s14, 1
      %s1708 = scalar_select %p1707, %s14, 1
      %s1709 = smul.addr %s1708, 26
      %s1710 = smul.addr %s1709, 4
      %s1711 = scalar_lea.vmem %s3, %s1710
      // Predicated region
      $region33: #{convnet_forward.3} parent=31 // pred_check
        %p1712 = pneg %p100
      $region34: #{convnet_forward.3} parent=31 // pred_check_branch
        %1714 = sbr.rel (%p1712) target = $region36
      $region35: #{convnet_forward.3} parent=31 // pred_region
        _
      $region36: #{convnet_forward.3} parent=31 // pred_fallthru
        _
    $region32: #{convnet_forward.3} parent=5 // pred_fallthru
      _
    %p1715 = scmp.le.s32.totalorder 2, %s9
    // Predicated region
    $region37: #{convnet_forward.3} parent=5 // pred_check
      %p1716 = pneg %p1715
    $region38: #{convnet_forward.3} parent=5 // pred_check_branch
      %1718 = sbr.rel (%p1716) target = $region40
    $region39: #{convnet_forward.3} parent=5 // pred_region
      %s1719 = ssub.s32 %s9, 2
      // Predicated region
      $region41: #{convnet_forward.3} parent=39 // pred_check
        %p1720 = pneg %p106
      $region42: #{convnet_forward.3} parent=39 // pred_check_branch
        %1722 = sbr.rel (%p1720) target = $region44
      $region43: #{convnet_forward.3} parent=39 // pred_region
        %p1723 = scmp.lt.s32.totalorder %s15, 1
        %s1724 = scalar_select %p1723, %s15, 1
        %s1725 = smul.addr %s1724, 26
        %s1726 = smul.addr %s1725, 4
        %s1727 = scalar_lea.vmem %s3, %s1726
      $region44: #{convnet_forward.3} parent=39 // pred_fallthru
        _
    $region40: #{convnet_forward.3} parent=5 // pred_fallthru
      _
  $region6: #{convnet_forward.3} parent=0 // loop_footer
    %s13 = sadd.s32 1, %s9
  $region7: #{convnet_forward.3} parent=0 // loop_footer_branch
    %8 = sbr.rel target = $region3
  $region8: #{convnet_forward.3} parent=0 // loop_exit
    _

// kernel: convnet_forward.4
$region0: #{convnet_forward.4}
  #allocation0 [shape = 'u32[]', space=smem, size = 0x4, offset = 0x4, fixed_abs, tag = 'smem constant byte address 0x4 - core index']
  #allocation1 [shape = 'u32[144,128]{1,0:T(1,128)}', space=vmem, size = 0x12000, scoped, tag = 'internal scratch']
  %s0 = inlined_call_operand.vmem [shape: bf16[2,4,32,512], index: 0, kind: input, shape index: {}]
  %s1 = inlined_call_operand.vmem [shape: bf16[512,128], index: 1, kind: input, shape index: {}]
  %s2 = inlined_call_operand.vmem [shape: f32[1,128], index: 2, kind: input, shape index: {}]
  %s3 = inlined_call_operand.vmem [shape: bf16[2,32,128], index: 3, kind: output, shape index: {}]
  %s4 = sld [smem:[#allocation0]]
  $region45: #{convnet_forward.4} parent=0
    _
  %s6 = ssub.s32 1, %s4
  %s7 = scalar_select 0, %s6, %s4
  loop: start=0, step=1, limit=4
  $region2: #{convnet_forward.4} parent=0 // loop_pre_header
    _
  $region3: #{convnet_forward.4} parent=0 // loop_header
    %s9 = sphi 0, %s13
    %p10 = scmp.ge.s32.totalorder %s9, 4
    %s19 = sphi 0, %s21
    %s22 = sphi 0, %s19
    %s23 = sphi 0, %s22
    %s39 = sphi 0, %s23
    %s43 = sphi 0, %s43
    %s45 = sphi 0, %s43
    %s46 = sphi 0, %s45
    %s60 = sphi 0, %s46
    %s64 = sphi 0, %s64
    %s66 = sphi 0, %s64
    %s67 = sphi 0, %s66
    %s81 = sphi 0, %s67
    %s87 = sphi 0, %s89
    %s90 = sphi 0, %s87
    %s91 = sphi 0, %s90
    %s107 = sphi 0, %s91
  $region4: #{convnet_forward.4} parent=0 // loop_header_branch
    %12 = sbr.rel (%p10) target = $region8
  $region5: #{convnet_forward.4} parent=0 // loop_body
    %s14 = ssub.s32 %s9, 1
    %s15 = ssub.s32 %s9, 2
    %s16 = sadd.s32 %s9, 1
    %s17 = ssub.s32 %s9, %s16
    %p18 = scmp.eq.s32.totalorder %s17, 0
    %s20 = sadd.s32 %s19, 1
    %s21 = scalar_select %p18, %s19, %s20
    %p24 = pneg %p18
    %p25 = scmp.eq.s32.totalorder %s9, 1
    %p26 = por %p24, %p25
    %p27 = scmp.ne.s32.totalorder %s19, %s22
    %p28 = scmp.eq.s32.totalorder %s9, 0
    %p29 = por %p27, %p28
    %p30 = scmp.ne.s32.totalorder %s19, %s22
    %p31 = scmp.eq.s32.totalorder %s14, 1
    %p32 = por %p30, %p31
    %p33 = scmp.ne.s32.totalorder %s22, %s23
    %p34 = scmp.eq.s32.totalorder %s14, 0
    %p35 = por %p33, %p34
    %p36 = scmp.ne.s32.totalorder %s22, %s23
    %p37 = scmp.eq.s32.totalorder %s15, 1
    %p38 = por %p36, %p37
    %p40 = scmp.ne.s32.totalorder %s23, %s39
    %p41 = scmp.eq.s32.totalorder %s15, 0
    %p42 = por %p40, %p41
    %s44 = sadd.s32 %s43, 1
    %p47 = scmp.eq.s32.totalorder %s9, 1
    %p48 = scmp.ne.s32.totalorder %s43, %s45
    %p49 = scmp.eq.s32.totalorder %s9, 0
    %p50 = por %p48, %p49
    %p51 = scmp.ne.s32.totalorder %s43, %s45
    %p52 = scmp.eq.s32.totalorder %s14, 1
    %p53 = por %p51, %p52
    %p54 = scmp.ne.s32.totalorder %s45, %s46
    %p55 = scmp.eq.s32.totalorder %s14, 0
    %p56 = por %p54, %p55
    %p57 = scmp.ne.s32.totalorder %s45, %s46
    %p58 = scmp.eq.s32.totalorder %s15, 1
    %p59 = por %p57, %p58
    %p61 = scmp.ne.s32.totalorder %s46, %s60
    %p62 = scmp.eq.s32.totalorder %s15, 0
    %p63 = por %p61, %p62
    %s65 = sadd.s32 %s64, 1
    %p68 = scmp.eq.s32.totalorder %s9, 1
    %p69 = scmp.ne.s32.totalorder %s64, %s66
    %p70 = scmp.eq.s32.totalorder %s9, 0
    %p71 = por %p69, %p70
    %p72 = scmp.ne.s32.totalorder %s64, %s66
    %p73 = scmp.eq.s32.totalorder %s14, 1
    %p74 = por %p72, %p73
    %p75 = scmp.ne.s32.totalorder %s66, %s67
    %p76 = scmp.eq.s32.totalorder %s14, 0
    %p77 = por %p75, %p76
    %p78 = scmp.ne.s32.totalorder %s66, %s67
    %p79 = scmp.eq.s32.totalorder %s15, 1
    %p80 = por %p78, %p79
    %p82 = scmp.ne.s32.totalorder %s67, %s81
    %p83 = scmp.eq.s32.totalorder %s15, 0
    %p84 = por %p82, %p83
    %s85 = ssub.s32 %s9, %s16
    %p86 = scmp.eq.s32.totalorder %s85, 0
    %s88 = sadd.s32 %s87, 1
    %s89 = scalar_select %p86, %s87, %s88
    %p92 = pneg %p86
    %p93 = scmp.eq.s32.totalorder %s9, 1
    %p94 = por %p92, %p93
    %p95 = scmp.ne.s32.totalorder %s87, %s90
    %p96 = scmp.eq.s32.totalorder %s9, 0
    %p97 = por %p95, %p96
    %p98 = scmp.ne.s32.totalorder %s87, %s90
    %p99 = scmp.eq.s32.totalorder %s14, 1
    %p100 = por %p98, %p99
    %p101 = scmp.ne.s32.totalorder %s90, %s91
    %p102 = scmp.eq.s32.totalorder %s14, 0
    %p103 = por %p101, %p102
    %p104 = scmp.ne.s32.totalorder %s90, %s91
    %p105 = scmp.eq.s32.totalorder %s15, 1
    %p106 = por %p104, %p105
    %p108 = scmp.ne.s32.totalorder %s91, %s107
    %p109 = scmp.eq.s32.totalorder %s15, 0
    %p110 = por %p108, %p109
    %p111 = scmp.le.s32.totalorder 1, %s9
    %p112 = scmp.lt.s32.totalorder %s9, 3
    %p113 = pnand %p111, %p112
    %p114 = pneg %p113
    // Predicated region
    $region9: #{convnet_forward.4} parent=5 // pred_check
      _
    $region10: #{convnet_forward.4} parent=5 // pred_check_branch
      %116 = sbr.rel (%p113) target = $region12
    $region11: #{convnet_forward.4} parent=5 // pred_region
      %s117 = ssub.s32 %s9, 1
      // Predicated region
      $region13: #{convnet_forward.4} parent=11 // pred_check
        %p118 = pneg %p56
      $region14: #{convnet_forward.4} parent=11 // pred_check_branch
        %120 = sbr.rel (%p118) target = $region16
      $region15: #{convnet_forward.4} parent=11 // pred_region
        _
      $region16: #{convnet_forward.4} parent=11 // pred_fallthru
        _
      // Predicated region
      $region17: #{convnet_forward.4} parent=11 // pred_check
        %p121 = pneg %p77
      $region18: #{convnet_forward.4} parent=11 // pred_check_branch
        %123 = sbr.rel (%p121) target = $region20
      $region19: #{convnet_forward.4} parent=11 // pred_region
        _
      $region20: #{convnet_forward.4} parent=11 // pred_fallthru
        _
    $region12: #{convnet_forward.4} parent=5 // pred_fallthru
      _
    %p124 = scmp.lt.s32.totalorder %s9, 2
    // Predicated region
    $region21: #{convnet_forward.4} parent=5 // pred_check
      %p125 = pneg %p124
    $region22: #{convnet_forward.4} parent=5 // pred_check_branch
      %127 = sbr.rel (%p125) target = $region24
    $region23: #{convnet_forward.4} parent=5 // pred_region
      // Predicated region
      $region25: #{convnet_forward.4} parent=23 // pred_check
        %p128 = pneg %p29
      $region26: #{convnet_forward.4} parent=23 // pred_check_branch
        %130 = sbr.rel (%p128) target = $region28
      $region27: #{convnet_forward.4} parent=23 // pred_region
        %p131 = scmp.lt.s32.totalorder %s9, 1
        %s132 = scalar_select %p131, %s9, 1
        %s133 = smul.addr %s132, 64
        %s134 = smul.addr %s133, 4
        %s135 = scalar_lea.vmem %s0, %s134
      $region28: #{convnet_forward.4} parent=23 // pred_fallthru
        _
    $region24: #{convnet_forward.4} parent=5 // pred_fallthru
      _
    %p136 = scmp.le.s32.totalorder 1, %s9
    %p137 = scmp.lt.s32.totalorder %s9, 3
    %p138 = pnand %p136, %p137
    %p139 = pneg %p138
    // Predicated region
    $region29: #{convnet_forward.4} parent=5 // pred_check
      _
    $region30: #{convnet_forward.4} parent=5 // pred_check_branch
      %141 = sbr.rel (%p138) target = $region32
    $region31: #{convnet_forward.4} parent=5 // pred_region
      %s142 = ssub.s32 %s9, 1
      %p143 = scmp.lt.s32.totalorder %s14, 1
      %s144 = scalar_select %p143, %s14, 1
      %s145 = smul.addr %s144, 64
      %s146 = smul.addr %s145, 4
      %s147 = scalar_lea.vmem %s0, %s146
      %p148 = pneg %p35
      %p149 = pneg %p32
      %p150 = pneg %p56
      %p151 = pneg %p53
      %p152 = pneg %p77
      %p153 = pneg %p74
      %p154 = pneg %p103
      %p155 = pneg %p100
      %p156 = scmp.lt.s32.totalorder %s14, 1
      %s157 = scalar_select %p156, %s14, 1
      %s158 = smul.addr %s157, 4
      %s159 = smul.addr %s158, 4
      %s160 = scalar_lea.vmem %s3, %s159
      %p161 = scmp.lt.s32.totalorder %s14, 1
      %s162 = scalar_select %p161, %s14, 1
      %s163 = smul.addr %s162, 64
      %s164 = smul.addr %s163, 4
      %s165 = scalar_lea.vmem %s0, %s164
      %p166 = scmp.lt.s32.totalorder %s14, 1
      %s167 = scalar_select %p166, %s14, 1
      %s168 = smul.addr %s167, 4
      %s169 = smul.addr %s168, 4
      %s170 = scalar_lea.vmem %s3, %s169
      %v172 = vld [vmem:[%s165] sm:$0xff]
      %v173 = vld [vmem:[%s165 + $0x8] sm:$0xff]
      %v174 = vld [vmem:[%s165 + $0x10] sm:$0xff]
      %v175 = vld [vmem:[%s165 + $0x18] sm:$0xff]
      %v176 = vld [vmem:[%s165 + $0x20] sm:$0xff]
      %v177 = vld [vmem:[%s165 + $0x28] sm:$0xff]
      %v178 = vld [vmem:[%s165 + $0x30] sm:$0xff]
      %v179 = vld [vmem:[%s165 + $0x38] sm:$0xff]
      %v180 = vld [vmem:[%s1] sm:$0xf]
      %v181 = vld [vmem:[%s1 + $0x4] sm:$0xf]
      %v182 = vld [vmem:[%s1 + $0x8] sm:$0xf]
      %v183 = vld [vmem:[%s1 + $0xc] sm:$0xf]
      %v184 = vld [vmem:[%s1 + $0x10] sm:$0xf]
      %v185 = vld [vmem:[%s1 + $0x14] sm:$0xf]
      %v186 = vld [vmem:[%s1 + $0x18] sm:$0xf]
      %v187 = vld [vmem:[%s1 + $0x1c] sm:$0xf]
      %v188 = vld [vmem:[%s1 + $0x20] sm:$0xf]
      %v189 = vld [vmem:[%s1 + $0x24] sm:$0xf]
      %v190 = vld [vmem:[%s1 + $0x28] sm:$0xf]
      %v191 = vld [vmem:[%s1 + $0x2c] sm:$0xf]
      %v192 = vld [vmem:[%s1 + $0x30] sm:$0xf]
      %v193 = vld [vmem:[%s1 + $0x34] sm:$0xf]
      %v194 = vld [vmem:[%s1 + $0x38] sm:$0xf]
      %v195 = vld [vmem:[%s1 + $0x3c] sm:$0xf]
      %v196 = vld [vmem:[%s1 + $0x40] sm:$0xf]
      %v197 = vld [vmem:[%s1 + $0x44] sm:$0xf]
      %v198 = vld [vmem:[%s1 + $0x48] sm:$0xf]
      %v199 = vld [vmem:[%s1 + $0x4c] sm:$0xf]
      %v200 = vld [vmem:[%s1 + $0x50] sm:$0xf]
      %v201 = vld [vmem:[%s1 + $0x54] sm:$0xf]
      %v202 = vld [vmem:[%s1 + $0x58] sm:$0xf]
      %v203 = vld [vmem:[%s1 + $0x5c] sm:$0xf]
      %v204 = vld [vmem:[%s1 + $0x60] sm:$0xf]
      %v205 = vld [vmem:[%s1 + $0x64] sm:$0xf]
      %v206 = vld [vmem:[%s1 + $0x68] sm:$0xf]
      %v207 = vld [vmem:[%s1 + $0x6c] sm:$0xf]
      %v208 = vld [vmem:[%s1 + $0x70] sm:$0xf]
      %v209 = vld [vmem:[%s1 + $0x74] sm:$0xf]
      %v210 = vld [vmem:[%s1 + $0x78] sm:$0xf]
      %v211 = vld [vmem:[%s1 + $0x7c] sm:$0xf]
      %v212 = vld [vmem:[%s1 + $0x80] sm:$0xf]
      %v213 = vld [vmem:[%s1 + $0x84] sm:$0xf]
      %v214 = vld [vmem:[%s1 + $0x88] sm:$0xf]
      %v215 = vld [vmem:[%s1 + $0x8c] sm:$0xf]
      %v216 = vld [vmem:[%s1 + $0x90] sm:$0xf]
      %v217 = vld [vmem:[%s1 + $0x94] sm:$0xf]
      %v218 = vld [vmem:[%s1 + $0x98] sm:$0xf]
      %v219 = vld [vmem:[%s1 + $0x9c] sm:$0xf]
      %v220 = vld [vmem:[%s1 + $0xa0] sm:$0xf]
      %v221 = vld [vmem:[%s1 + $0xa4] sm:$0xf]
      %v222 = vld [vmem:[%s1 + $0xa8] sm:$0xf]
      %v223 = vld [vmem:[%s1 + $0xac] sm:$0xf]
      %v224 = vld [vmem:[%s1 + $0xb0] sm:$0xf]
      %v225 = vld [vmem:[%s1 + $0xb4] sm:$0xf]
      %v226 = vld [vmem:[%s1 + $0xb8] sm:$0xf]
      %v227 = vld [vmem:[%s1 + $0xbc] sm:$0xf]
      %v228 = vld [vmem:[%s1 + $0xc0] sm:$0xf]
      %v229 = vld [vmem:[%s1 + $0xc4] sm:$0xf]
      %v230 = vld [vmem:[%s1 + $0xc8] sm:$0xf]
      %v231 = vld [vmem:[%s1 + $0xcc] sm:$0xf]
      %v232 = vld [vmem:[%s1 + $0xd0] sm:$0xf]
      %v233 = vld [vmem:[%s1 + $0xd4] sm:$0xf]
      %v234 = vld [vmem:[%s1 + $0xd8] sm:$0xf]
      %v235 = vld [vmem:[%s1 + $0xdc] sm:$0xf]
      %v236 = vld [vmem:[%s1 + $0xe0] sm:$0xf]
      %v237 = vld [vmem:[%s1 + $0xe4] sm:$0xf]
      %v238 = vld [vmem:[%s1 + $0xe8] sm:$0xf]
      %v239 = vld [vmem:[%s1 + $0xec] sm:$0xf]
      %v240 = vld [vmem:[%s1 + $0xf0] sm:$0xf]
      %v241 = vld [vmem:[%s1 + $0xf4] sm:$0xf]
      %v242 = vld [vmem:[%s1 + $0xf8] sm:$0xf]
      %v243 = vld [vmem:[%s1 + $0xfc] sm:$0xf]
      %v252 = vunpack.c.l.b16 %v172
      %v253 = vunpack.c.h.b16 %v172
      %v254 = vunpack.c.l.b16 %v173
      %v255 = vunpack.c.h.b16 %v173
      %v256 = vunpack.c.l.b16 %v174
      %v257 = vunpack.c.h.b16 %v174
      %v258 = vunpack.c.l.b16 %v175
      %v259 = vunpack.c.h.b16 %v175
      %v260 = vunpack.c.l.b16 %v176
      %v261 = vunpack.c.h.b16 %v176
      %v262 = vunpack.c.l.b16 %v177
      %v263 = vunpack.c.h.b16 %v177
      %v264 = vunpack.c.l.b16 %v178
      %v265 = vunpack.c.h.b16 %v178
      %v266 = vunpack.c.l.b16 %v179
      %v267 = vunpack.c.h.b16 %v179
      %v268 = vpack.c.b16 %v256, %v252
      %v269 = vpack.c.b16 %v257, %v253
      %v270 = vpack.c.b16 %v258, %v254
      %v271 = vpack.c.b16 %v259, %v255
      %v272 = vpack.c.b16 %v264, %v260
      %v273 = vpack.c.b16 %v265, %v261
      %v274 = vpack.c.b16 %v266, %v262
      %v275 = vpack.c.b16 %v267, %v263
      %v348 = vunpack.c.l.b16 %v180
      %v349 = vunpack.c.l.b16 %v181
      %v350 = vunpack.c.l.b16 %v182
      %v351 = vunpack.c.l.b16 %v183
      %v352 = vunpack.c.l.b16 %v184
      %v353 = vunpack.c.l.b16 %v185
      %v354 = vunpack.c.l.b16 %v186
      %v355 = vunpack.c.l.b16 %v187
      %v356 = vunpack.c.l.b16 %v188
      %v357 = vunpack.c.l.b16 %v189
      %v358 = vunpack.c.l.b16 %v190
      %v359 = vunpack.c.l.b16 %v191
      %v360 = vunpack.c.l.b16 %v192
      %v361 = vunpack.c.l.b16 %v193
      %v362 = vunpack.c.l.b16 %v194
      %v363 = vunpack.c.l.b16 %v195
      %v364 = vunpack.c.l.b16 %v196
      %v365 = vunpack.c.l.b16 %v197
      %v366 = vunpack.c.l.b16 %v198
      %v367 = vunpack.c.l.b16 %v199
      %v368 = vunpack.c.l.b16 %v200
      %v369 = vunpack.c.l.b16 %v201
      %v370 = vunpack.c.l.b16 %v202
      %v371 = vunpack.c.l.b16 %v203
      %v372 = vunpack.c.l.b16 %v204
      %v373 = vunpack.c.l.b16 %v205
      %v374 = vunpack.c.l.b16 %v206
      %v375 = vunpack.c.l.b16 %v207
      %v376 = vunpack.c.l.b16 %v208
      %v377 = vunpack.c.l.b16 %v209
      %v378 = vunpack.c.l.b16 %v210
      %v379 = vunpack.c.l.b16 %v211
      %v380 = vunpack.c.l.b16 %v212
      %v381 = vunpack.c.l.b16 %v213
      %v382 = vunpack.c.l.b16 %v214
      %v383 = vunpack.c.l.b16 %v215
      %v384 = vunpack.c.l.b16 %v216
      %v385 = vunpack.c.l.b16 %v217
      %v386 = vunpack.c.l.b16 %v218
      %v387 = vunpack.c.l.b16 %v219
      %v388 = vunpack.c.l.b16 %v220
      %v389 = vunpack.c.l.b16 %v221
      %v390 = vunpack.c.l.b16 %v222
      %v391 = vunpack.c.l.b16 %v223
      %v392 = vunpack.c.l.b16 %v224
      %v393 = vunpack.c.l.b16 %v225
      %v394 = vunpack.c.l.b16 %v226
      %v395 = vunpack.c.l.b16 %v227
      %v396 = vunpack.c.l.b16 %v228
      %v397 = vunpack.c.l.b16 %v229
      %v398 = vunpack.c.l.b16 %v230
      %v399 = vunpack.c.l.b16 %v231
      %v400 = vunpack.c.l.b16 %v232
      %v401 = vunpack.c.l.b16 %v233
      %v402 = vunpack.c.l.b16 %v234
      %v403 = vunpack.c.l.b16 %v235
      %v404 = vunpack.c.l.b16 %v236
      %v405 = vunpack.c.l.b16 %v237
      %v406 = vunpack.c.l.b16 %v238
      %v407 = vunpack.c.l.b16 %v239
      %v408 = vunpack.c.l.b16 %v240
      %v409 = vunpack.c.l.b16 %v241
      %v410 = vunpack.c.l.b16 %v242
      %v411 = vunpack.c.l.b16 %v243
      %v412 = vpack.c.b16 %v349, %v348
      %v413 = vpack.c.b16 %v351, %v350
      %v414 = vpack.c.b16 %v353, %v352
      %v415 = vpack.c.b16 %v355, %v354
      %v416 = vpack.c.b16 %v357, %v356
      %v417 = vpack.c.b16 %v359, %v358
      %v418 = vpack.c.b16 %v361, %v360
      %v419 = vpack.c.b16 %v363, %v362
      %v420 = vpack.c.b16 %v365, %v364
      %v421 = vpack.c.b16 %v367, %v366
      %v422 = vpack.c.b16 %v369, %v368
      %v423 = vpack.c.b16 %v371, %v370
      %v424 = vpack.c.b16 %v373, %v372
      %v425 = vpack.c.b16 %v375, %v374
      %v426 = vpack.c.b16 %v377, %v376
      %v427 = vpack.c.b16 %v379, %v378
      %v428 = vpack.c.b16 %v381, %v380
      %v429 = vpack.c.b16 %v383, %v382
      %v430 = vpack.c.b16 %v385, %v384
      %v431 = vpack.c.b16 %v387, %v386
      %v432 = vpack.c.b16 %v389, %v388
      %v433 = vpack.c.b16 %v391, %v390
      %v434 = vpack.c.b16 %v393, %v392
      %v435 = vpack.c.b16 %v395, %v394
      %v436 = vpack.c.b16 %v397, %v396
      %v437 = vpack.c.b16 %v399, %v398
      %v438 = vpack.c.b16 %v401, %v400
      %v439 = vpack.c.b16 %v403, %v402
      %v440 = vpack.c.b16 %v405, %v404
      %v441 = vpack.c.b16 %v407, %v406
      %v442 = vpack.c.b16 %v409, %v408
      %v443 = vpack.c.b16 %v411, %v410
      %476 = vmatprep.subr.bf16.mxu0 0
      %477 = vmatpush1.bf16.msra.mxu0 %v412
      %478 = vmatprep.subr.bf16.mxu0 0
      %479 = vmatpush1.bf16.msra.mxu0 %v413
      %480 = vmatprep.subr.bf16.mxu0 0
      %481 = vmatpush1.bf16.msra.mxu0 %v414
      %482 = vmatprep.subr.bf16.mxu0 0
      %483 = vmatpush1.bf16.msra.mxu0 %v415
      %484 = vmatprep.subr.bf16.mxu0 0
      %485 = vmatpush1.bf16.msra.mxu0 %v416
      %486 = vmatprep.subr.bf16.mxu0 0
      %487 = vmatpush1.bf16.msra.mxu0 %v417
      %488 = vmatprep.subr.bf16.mxu0 0
      %489 = vmatpush1.bf16.msra.mxu0 %v418
      %490 = vmatprep.subr.bf16.mxu0 0
      %491 = vmatpush1.bf16.msra.mxu0 %v419
      %492 = vmatprep.subr.bf16.mxu0 0
      %493 = vmatpush1.bf16.msra.mxu0 %v420
      %494 = vmatprep.subr.bf16.mxu0 0
      %495 = vmatpush1.bf16.msra.mxu0 %v421
      %496 = vmatprep.subr.bf16.mxu0 0
      %497 = vmatpush1.bf16.msra.mxu0 %v422
      %498 = vmatprep.subr.bf16.mxu0 0
      %499 = vmatpush1.bf16.msra.mxu0 %v423
      %500 = vmatprep.subr.bf16.mxu0 0
      %501 = vmatpush1.bf16.msra.mxu0 %v424
      %502 = vmatprep.subr.bf16.mxu0 0
      %503 = vmatpush1.bf16.msra.mxu0 %v425
      %504 = vmatprep.subr.bf16.mxu0 0
      %505 = vmatpush1.bf16.msra.mxu0 %v426
      %506 = vmatprep.subr.bf16.mxu0 0
      %507 = vmatpush1.bf16.msra.mxu0 %v427
      %508 = vmatprep.mubr.bf16.mxu0 %v269
      %509 = vmatmul.mubr.bf16.gmra.mrb[0].mxu0 %v268
      %v510 = vpop.f32.mrb[0].mxu0
      %v511 = vadd.f32 0.0, %v510
      %v512 = vpop.f32.mrb[0].mxu0
      %v513 = vpop.f32.mrb[0].mxu0
      %v514 = vadd.f32 0.0, %v513
      %v515 = vpop.f32.mrb[0].mxu0
      %516 = vmatprep.mubr.bf16.mxu0 %v273
      %517 = vmatmul.mubr.bf16.gmra.mrb[0].mxu0 %v272
      %v518 = vpop.f32.mrb[0].mxu0
      %v519 = vadd.f32 0.0, %v518
      %v520 = vpop.f32.mrb[0].mxu0
      %v521 = vpop.f32.mrb[0].mxu0
      %v522 = vadd.f32 0.0, %v521
      %v523 = vpop.f32.mrb[0].mxu0
      %524 = vdwg.mxu0
      %525 = vmatprep.subr.bf16.mxu0 0
      %526 = vmatpush1.bf16.msra.mxu0 %v428
      %527 = vmatprep.subr.bf16.mxu0 0
      %528 = vmatpush1.bf16.msra.mxu0 %v429
      %529 = vmatprep.subr.bf16.mxu0 0
      %530 = vmatpush1.bf16.msra.mxu0 %v430
      %531 = vmatprep.subr.bf16.mxu0 0
      %532 = vmatpush1.bf16.msra.mxu0 %v431
      %533 = vmatprep.subr.bf16.mxu0 0
      %534 = vmatpush1.bf16.msra.mxu0 %v432
      %535 = vmatprep.subr.bf16.mxu0 0
      %536 = vmatpush1.bf16.msra.mxu0 %v433
      %537 = vmatprep.subr.bf16.mxu0 0
      %538 = vmatpush1.bf16.msra.mxu0 %v434
      %539 = vmatprep.subr.bf16.mxu0 0
      %540 = vmatpush1.bf16.msra.mxu0 %v435
      %541 = vmatprep.subr.bf16.mxu0 0
      %542 = vmatpush1.bf16.msra.mxu0 %v436
      %543 = vmatprep.subr.bf16.mxu0 0
      %544 = vmatpush1.bf16.msra.mxu0 %v437
      %545 = vmatprep.subr.bf16.mxu0 0
      %546 = vmatpush1.bf16.msra.mxu0 %v438
      %547 = vmatprep.subr.bf16.mxu0 0
      %548 = vmatpush1.bf16.msra.mxu0 %v439
      %549 = vmatprep.subr.bf16.mxu0 0
      %550 = vmatpush1.bf16.msra.mxu0 %v440
      %551 = vmatprep.subr.bf16.mxu0 0
      %552 = vmatpush1.bf16.msra.mxu0 %v441
      %553 = vmatprep.subr.bf16.mxu0 0
      %554 = vmatpush1.bf16.msra.mxu0 %v442
      %555 = vmatprep.subr.bf16.mxu0 0
      %556 = vmatpush1.bf16.msra.mxu0 %v443
      %557 = vmatprep.mubr.bf16.mxu0 %v271
      %558 = vmatmul.mubr.bf16.gmra.mrb[0].mxu0 %v270
      %v559 = vpop.f32.mrb[0].mxu0
      %v560 = vadd.f32 %v511, %v559
      %v561 = vpop.f32.mrb[0].mxu0
      %v562 = vpop.f32.mrb[0].mxu0
      %v563 = vadd.f32 %v514, %v562
      %v564 = vpop.f32.mrb[0].mxu0
      %565 = vmatprep.mubr.bf16.mxu0 %v275
      %566 = vmatmul.mubr.bf16.gmra.mrb[0].mxu0 %v274
      %v567 = vpop.f32.mrb[0].mxu0
      %v568 = vadd.f32 %v519, %v567
      %v569 = vpop.f32.mrb[0].mxu0
      %v570 = vpop.f32.mrb[0].mxu0
      %v571 = vadd.f32 %v522, %v570
      %v572 = vpop.f32.mrb[0].mxu0
      %573 = vdwg.mxu0
      %s574 = scalar_lea.vmem %s165, 64
      %v575 = vld [vmem:[%s574] sm:$0xff]
      %v576 = vld [vmem:[%s574 + $0x8] sm:$0xff]
      %v577 = vld [vmem:[%s574 + $0x10] sm:$0xff]
      %v578 = vld [vmem:[%s574 + $0x18] sm:$0xff]
      %v579 = vld [vmem:[%s574 + $0x20] sm:$0xff]
      %v580 = vld [vmem:[%s574 + $0x28] sm:$0xff]
      %v581 = vld [vmem:[%s574 + $0x30] sm:$0xff]
      %v582 = vld [vmem:[%s574 + $0x38] sm:$0xff]
      %v591 = vunpack.c.l.b16 %v575
      %v592 = vunpack.c.h.b16 %v575
      %v593 = vunpack.c.l.b16 %v576
      %v594 = vunpack.c.h.b16 %v576
      %v595 = vunpack.c.l.b16 %v577
      %v596 = vunpack.c.h.b16 %v577
      %v597 = vunpack.c.l.b16 %v578
      %v598 = vunpack.c.h.b16 %v578
      %v599 = vunpack.c.l.b16 %v579
      %v600 = vunpack.c.h.b16 %v579
      %v601 = vunpack.c.l.b16 %v580
      %v602 = vunpack.c.h.b16 %v580
      %v603 = vunpack.c.l.b16 %v581
      %v604 = vunpack.c.h.b16 %v581
      %v605 = vunpack.c.l.b16 %v582
      %v606 = vunpack.c.h.b16 %v582
      %v607 = vpack.c.b16 %v595, %v591
      %v608 = vpack.c.b16 %v596, %v592
      %v609 = vpack.c.b16 %v597, %v593
      %v610 = vpack.c.b16 %v598, %v594
      %v611 = vpack.c.b16 %v603, %v599
      %v612 = vpack.c.b16 %v604, %v600
      %v613 = vpack.c.b16 %v605, %v601
      %v614 = vpack.c.b16 %v606, %v602
      %623 = vmatprep.subr.bf16.mxu0 0
      %624 = vmatpush1.bf16.msra.mxu0 %v412
      %625 = vmatprep.subr.bf16.mxu0 0
      %626 = vmatpush1.bf16.msra.mxu0 %v413
      %627 = vmatprep.subr.bf16.mxu0 0
      %628 = vmatpush1.bf16.msra.mxu0 %v414
      %629 = vmatprep.subr.bf16.mxu0 0
      %630 = vmatpush1.bf16.msra.mxu0 %v415
      %631 = vmatprep.subr.bf16.mxu0 0
      %632 = vmatpush1.bf16.msra.mxu0 %v416
      %633 = vmatprep.subr.bf16.mxu0 0
      %634 = vmatpush1.bf16.msra.mxu0 %v417
      %635 = vmatprep.subr.bf16.mxu0 0
      %636 = vmatpush1.bf16.msra.mxu0 %v418
      %637 = vmatprep.subr.bf16.mxu0 0
      %638 = vmatpush1.bf16.msra.mxu0 %v419
      %639 = vmatprep.subr.bf16.mxu0 0
      %640 = vmatpush1.bf16.msra.mxu0 %v420
      %641 = vmatprep.subr.bf16.mxu0 0
      %642 = vmatpush1.bf16.msra.mxu0 %v421
      %643 = vmatprep.subr.bf16.mxu0 0
      %644 = vmatpush1.bf16.msra.mxu0 %v422
      %645 = vmatprep.subr.bf16.mxu0 0
      %646 = vmatpush1.bf16.msra.mxu0 %v423
      %647 = vmatprep.subr.bf16.mxu0 0
      %648 = vmatpush1.bf16.msra.mxu0 %v424
      %649 = vmatprep.subr.bf16.mxu0 0
      %650 = vmatpush1.bf16.msra.mxu0 %v425
      %651 = vmatprep.subr.bf16.mxu0 0
      %652 = vmatpush1.bf16.msra.mxu0 %v426
      %653 = vmatprep.subr.bf16.mxu0 0
      %654 = vmatpush1.bf16.msra.mxu0 %v427
      %655 = vmatprep.mubr.bf16.mxu0 %v608
      %656 = vmatmul.mubr.bf16.gmra.mrb[0].mxu0 %v607
      %v657 = vpop.f32.mrb[0].mxu0
      %v658 = vadd.f32 0.0, %v657
      %v659 = vpop.f32.mrb[0].mxu0
      %v660 = vpop.f32.mrb[0].mxu0
      %v661 = vadd.f32 0.0, %v660
      %v662 = vpop.f32.mrb[0].mxu0
      %663 = vmatprep.mubr.bf16.mxu0 %v612
      %664 = vmatmul.mubr.bf16.gmra.mrb[0].mxu0 %v611
      %v665 = vpop.f32.mrb[0].mxu0
      %v666 = vadd.f32 0.0, %v665
      %v667 = vpop.f32.mrb[0].mxu0
      %v668 = vpop.f32.mrb[0].mxu0
      %v669 = vadd.f32 0.0, %v668
      %v670 = vpop.f32.mrb[0].mxu0
      %671 = vdwg.mxu0
      %672 = vmatprep.subr.bf16.mxu0 0
      %673 = vmatpush1.bf16.msra.mxu0 %v428
      %674 = vmatprep.subr.bf16.mxu0 0
      %675 = vmatpush1.bf16.msra.mxu0 %v429
      %676 = vmatprep.subr.bf16.mxu0 0
      %677 = vmatpush1.bf16.msra.mxu0 %v430
      %678 = vmatprep.subr.bf16.mxu0 0
      %679 = vmatpush1.bf16.msra.mxu0 %v431
      %680 = vmatprep.subr.bf16.mxu0 0
      %681 = vmatpush1.bf16.msra.mxu0 %v432
      %682 = vmatprep.subr.bf16.mxu0 0
      %683 = vmatpush1.bf16.msra.mxu0 %v433
      %684 = vmatprep.subr.bf16.mxu0 0
      %685 = vmatpush1.bf16.msra.mxu0 %v434
      %686 = vmatprep.subr.bf16.mxu0 0
      %687 = vmatpush1.bf16.msra.mxu0 %v435
      %688 = vmatprep.subr.bf16.mxu0 0
      %689 = vmatpush1.bf16.msra.mxu0 %v436
      %690 = vmatprep.subr.bf16.mxu0 0
      %691 = vmatpush1.bf16.msra.mxu0 %v437
      %692 = vmatprep.subr.bf16.mxu0 0
      %693 = vmatpush1.bf16.msra.mxu0 %v438
      %694 = vmatprep.subr.bf16.mxu0 0
      %695 = vmatpush1.bf16.msra.mxu0 %v439
      %696 = vmatprep.subr.bf16.mxu0 0
      %697 = vmatpush1.bf16.msra.mxu0 %v440
      %698 = vmatprep.subr.bf16.mxu0 0
      %699 = vmatpush1.bf16.msra.mxu0 %v441
      %700 = vmatprep.subr.bf16.mxu0 0
      %701 = vmatpush1.bf16.msra.mxu0 %v442
      %702 = vmatprep.subr.bf16.mxu0 0
      %703 = vmatpush1.bf16.msra.mxu0 %v443
      %704 = vmatprep.mubr.bf16.mxu0 %v610
      %705 = vmatmul.mubr.bf16.gmra.mrb[0].mxu0 %v609
      %v706 = vpop.f32.mrb[0].mxu0
      %v707 = vadd.f32 %v658, %v706
      %v708 = vpop.f32.mrb[0].mxu0
      %v709 = vpop.f32.mrb[0].mxu0
      %v710 = vadd.f32 %v661, %v709
      %v711 = vpop.f32.mrb[0].mxu0
      %712 = vmatprep.mubr.bf16.mxu0 %v614
      %713 = vmatmul.mubr.bf16.gmra.mrb[0].mxu0 %v613
      %v714 = vpop.f32.mrb[0].mxu0
      %v715 = vadd.f32 %v666, %v714
      %v716 = vpop.f32.mrb[0].mxu0
      %v717 = vpop.f32.mrb[0].mxu0
      %v718 = vadd.f32 %v669, %v717
      %v719 = vpop.f32.mrb[0].mxu0
      %720 = vdwg.mxu0
      %v721 = vmax.f32 %v560, %v707
      %v722 = vmax.f32 %v563, %v710
      %v723 = vmax.f32 %v568, %v715
      %v724 = vmax.f32 %v571, %v718
      %s725 = scalar_lea.vmem %s165, 128
      %v726 = vld [vmem:[%s725] sm:$0xff]
      %v727 = vld [vmem:[%s725 + $0x8] sm:$0xff]
      %v728 = vld [vmem:[%s725 + $0x10] sm:$0xff]
      %v729 = vld [vmem:[%s725 + $0x18] sm:$0xff]
      %v730 = vld [vmem:[%s725 + $0x20] sm:$0xff]
      %v731 = vld [vmem:[%s725 + $0x28] sm:$0xff]
      %v732 = vld [vmem:[%s725 + $0x30] sm:$0xff]
      %v733 = vld [vmem:[%s725 + $0x38] sm:$0xff]
      %v742 = vunpack.c.l.b16 %v726
      %v743 = vunpack.c.h.b16 %v726
      %v744 = vunpack.c.l.b16 %v727
      %v745 = vunpack.c.h.b16 %v727
      %v746 = vunpack.c.l.b16 %v728
      %v747 = vunpack.c.h.b16 %v728
      %v748 = vunpack.c.l.b16 %v729
      %v749 = vunpack.c.h.b16 %v729
      %v750 = vunpack.c.l.b16 %v730
      %v751 = vunpack.c.h.b16 %v730
      %v752 = vunpack.c.l.b16 %v731
      %v753 = vunpack.c.h.b16 %v731
      %v754 = vunpack.c.l.b16 %v732
      %v755 = vunpack.c.h.b16 %v732
      %v756 = vunpack.c.l.b16 %v733
      %v757 = vunpack.c.h.b16 %v733
      %v758 = vpack.c.b16 %v746, %v742
      %v759 = vpack.c.b16 %v747, %v743
      %v760 = vpack.c.b16 %v748, %v744
      %v761 = vpack.c.b16 %v749, %v745
      %v762 = vpack.c.b16 %v754, %v750
      %v763 = vpack.c.b16 %v755, %v751
      %v764 = vpack.c.b16 %v756, %v752
      %v765 = vpack.c.b16 %v757, %v753
      %774 = vmatprep.subr.bf16.mxu0 0
      %775 = vmatpush1.bf16.msra.mxu0 %v412
      %776 = vmatprep.subr.bf16.mxu0 0
      %777 = vmatpush1.bf16.msra.mxu0 %v413
      %778 = vmatprep.subr.bf16.mxu0 0
      %779 = vmatpush1.bf16.msra.mxu0 %v414
      %780 = vmatprep.subr.bf16.mxu0 0
      %781 = vmatpush1.bf16.msra.mxu0 %v415
      %782 = vmatprep.subr.bf16.mxu0 0
      %783 = vmatpush1.bf16.msra.mxu0 %v416
      %784 = vmatprep.subr.bf16.mxu0 0
      %785 = vmatpush1.bf16.msra.mxu0 %v417
      %786 = vmatprep.subr.bf16.mxu0 0
      %787 = vmatpush1.bf16.msra.mxu0 %v418
      %788 = vmatprep.subr.bf16.mxu0 0
      %789 = vmatpush1.bf16.msra.mxu0 %v419
      %790 = vmatprep.subr.bf16.mxu0 0
      %791 = vmatpush1.bf16.msra.mxu0 %v420
      %792 = vmatprep.subr.bf16.mxu0 0
      %793 = vmatpush1.bf16.msra.mxu0 %v421
      %794 = vmatprep.subr.bf16.mxu0 0
      %795 = vmatpush1.bf16.msra.mxu0 %v422
      %796 = vmatprep.subr.bf16.mxu0 0
      %797 = vmatpush1.bf16.msra.mxu0 %v423
      %798 = vmatprep.subr.bf16.mxu0 0
      %799 = vmatpush1.bf16.msra.mxu0 %v424
      %800 = vmatprep.subr.bf16.mxu0 0
      %801 = vmatpush1.bf16.msra.mxu0 %v425
      %802 = vmatprep.subr.bf16.mxu0 0
      %803 = vmatpush1.bf16.msra.mxu0 %v426
      %804 = vmatprep.subr.bf16.mxu0 0
      %805 = vmatpush1.bf16.msra.mxu0 %v427
      %806 = vmatprep.mubr.bf16.mxu0 %v759
      %807 = vmatmul.mubr.bf16.gmra.mrb[0].mxu0 %v758
      %v808 = vpop.f32.mrb[0].mxu0
      %v809 = vadd.f32 0.0, %v808
      %v810 = vpop.f32.mrb[0].mxu0
      %v811 = vpop.f32.mrb[0].mxu0
      %v812 = vadd.f32 0.0, %v811
      %v813 = vpop.f32.mrb[0].mxu0
      %814 = vmatprep.mubr.bf16.mxu0 %v763
      %815 = vmatmul.mubr.bf16.gmra.mrb[0].mxu0 %v762
      %v816 = vpop.f32.mrb[0].mxu0
      %v817 = vadd.f32 0.0, %v816
      %v818 = vpop.f32.mrb[0].mxu0
      %v819 = vpop.f32.mrb[0].mxu0
      %v820 = vadd.f32 0.0, %v819
      %v821 = vpop.f32.mrb[0].mxu0
      %822 = vdwg.mxu0
      %823 = vmatprep.subr.bf16.mxu0 0
      %824 = vmatpush1.bf16.msra.mxu0 %v428
      %825 = vmatprep.subr.bf16.mxu0 0
      %826 = vmatpush1.bf16.msra.mxu0 %v429
      %827 = vmatprep.subr.bf16.mxu0 0
      %828 = vmatpush1.bf16.msra.mxu0 %v430
      %829 = vmatprep.subr.bf16.mxu0 0
      %830 = vmatpush1.bf16.msra.mxu0 %v431
      %831 = vmatprep.subr.bf16.mxu0 0
      %832 = vmatpush1.bf16.msra.mxu0 %v432
      %833 = vmatprep.subr.bf16.mxu0 0
      %834 = vmatpush1.bf16.msra.mxu0 %v433
      %835 = vmatprep.subr.bf16.mxu0 0
      %836 = vmatpush1.bf16.msra.mxu0 %v434
      %837 = vmatprep.subr.bf16.mxu0 0
      %838 = vmatpush1.bf16.msra.mxu0 %v435
      %839 = vmatprep.subr.bf16.mxu0 0
      %840 = vmatpush1.bf16.msra.mxu0 %v436
      %841 = vmatprep.subr.bf16.mxu0 0
      %842 = vmatpush1.bf16.msra.mxu0 %v437
      %843 = vmatprep.subr.bf16.mxu0 0
      %844 = vmatpush1.bf16.msra.mxu0 %v438
      %845 = vmatprep.subr.bf16.mxu0 0
      %846 = vmatpush1.bf16.msra.mxu0 %v439
      %847 = vmatprep.subr.bf16.mxu0 0
      %848 = vmatpush1.bf16.msra.mxu0 %v440
      %849 = vmatprep.subr.bf16.mxu0 0
      %850 = vmatpush1.bf16.msra.mxu0 %v441
      %851 = vmatprep.subr.bf16.mxu0 0
      %852 = vmatpush1.bf16.msra.mxu0 %v442
      %853 = vmatprep.subr.bf16.mxu0 0
      %854 = vmatpush1.bf16.msra.mxu0 %v443
      %855 = vmatprep.mubr.bf16.mxu0 %v761
      %856 = vmatmul.mubr.bf16.gmra.mrb[0].mxu0 %v760
      %v857 = vpop.f32.mrb[0].mxu0
      %v858 = vadd.f32 %v809, %v857
      %v859 = vpop.f32.mrb[0].mxu0
      %v860 = vpop.f32.mrb[0].mxu0
      %v861 = vadd.f32 %v812, %v860
      %v862 = vpop.f32.mrb[0].mxu0
      %863 = vmatprep.mubr.bf16.mxu0 %v765
      %864 = vmatmul.mubr.bf16.gmra.mrb[0].mxu0 %v764
      %v865 = vpop.f32.mrb[0].mxu0
      %v866 = vadd.f32 %v817, %v865
      %v867 = vpop.f32.mrb[0].mxu0
      %v868 = vpop.f32.mrb[0].mxu0
      %v869 = vadd.f32 %v820, %v868
      %v870 = vpop.f32.mrb[0].mxu0
      %871 = vdwg.mxu0
      %v872 = vmax.f32 %v721, %v858
      %v873 = vmax.f32 %v722, %v861
      %v874 = vmax.f32 %v723, %v866
      %v875 = vmax.f32 %v724, %v869
      %s876 = scalar_lea.vmem %s165, 192
      %v877 = vld [vmem:[%s876] sm:$0xff]
      %v878 = vld [vmem:[%s876 + $0x8] sm:$0xff]
      %v879 = vld [vmem:[%s876 + $0x10] sm:$0xff]
      %v880 = vld [vmem:[%s876 + $0x18] sm:$0xff]
      %v881 = vld [vmem:[%s876 + $0x20] sm:$0xff]
      %v882 = vld [vmem:[%s876 + $0x28] sm:$0xff]
      %v883 = vld [vmem:[%s876 + $0x30] sm:$0xff]
      %v884 = vld [vmem:[%s876 + $0x38] sm:$0xff]
      %v893 = vunpack.c.l.b16 %v877
      %v894 = vunpack.c.h.b16 %v877
      %v895 = vunpack.c.l.b16 %v878
      %v896 = vunpack.c.h.b16 %v878
      %v897 = vunpack.c.l.b16 %v879
      %v898 = vunpack.c.h.b16 %v879
      %v899 = vunpack.c.l.b16 %v880
      %v900 = vunpack.c.h.b16 %v880
      %v901 = vunpack.c.l.b16 %v881
      %v902 = vunpack.c.h.b16 %v881
      %v903 = vunpack.c.l.b16 %v882
      %v904 = vunpack.c.h.b16 %v882
      %v905 = vunpack.c.l.b16 %v883
      %v906 = vunpack.c.h.b16 %v883
      %v907 = vunpack.c.l.b16 %v884
      %v908 = vunpack.c.h.b16 %v884
      %v909 = vpack.c.b16 %v897, %v893
      %v910 = vpack.c.b16 %v898, %v894
      %v911 = vpack.c.b16 %v899, %v895
      %v912 = vpack.c.b16 %v900, %v896
      %v913 = vpack.c.b16 %v905, %v901
      %v914 = vpack.c.b16 %v906, %v902
      %v915 = vpack.c.b16 %v907, %v903
      %v916 = vpack.c.b16 %v908, %v904
      %925 = vmatprep.subr.bf16.mxu0 0
      %926 = vmatpush1.bf16.msra.mxu0 %v412
      %927 = vmatprep.subr.bf16.mxu0 0
      %928 = vmatpush1.bf16.msra.mxu0 %v413
      %929 = vmatprep.subr.bf16.mxu0 0
      %930 = vmatpush1.bf16.msra.mxu0 %v414
      %931 = vmatprep.subr.bf16.mxu0 0
      %932 = vmatpush1.bf16.msra.mxu0 %v415
      %933 = vmatprep.subr.bf16.mxu0 0
      %934 = vmatpush1.bf16.msra.mxu0 %v416
      %935 = vmatprep.subr.bf16.mxu0 0
      %936 = vmatpush1.bf16.msra.mxu0 %v417
      %937 = vmatprep.subr.bf16.mxu0 0
      %938 = vmatpush1.bf16.msra.mxu0 %v418
      %939 = vmatprep.subr.bf16.mxu0 0
      %940 = vmatpush1.bf16.msra.mxu0 %v419
      %941 = vmatprep.subr.bf16.mxu0 0
      %942 = vmatpush1.bf16.msra.mxu0 %v420
      %943 = vmatprep.subr.bf16.mxu0 0
      %944 = vmatpush1.bf16.msra.mxu0 %v421
      %945 = vmatprep.subr.bf16.mxu0 0
      %946 = vmatpush1.bf16.msra.mxu0 %v422
      %947 = vmatprep.subr.bf16.mxu0 0
      %948 = vmatpush1.bf16.msra.mxu0 %v423
      %949 = vmatprep.subr.bf16.mxu0 0
      %950 = vmatpush1.bf16.msra.mxu0 %v424
      %951 = vmatprep.subr.bf16.mxu0 0
      %952 = vmatpush1.bf16.msra.mxu0 %v425
      %953 = vmatprep.subr.bf16.mxu0 0
      %954 = vmatpush1.bf16.msra.mxu0 %v426
      %955 = vmatprep.subr.bf16.mxu0 0
      %956 = vmatpush1.bf16.msra.mxu0 %v427
      %957 = vmatprep.mubr.bf16.mxu0 %v910
      %958 = vmatmul.mubr.bf16.gmra.mrb[0].mxu0 %v909
      %v959 = vpop.f32.mrb[0].mxu0
      %v960 = vadd.f32 0.0, %v959
      %v961 = vpop.f32.mrb[0].mxu0
      %v962 = vpop.f32.mrb[0].mxu0
      %v963 = vadd.f32 0.0, %v962
      %v964 = vpop.f32.mrb[0].mxu0
      %965 = vmatprep.mubr.bf16.mxu0 %v914
      %966 = vmatmul.mubr.bf16.gmra.mrb[0].mxu0 %v913
      %v967 = vpop.f32.mrb[0].mxu0
      %v968 = vadd.f32 0.0, %v967
      %v969 = vpop.f32.mrb[0].mxu0
      %v970 = vpop.f32.mrb[0].mxu0
      %v971 = vadd.f32 0.0, %v970
      %v972 = vpop.f32.mrb[0].mxu0
      %973 = vdwg.mxu0
      %974 = vmatprep.subr.bf16.mxu0 0
      %975 = vmatpush1.bf16.msra.mxu0 %v428
      %976 = vmatprep.subr.bf16.mxu0 0
      %977 = vmatpush1.bf16.msra.mxu0 %v429
      %978 = vmatprep.subr.bf16.mxu0 0
      %979 = vmatpush1.bf16.msra.mxu0 %v430
      %980 = vmatprep.subr.bf16.mxu0 0
      %981 = vmatpush1.bf16.msra.mxu0 %v431
      %982 = vmatprep.subr.bf16.mxu0 0
      %983 = vmatpush1.bf16.msra.mxu0 %v432
      %984 = vmatprep.subr.bf16.mxu0 0
      %985 = vmatpush1.bf16.msra.mxu0 %v433
      %986 = vmatprep.subr.bf16.mxu0 0
      %987 = vmatpush1.bf16.msra.mxu0 %v434
      %988 = vmatprep.subr.bf16.mxu0 0
      %989 = vmatpush1.bf16.msra.mxu0 %v435
      %990 = vmatprep.subr.bf16.mxu0 0
      %991 = vmatpush1.bf16.msra.mxu0 %v436
      %992 = vmatprep.subr.bf16.mxu0 0
      %993 = vmatpush1.bf16.msra.mxu0 %v437
      %994 = vmatprep.subr.bf16.mxu0 0
      %995 = vmatpush1.bf16.msra.mxu0 %v438
      %996 = vmatprep.subr.bf16.mxu0 0
      %997 = vmatpush1.bf16.msra.mxu0 %v439
      %998 = vmatprep.subr.bf16.mxu0 0
      %999 = vmatpush1.bf16.msra.mxu0 %v440
      %1000 = vmatprep.subr.bf16.mxu0 0
      %1001 = vmatpush1.bf16.msra.mxu0 %v441
      %1002 = vmatprep.subr.bf16.mxu0 0
      %1003 = vmatpush1.bf16.msra.mxu0 %v442
      %1004 = vmatprep.subr.bf16.mxu0 0
      %1005 = vmatpush1.bf16.msra.mxu0 %v443
      %1006 = vmatprep.mubr.bf16.mxu0 %v912
      %1007 = vmatmul.mubr.bf16.gmra.mrb[0].mxu0 %v911
      %v1008 = vpop.f32.mrb[0].mxu0
      %v1009 = vadd.f32 %v960, %v1008
      %v1010 = vpop.f32.mrb[0].mxu0
      %v1011 = vpop.f32.mrb[0].mxu0
      %v1012 = vadd.f32 %v963, %v1011
      %v1013 = vpop.f32.mrb[0].mxu0
      %1014 = vmatprep.mubr.bf16.mxu0 %v916
      %1015 = vmatmul.mubr.bf16.gmra.mrb[0].mxu0 %v915
      %v1016 = vpop.f32.mrb[0].mxu0
      %v1017 = vadd.f32 %v968, %v1016
      %v1018 = vpop.f32.mrb[0].mxu0
      %v1019 = vpop.f32.mrb[0].mxu0
      %v1020 = vadd.f32 %v971, %v1019
      %v1021 = vpop.f32.mrb[0].mxu0
      %1022 = vdwg.mxu0
      %v1023 = vmax.f32 %v872, %v1009
      %v1024 = vmax.f32 %v873, %v1012
      %v1025 = vmax.f32 %v874, %v1017
      %v1026 = vmax.f32 %v875, %v1020
      %v1027 = vld [vmem:[%s2] sm:$0x1]
      %v1029 = vlaneseq
      %v1030 = vshrl.u32 %v1029, 7
      %v1031 = vsub.s32 0, %v1030
      %v1032 = vrot.slane %v1027, %v1031
      %v1034 = vadd.f32 %v1023, %v1032
      %v1035 = vadd.f32 %v1024, %v1032
      %v1036 = vadd.f32 %v1025, %v1032
      %v1037 = vadd.f32 %v1026, %v1032
      %v1038 = vmax.f32 %v1034, 0.0
      %v1039 = vmax.f32 %v1035, 0.0
      %v1040 = vmax.f32 %v1036, 0.0
      %v1041 = vmax.f32 %v1037, 0.0
      %v1042 = vpack.c.bf16 %v1039, %v1038
      %v1043 = vpack.c.bf16 %v1041, %v1040
      %v1046 = vunpack.c.l.b16 %v1042
      %v1047 = vunpack.c.h.b16 %v1042
      %v1048 = vunpack.c.l.b16 %v1043
      %v1049 = vunpack.c.h.b16 %v1043
      %v1050 = vpack.c.b16 %v1046, %v1046
      %v1051 = vpack.c.b16 %v1047, %v1047
      %v1052 = vpack.c.b16 %v1048, %v1048
      %v1053 = vpack.c.b16 %v1049, %v1049
      %1058 = vst [vmem:[%s170] sm:$0xf] %v1050
      %1059 = vst [vmem:[%s170 + $0x4] sm:$0xf] %v1051
      %1060 = vst [vmem:[%s170 + $0x8] sm:$0xf] %v1052
      %1061 = vst [vmem:[%s170 + $0xc] sm:$0xf] %v1053
      %p1062 = scmp.lt.s32.totalorder %s14, 1
      %s1063 = scalar_select %p1062, %s14, 1
      %s1064 = smul.addr %s1063, 4
      %s1065 = smul.addr %s1064, 4
      %s1066 = scalar_lea.vmem %s3, %s1065
      // Predicated region
      $region33: #{convnet_forward.4} parent=31 // pred_check
        %p1067 = pneg %p100
      $region34: #{convnet_forward.4} parent=31 // pred_check_branch
        %1069 = sbr.rel (%p1067) target = $region36
      $region35: #{convnet_forward.4} parent=31 // pred_region
        _
      $region36: #{convnet_forward.4} parent=31 // pred_fallthru
        _
    $region32: #{convnet_forward.4} parent=5 // pred_fallthru
      _
    %p1070 = scmp.le.s32.totalorder 2, %s9
    // Predicated region
    $region37: #{convnet_forward.4} parent=5 // pred_check
      %p1071 = pneg %p1070
    $region38: #{convnet_forward.4} parent=5 // pred_check_branch
      %1073 = sbr.rel (%p1071) target = $region40
    $region39: #{convnet_forward.4} parent=5 // pred_region
      %s1074 = ssub.s32 %s9, 2
      // Predicated region
      $region41: #{convnet_forward.4} parent=39 // pred_check
        %p1075 = pneg %p106
      $region42: #{convnet_forward.4} parent=39 // pred_check_branch
        %1077 = sbr.rel (%p1075) target = $region44
      $region43: #{convnet_forward.4} parent=39 // pred_region
        %p1078 = scmp.lt.s32.totalorder %s15, 1
        %s1079 = scalar_select %p1078, %s15, 1
        %s1080 = smul.addr %s1079, 4
        %s1081 = smul.addr %s1080, 4
        %s1082 = scalar_lea.vmem %s3, %s1081
      $region44: #{convnet_forward.4} parent=39 // pred_fallthru
        _
    $region40: #{convnet_forward.4} parent=5 // pred_fallthru
      _
  $region6: #{convnet_forward.4} parent=0 // loop_footer
    %s13 = sadd.s32 1, %s9
  $region7: #{convnet_forward.4} parent=0 // loop_footer_branch
    %8 = sbr.rel target = $region3
  $region8: #{convnet_forward.4} parent=0 // loop_exit
    _

// kernel: convnet_forward.5
$region0: #{convnet_forward.5}
  #allocation0 [shape = 'u32[]', space=smem, size = 0x4, offset = 0x4, fixed_abs, tag = 'smem constant byte address 0x4 - core index']
  #allocation1 [shape = 'u32[144,128]{1,0:T(1,128)}', space=vmem, size = 0x12000, scoped, tag = 'internal scratch']
  %s0 = inlined_call_operand.vmem [shape: bf16[8,800], index: 0, kind: input, shape index: {}]
  %s1 = inlined_call_operand.vmem [shape: bf16[800,128], index: 1, kind: input, shape index: {}]
  %s2 = inlined_call_operand.vmem [shape: f32[1,128], index: 2, kind: input, shape index: {}]
  %s3 = inlined_call_operand.vmem [shape: bf16[128,128], index: 3, kind: input, shape index: {}]
  %s4 = inlined_call_operand.vmem [shape: f32[1,128], index: 4, kind: input, shape index: {}]
  %s5 = inlined_call_operand.vmem [shape: bf16[128,128], index: 5, kind: input, shape index: {}]
  %s6 = inlined_call_operand.vmem [shape: f32[1,128], index: 6, kind: input, shape index: {}]
  %s7 = inlined_call_operand.vmem [shape: f32[8,128], index: 7, kind: output, shape index: {}]
  %s8 = sld [smem:[#allocation0]]
  $region38: #{convnet_forward.5} parent=0
    _
  %s10 = ssub.s32 1, %s8
  %s11 = scalar_select 0, %s10, %s8
  // Predicated region
  $region2: #{convnet_forward.5} parent=0 // pred_check
    _
  $region3: #{convnet_forward.5} parent=0 // pred_check_branch
    %13 = sbr.rel (0) target = $region5
  $region4: #{convnet_forward.5} parent=0 // pred_region
    _
  $region5: #{convnet_forward.5} parent=0 // pred_fallthru
    _
  // Predicated region
  $region6: #{convnet_forward.5} parent=0 // pred_check
    _
  $region7: #{convnet_forward.5} parent=0 // pred_check_branch
    %15 = sbr.rel (0) target = $region9
  $region8: #{convnet_forward.5} parent=0 // pred_region
    _
  $region9: #{convnet_forward.5} parent=0 // pred_fallthru
    _
  // Predicated region
  $region10: #{convnet_forward.5} parent=0 // pred_check
    _
  $region11: #{convnet_forward.5} parent=0 // pred_check_branch
    %17 = sbr.rel (0) target = $region13
  $region12: #{convnet_forward.5} parent=0 // pred_region
    _
  $region13: #{convnet_forward.5} parent=0 // pred_fallthru
    _
  // Predicated region
  $region14: #{convnet_forward.5} parent=0 // pred_check
    _
  $region15: #{convnet_forward.5} parent=0 // pred_check_branch
    %19 = sbr.rel (0) target = $region17
  $region16: #{convnet_forward.5} parent=0 // pred_region
    _
  $region17: #{convnet_forward.5} parent=0 // pred_fallthru
    _
  // Predicated region
  $region18: #{convnet_forward.5} parent=0 // pred_check
    _
  $region19: #{convnet_forward.5} parent=0 // pred_check_branch
    %21 = sbr.rel (0) target = $region21
  $region20: #{convnet_forward.5} parent=0 // pred_region
    _
  $region21: #{convnet_forward.5} parent=0 // pred_fallthru
    _
  // Predicated region
  $region22: #{convnet_forward.5} parent=0 // pred_check
    _
  $region23: #{convnet_forward.5} parent=0 // pred_check_branch
    %23 = sbr.rel (0) target = $region25
  $region24: #{convnet_forward.5} parent=0 // pred_region
    _
  $region25: #{convnet_forward.5} parent=0 // pred_fallthru
    _
  // Predicated region
  $region26: #{convnet_forward.5} parent=0 // pred_check
    _
  $region27: #{convnet_forward.5} parent=0 // pred_check_branch
    %25 = sbr.rel (0) target = $region29
  $region28: #{convnet_forward.5} parent=0 // pred_region
    _
  $region29: #{convnet_forward.5} parent=0 // pred_fallthru
    _
  %v27 = vld [vmem:[%s0] sm:$0xff]
  %v28 = vld [vmem:[%s0 + $0x8] sm:$0xff]
  %v29 = vld [vmem:[%s0 + $0x10] sm:$0xff]
  %v30 = vld [vmem:[%s0 + $0x18] sm:$0xf]
  %v31 = vld [vmem:[%s1] sm:$0xf]
  %v32 = vld [vmem:[%s1 + $0x4] sm:$0xf]
  %v33 = vld [vmem:[%s1 + $0x8] sm:$0xf]
  %v34 = vld [vmem:[%s1 + $0xc] sm:$0xf]
  %v35 = vld [vmem:[%s1 + $0x10] sm:$0xf]
  %v36 = vld [vmem:[%s1 + $0x14] sm:$0xf]
  %v37 = vld [vmem:[%s1 + $0x18] sm:$0xf]
  %v38 = vld [vmem:[%s1 + $0x1c] sm:$0xf]
  %v39 = vld [vmem:[%s1 + $0x20] sm:$0xf]
  %v40 = vld [vmem:[%s1 + $0x24] sm:$0xf]
  %v41 = vld [vmem:[%s1 + $0x28] sm:$0xf]
  %v42 = vld [vmem:[%s1 + $0x2c] sm:$0xf]
  %v43 = vld [vmem:[%s1 + $0x30] sm:$0xf]
  %v44 = vld [vmem:[%s1 + $0x34] sm:$0xf]
  %v45 = vld [vmem:[%s1 + $0x38] sm:$0xf]
  %v46 = vld [vmem:[%s1 + $0x3c] sm:$0xf]
  %v47 = vld [vmem:[%s1 + $0x40] sm:$0xf]
  %v48 = vld [vmem:[%s1 + $0x44] sm:$0xf]
  %v49 = vld [vmem:[%s1 + $0x48] sm:$0xf]
  %v50 = vld [vmem:[%s1 + $0x4c] sm:$0xf]
  %v51 = vld [vmem:[%s1 + $0x50] sm:$0xf]
  %v52 = vld [vmem:[%s1 + $0x54] sm:$0xf]
  %v53 = vld [vmem:[%s1 + $0x58] sm:$0xf]
  %v54 = vld [vmem:[%s1 + $0x5c] sm:$0xf]
  %v55 = vld [vmem:[%s1 + $0x60] sm:$0xf]
  %v56 = vld [vmem:[%s1 + $0x64] sm:$0xf]
  %v57 = vld [vmem:[%s1 + $0x68] sm:$0xf]
  %v58 = vld [vmem:[%s1 + $0x6c] sm:$0xf]
  %v59 = vld [vmem:[%s1 + $0x70] sm:$0xf]
  %v60 = vld [vmem:[%s1 + $0x74] sm:$0xf]
  %v61 = vld [vmem:[%s1 + $0x78] sm:$0xf]
  %v62 = vld [vmem:[%s1 + $0x7c] sm:$0xf]
  %v63 = vld [vmem:[%s1 + $0x80] sm:$0xf]
  %v64 = vld [vmem:[%s1 + $0x84] sm:$0xf]
  %v65 = vld [vmem:[%s1 + $0x88] sm:$0xf]
  %v66 = vld [vmem:[%s1 + $0x8c] sm:$0xf]
  %v67 = vld [vmem:[%s1 + $0x90] sm:$0xf]
  %v68 = vld [vmem:[%s1 + $0x94] sm:$0xf]
  %v69 = vld [vmem:[%s1 + $0x98] sm:$0xf]
  %v70 = vld [vmem:[%s1 + $0x9c] sm:$0xf]
  %v71 = vld [vmem:[%s1 + $0xa0] sm:$0xf]
  %v72 = vld [vmem:[%s1 + $0xa4] sm:$0xf]
  %v73 = vld [vmem:[%s1 + $0xa8] sm:$0xf]
  %v74 = vld [vmem:[%s1 + $0xac] sm:$0xf]
  %v75 = vld [vmem:[%s1 + $0xb0] sm:$0xf]
  %v76 = vld [vmem:[%s1 + $0xb4] sm:$0xf]
  %v77 = vld [vmem:[%s1 + $0xb8] sm:$0xf]
  %v78 = vld [vmem:[%s1 + $0xbc] sm:$0xf]
  %v79 = vld [vmem:[%s1 + $0xc0] sm:$0xf]
  %v80 = vld [vmem:[%s1 + $0xc4] sm:$0xf]
  %v81 = vld [vmem:[%s1 + $0xc8] sm:$0xf]
  %v82 = vld [vmem:[%s1 + $0xcc] sm:$0xf]
  %v83 = vld [vmem:[%s1 + $0xd0] sm:$0xf]
  %v84 = vld [vmem:[%s1 + $0xd4] sm:$0xf]
  %v85 = vld [vmem:[%s1 + $0xd8] sm:$0xf]
  %v86 = vld [vmem:[%s1 + $0xdc] sm:$0xf]
  %v87 = vld [vmem:[%s1 + $0xe0] sm:$0xf]
  %v88 = vld [vmem:[%s1 + $0xe4] sm:$0xf]
  %v89 = vld [vmem:[%s1 + $0xe8] sm:$0xf]
  %v90 = vld [vmem:[%s1 + $0xec] sm:$0xf]
  %v91 = vld [vmem:[%s1 + $0xf0] sm:$0xf]
  %v92 = vld [vmem:[%s1 + $0xf4] sm:$0xf]
  %v93 = vld [vmem:[%s1 + $0xf8] sm:$0xf]
  %v94 = vld [vmem:[%s1 + $0xfc] sm:$0xf]
  %v95 = vld [vmem:[%s1 + $0x100] sm:$0xf]
  %v96 = vld [vmem:[%s1 + $0x104] sm:$0xf]
  %v97 = vld [vmem:[%s1 + $0x108] sm:$0xf]
  %v98 = vld [vmem:[%s1 + $0x10c] sm:$0xf]
  %v99 = vld [vmem:[%s1 + $0x110] sm:$0xf]
  %v100 = vld [vmem:[%s1 + $0x114] sm:$0xf]
  %v101 = vld [vmem:[%s1 + $0x118] sm:$0xf]
  %v102 = vld [vmem:[%s1 + $0x11c] sm:$0xf]
  %v103 = vld [vmem:[%s1 + $0x120] sm:$0xf]
  %v104 = vld [vmem:[%s1 + $0x124] sm:$0xf]
  %v105 = vld [vmem:[%s1 + $0x128] sm:$0xf]
  %v106 = vld [vmem:[%s1 + $0x12c] sm:$0xf]
  %v107 = vld [vmem:[%s1 + $0x130] sm:$0xf]
  %v108 = vld [vmem:[%s1 + $0x134] sm:$0xf]
  %v109 = vld [vmem:[%s1 + $0x138] sm:$0xf]
  %v110 = vld [vmem:[%s1 + $0x13c] sm:$0xf]
  %v111 = vld [vmem:[%s1 + $0x140] sm:$0xf]
  %v112 = vld [vmem:[%s1 + $0x144] sm:$0xf]
  %v113 = vld [vmem:[%s1 + $0x148] sm:$0xf]
  %v114 = vld [vmem:[%s1 + $0x14c] sm:$0xf]
  %v115 = vld [vmem:[%s1 + $0x150] sm:$0xf]
  %v116 = vld [vmem:[%s1 + $0x154] sm:$0xf]
  %v117 = vld [vmem:[%s1 + $0x158] sm:$0xf]
  %v118 = vld [vmem:[%s1 + $0x15c] sm:$0xf]
  %v119 = vld [vmem:[%s1 + $0x160] sm:$0xf]
  %v120 = vld [vmem:[%s1 + $0x164] sm:$0xf]
  %v121 = vld [vmem:[%s1 + $0x168] sm:$0xf]
  %v122 = vld [vmem:[%s1 + $0x16c] sm:$0xf]
  %v123 = vld [vmem:[%s1 + $0x170] sm:$0xf]
  %v124 = vld [vmem:[%s1 + $0x174] sm:$0xf]
  %v125 = vld [vmem:[%s1 + $0x178] sm:$0xf]
  %v126 = vld [vmem:[%s1 + $0x17c] sm:$0xf]
  %v127 = vld [vmem:[%s1 + $0x180] sm:$0xf]
  %v128 = vld [vmem:[%s1 + $0x184] sm:$0xf]
  %v129 = vld [vmem:[%s1 + $0x188] sm:$0xf]
  %v130 = vld [vmem:[%s1 + $0x18c] sm:$0xf]
  %v131 = vld [vmem:[%s2] sm:$0x1]
  %v133 = vlaneseq
  %v134 = vshrl.u32 %v133, 7
  %v135 = vsub.s32 0, %v134
  %v136 = vrot.slane %v131, %v135
  %v142 = vunpack.c.l.b16 %v27
  %v143 = vunpack.c.h.b16 %v27
  %v144 = vunpack.c.l.b16 %v28
  %v145 = vunpack.c.h.b16 %v28
  %v146 = vunpack.c.l.b16 %v29
  %v147 = vunpack.c.h.b16 %v29
  %v148 = vunpack.c.l.b16 %v30
  %v149 = vpack.c.b16 %v142, %v142
  %v150 = vpack.c.b16 %v143, %v143
  %v151 = vpack.c.b16 %v144, %v144
  %v152 = vpack.c.b16 %v145, %v145
  %v153 = vpack.c.b16 %v146, %v146
  %v154 = vpack.c.b16 %v147, %v147
  %v155 = vpack.c.b16 %v148, %v148
  %v262 = vunpack.c.l.b16 %v31
  %v263 = vunpack.c.l.b16 %v32
  %v264 = vunpack.c.l.b16 %v33
  %v265 = vunpack.c.l.b16 %v34
  %v266 = vunpack.c.l.b16 %v35
  %v267 = vunpack.c.l.b16 %v36
  %v268 = vunpack.c.l.b16 %v37
  %v269 = vunpack.c.l.b16 %v38
  %v270 = vunpack.c.l.b16 %v39
  %v271 = vunpack.c.l.b16 %v40
  %v272 = vunpack.c.l.b16 %v41
  %v273 = vunpack.c.l.b16 %v42
  %v274 = vunpack.c.l.b16 %v43
  %v275 = vunpack.c.l.b16 %v44
  %v276 = vunpack.c.l.b16 %v45
  %v277 = vunpack.c.l.b16 %v46
  %v278 = vunpack.c.l.b16 %v47
  %v279 = vunpack.c.l.b16 %v48
  %v280 = vunpack.c.l.b16 %v49
  %v281 = vunpack.c.l.b16 %v50
  %v282 = vunpack.c.l.b16 %v51
  %v283 = vunpack.c.l.b16 %v52
  %v284 = vunpack.c.l.b16 %v53
  %v285 = vunpack.c.l.b16 %v54
  %v286 = vunpack.c.l.b16 %v55
  %v287 = vunpack.c.l.b16 %v56
  %v288 = vunpack.c.l.b16 %v57
  %v289 = vunpack.c.l.b16 %v58
  %v290 = vunpack.c.l.b16 %v59
  %v291 = vunpack.c.l.b16 %v60
  %v292 = vunpack.c.l.b16 %v61
  %v293 = vunpack.c.l.b16 %v62
  %v294 = vunpack.c.l.b16 %v63
  %v295 = vunpack.c.l.b16 %v64
  %v296 = vunpack.c.l.b16 %v65
  %v297 = vunpack.c.l.b16 %v66
  %v298 = vunpack.c.l.b16 %v67
  %v299 = vunpack.c.l.b16 %v68
  %v300 = vunpack.c.l.b16 %v69
  %v301 = vunpack.c.l.b16 %v70
  %v302 = vunpack.c.l.b16 %v71
  %v303 = vunpack.c.l.b16 %v72
  %v304 = vunpack.c.l.b16 %v73
  %v305 = vunpack.c.l.b16 %v74
  %v306 = vunpack.c.l.b16 %v75
  %v307 = vunpack.c.l.b16 %v76
  %v308 = vunpack.c.l.b16 %v77
  %v309 = vunpack.c.l.b16 %v78
  %v310 = vunpack.c.l.b16 %v79
  %v311 = vunpack.c.l.b16 %v80
  %v312 = vunpack.c.l.b16 %v81
  %v313 = vunpack.c.l.b16 %v82
  %v314 = vunpack.c.l.b16 %v83
  %v315 = vunpack.c.l.b16 %v84
  %v316 = vunpack.c.l.b16 %v85
  %v317 = vunpack.c.l.b16 %v86
  %v318 = vunpack.c.l.b16 %v87
  %v319 = vunpack.c.l.b16 %v88
  %v320 = vunpack.c.l.b16 %v89
  %v321 = vunpack.c.l.b16 %v90
  %v322 = vunpack.c.l.b16 %v91
  %v323 = vunpack.c.l.b16 %v92
  %v324 = vunpack.c.l.b16 %v93
  %v325 = vunpack.c.l.b16 %v94
  %v326 = vunpack.c.l.b16 %v95
  %v327 = vunpack.c.l.b16 %v96
  %v328 = vunpack.c.l.b16 %v97
  %v329 = vunpack.c.l.b16 %v98
  %v330 = vunpack.c.l.b16 %v99
  %v331 = vunpack.c.l.b16 %v100
  %v332 = vunpack.c.l.b16 %v101
  %v333 = vunpack.c.l.b16 %v102
  %v334 = vunpack.c.l.b16 %v103
  %v335 = vunpack.c.l.b16 %v104
  %v336 = vunpack.c.l.b16 %v105
  %v337 = vunpack.c.l.b16 %v106
  %v338 = vunpack.c.l.b16 %v107
  %v339 = vunpack.c.l.b16 %v108
  %v340 = vunpack.c.l.b16 %v109
  %v341 = vunpack.c.l.b16 %v110
  %v342 = vunpack.c.l.b16 %v111
  %v343 = vunpack.c.l.b16 %v112
  %v344 = vunpack.c.l.b16 %v113
  %v345 = vunpack.c.l.b16 %v114
  %v346 = vunpack.c.l.b16 %v115
  %v347 = vunpack.c.l.b16 %v116
  %v348 = vunpack.c.l.b16 %v117
  %v349 = vunpack.c.l.b16 %v118
  %v350 = vunpack.c.l.b16 %v119
  %v351 = vunpack.c.l.b16 %v120
  %v352 = vunpack.c.l.b16 %v121
  %v353 = vunpack.c.l.b16 %v122
  %v354 = vunpack.c.l.b16 %v123
  %v355 = vunpack.c.l.b16 %v124
  %v356 = vunpack.c.l.b16 %v125
  %v357 = vunpack.c.l.b16 %v126
  %v358 = vunpack.c.l.b16 %v127
  %v359 = vunpack.c.l.b16 %v128
  %v360 = vunpack.c.l.b16 %v129
  %v361 = vunpack.c.l.b16 %v130
  %v362 = vpack.c.b16 %v263, %v262
  %v363 = vpack.c.b16 %v265, %v264
  %v364 = vpack.c.b16 %v267, %v266
  %v365 = vpack.c.b16 %v269, %v268
  %v366 = vpack.c.b16 %v271, %v270
  %v367 = vpack.c.b16 %v273, %v272
  %v368 = vpack.c.b16 %v275, %v274
  %v369 = vpack.c.b16 %v277, %v276
  %v370 = vpack.c.b16 %v279, %v278
  %v371 = vpack.c.b16 %v281, %v280
  %v372 = vpack.c.b16 %v283, %v282
  %v373 = vpack.c.b16 %v285, %v284
  %v374 = vpack.c.b16 %v287, %v286
  %v375 = vpack.c.b16 %v289, %v288
  %v376 = vpack.c.b16 %v291, %v290
  %v377 = vpack.c.b16 %v293, %v292
  %v378 = vpack.c.b16 %v295, %v294
  %v379 = vpack.c.b16 %v297, %v296
  %v380 = vpack.c.b16 %v299, %v298
  %v381 = vpack.c.b16 %v301, %v300
  %v382 = vpack.c.b16 %v303, %v302
  %v383 = vpack.c.b16 %v305, %v304
  %v384 = vpack.c.b16 %v307, %v306
  %v385 = vpack.c.b16 %v309, %v308
  %v386 = vpack.c.b16 %v311, %v310
  %v387 = vpack.c.b16 %v313, %v312
  %v388 = vpack.c.b16 %v315, %v314
  %v389 = vpack.c.b16 %v317, %v316
  %v390 = vpack.c.b16 %v319, %v318
  %v391 = vpack.c.b16 %v321, %v320
  %v392 = vpack.c.b16 %v323, %v322
  %v393 = vpack.c.b16 %v325, %v324
  %v394 = vpack.c.b16 %v327, %v326
  %v395 = vpack.c.b16 %v329, %v328
  %v396 = vpack.c.b16 %v331, %v330
  %v397 = vpack.c.b16 %v333, %v332
  %v398 = vpack.c.b16 %v335, %v334
  %v399 = vpack.c.b16 %v337, %v336
  %v400 = vpack.c.b16 %v339, %v338
  %v401 = vpack.c.b16 %v341, %v340
  %v402 = vpack.c.b16 %v343, %v342
  %v403 = vpack.c.b16 %v345, %v344
  %v404 = vpack.c.b16 %v347, %v346
  %v405 = vpack.c.b16 %v349, %v348
  %v406 = vpack.c.b16 %v351, %v350
  %v407 = vpack.c.b16 %v353, %v352
  %v408 = vpack.c.b16 %v355, %v354
  %v409 = vpack.c.b16 %v357, %v356
  %v410 = vpack.c.b16 %v359, %v358
  %v411 = vpack.c.b16 %v361, %v360
  %vm462 = vcmask 261120
  %v464 = vsel %vm462, %v155, 0
  %466 = vmatprep.subr.bf16.mxu0 0
  %467 = vmatpush1.bf16.msra.mxu0 %v362
  %468 = vmatprep.subr.bf16.mxu0 0
  %469 = vmatpush1.bf16.msra.mxu0 %v363
  %470 = vmatprep.subr.bf16.mxu0 0
  %471 = vmatpush1.bf16.msra.mxu0 %v364
  %472 = vmatprep.subr.bf16.mxu0 0
  %473 = vmatpush1.bf16.msra.mxu0 %v365
  %474 = vmatprep.subr.bf16.mxu0 0
  %475 = vmatpush1.bf16.msra.mxu0 %v366
  %476 = vmatprep.subr.bf16.mxu0 0
  %477 = vmatpush1.bf16.msra.mxu0 %v367
  %478 = vmatprep.subr.bf16.mxu0 0
  %479 = vmatpush1.bf16.msra.mxu0 %v368
  %480 = vmatprep.subr.bf16.mxu0 0
  %481 = vmatpush1.bf16.msra.mxu0 %v369
  %482 = vmatprep.subr.bf16.mxu0 0
  %483 = vmatpush1.bf16.msra.mxu0 %v370
  %484 = vmatprep.subr.bf16.mxu0 0
  %485 = vmatpush1.bf16.msra.mxu0 %v371
  %486 = vmatprep.subr.bf16.mxu0 0
  %487 = vmatpush1.bf16.msra.mxu0 %v372
  %488 = vmatprep.subr.bf16.mxu0 0
  %489 = vmatpush1.bf16.msra.mxu0 %v373
  %490 = vmatprep.subr.bf16.mxu0 0
  %491 = vmatpush1.bf16.msra.mxu0 %v374
  %492 = vmatprep.subr.bf16.mxu0 0
  %493 = vmatpush1.bf16.msra.mxu0 %v375
  %494 = vmatprep.subr.bf16.mxu0 0
  %495 = vmatpush1.bf16.msra.mxu0 %v376
  %496 = vmatprep.subr.bf16.mxu0 0
  %497 = vmatpush1.bf16.msra.mxu0 %v377
  %498 = vmatprep.mubr.bf16.mxu0 %v150
  %499 = vmatmul.mubr.bf16.gmra.mrb[0].mxu0 %v149
  %v500 = vpop.f32.mrb[0].mxu0
  %v501 = vadd.f32 %v136, %v500
  %v502 = vpop.f32.mrb[0].mxu0
  %v503 = vpop.f32.mrb[0].mxu0
  %v504 = vpop.f32.mrb[0].mxu0
  %505 = vdwg.mxu0
  %506 = vmatprep.subr.bf16.mxu0 0
  %507 = vmatpush1.bf16.msra.mxu0 %v378
  %508 = vmatprep.subr.bf16.mxu0 0
  %509 = vmatpush1.bf16.msra.mxu0 %v379
  %510 = vmatprep.subr.bf16.mxu0 0
  %511 = vmatpush1.bf16.msra.mxu0 %v380
  %512 = vmatprep.subr.bf16.mxu0 0
  %513 = vmatpush1.bf16.msra.mxu0 %v381
  %514 = vmatprep.subr.bf16.mxu0 0
  %515 = vmatpush1.bf16.msra.mxu0 %v382
  %516 = vmatprep.subr.bf16.mxu0 0
  %517 = vmatpush1.bf16.msra.mxu0 %v383
  %518 = vmatprep.subr.bf16.mxu0 0
  %519 = vmatpush1.bf16.msra.mxu0 %v384
  %520 = vmatprep.subr.bf16.mxu0 0
  %521 = vmatpush1.bf16.msra.mxu0 %v385
  %522 = vmatprep.subr.bf16.mxu0 0
  %523 = vmatpush1.bf16.msra.mxu0 %v386
  %524 = vmatprep.subr.bf16.mxu0 0
  %525 = vmatpush1.bf16.msra.mxu0 %v387
  %526 = vmatprep.subr.bf16.mxu0 0
  %527 = vmatpush1.bf16.msra.mxu0 %v388
  %528 = vmatprep.subr.bf16.mxu0 0
  %529 = vmatpush1.bf16.msra.mxu0 %v389
  %530 = vmatprep.subr.bf16.mxu0 0
  %531 = vmatpush1.bf16.msra.mxu0 %v390
  %532 = vmatprep.subr.bf16.mxu0 0
  %533 = vmatpush1.bf16.msra.mxu0 %v391
  %534 = vmatprep.subr.bf16.mxu0 0
  %535 = vmatpush1.bf16.msra.mxu0 %v392
  %536 = vmatprep.subr.bf16.mxu0 0
  %537 = vmatpush1.bf16.msra.mxu0 %v393
  %538 = vmatprep.mubr.bf16.mxu0 %v152
  %539 = vmatmul.mubr.bf16.gmra.mrb[0].mxu0 %v151
  %v540 = vpop.f32.mrb[0].mxu0
  %v541 = vadd.f32 %v501, %v540
  %v542 = vpop.f32.mrb[0].mxu0
  %v543 = vpop.f32.mrb[0].mxu0
  %v544 = vpop.f32.mrb[0].mxu0
  %545 = vdwg.mxu0
  %546 = vmatprep.subr.bf16.mxu0 0
  %547 = vmatpush1.bf16.msra.mxu0 %v394
  %548 = vmatprep.subr.bf16.mxu0 0
  %549 = vmatpush1.bf16.msra.mxu0 %v395
  %550 = vmatprep.subr.bf16.mxu0 0
  %551 = vmatpush1.bf16.msra.mxu0 %v396
  %552 = vmatprep.subr.bf16.mxu0 0
  %553 = vmatpush1.bf16.msra.mxu0 %v397
  %554 = vmatprep.subr.bf16.mxu0 0
  %555 = vmatpush1.bf16.msra.mxu0 %v398
  %556 = vmatprep.subr.bf16.mxu0 0
  %557 = vmatpush1.bf16.msra.mxu0 %v399
  %558 = vmatprep.subr.bf16.mxu0 0
  %559 = vmatpush1.bf16.msra.mxu0 %v400
  %560 = vmatprep.subr.bf16.mxu0 0
  %561 = vmatpush1.bf16.msra.mxu0 %v401
  %562 = vmatprep.subr.bf16.mxu0 0
  %563 = vmatpush1.bf16.msra.mxu0 %v402
  %564 = vmatprep.subr.bf16.mxu0 0
  %565 = vmatpush1.bf16.msra.mxu0 %v403
  %566 = vmatprep.subr.bf16.mxu0 0
  %567 = vmatpush1.bf16.msra.mxu0 %v404
  %568 = vmatprep.subr.bf16.mxu0 0
  %569 = vmatpush1.bf16.msra.mxu0 %v405
  %570 = vmatprep.subr.bf16.mxu0 0
  %571 = vmatpush1.bf16.msra.mxu0 %v406
  %572 = vmatprep.subr.bf16.mxu0 0
  %573 = vmatpush1.bf16.msra.mxu0 %v407
  %574 = vmatprep.subr.bf16.mxu0 0
  %575 = vmatpush1.bf16.msra.mxu0 %v408
  %576 = vmatprep.subr.bf16.mxu0 0
  %577 = vmatpush1.bf16.msra.mxu0 %v409
  %578 = vmatprep.mubr.bf16.mxu0 %v154
  %579 = vmatmul.mubr.bf16.gmra.mrb[0].mxu0 %v153
  %v580 = vpop.f32.mrb[0].mxu0
  %v581 = vadd.f32 %v541, %v580
  %v582 = vpop.f32.mrb[0].mxu0
  %v583 = vpop.f32.mrb[0].mxu0
  %v584 = vpop.f32.mrb[0].mxu0
  %585 = vdwg.mxu0
  %586 = vmatprep.subr.bf16.mxu0 0
  %587 = vmatpush1.bf16.msra.mxu0 %v410
  %588 = vmatprep.subr.bf16.mxu0 0
  %589 = vmatpush1.bf16.msra.mxu0 %v411
  %590 = vmatprep.subr.bf16.mxu0 0
  %591 = vmatpush1.bf16.msra.mxu0 0
  %592 = vmatprep.subr.bf16.mxu0 0
  %593 = vmatpush1.bf16.msra.mxu0 0
  %594 = vmatprep.subr.bf16.mxu0 0
  %595 = vmatpush1.bf16.msra.mxu0 0
  %596 = vmatprep.subr.bf16.mxu0 0
  %597 = vmatpush1.bf16.msra.mxu0 0
  %598 = vmatprep.subr.bf16.mxu0 0
  %599 = vmatpush1.bf16.msra.mxu0 0
  %600 = vmatprep.subr.bf16.mxu0 0
  %601 = vmatpush1.bf16.msra.mxu0 0
  %602 = vmatprep.subr.bf16.mxu0 0
  %603 = vmatpush1.bf16.msra.mxu0 0
  %604 = vmatprep.subr.bf16.mxu0 0
  %605 = vmatpush1.bf16.msra.mxu0 0
  %606 = vmatprep.subr.bf16.mxu0 0
  %607 = vmatpush1.bf16.msra.mxu0 0
  %608 = vmatprep.subr.bf16.mxu0 0
  %609 = vmatpush1.bf16.msra.mxu0 0
  %610 = vmatprep.subr.bf16.mxu0 0
  %611 = vmatpush1.bf16.msra.mxu0 0
  %612 = vmatprep.subr.bf16.mxu0 0
  %613 = vmatpush1.bf16.msra.mxu0 0
  %614 = vmatprep.subr.bf16.mxu0 0
  %615 = vmatpush1.bf16.msra.mxu0 0
  %616 = vmatprep.subr.bf16.mxu0 0
  %617 = vmatpush1.bf16.msra.mxu0 0
  %618 = vmatprep.mubr.bf16.mxu0 0
  %619 = vmatmul.mubr.bf16.gmra.mrb[0].mxu0 %v464
  %v620 = vpop.f32.mrb[0].mxu0
  %v621 = vadd.f32 %v581, %v620
  %v622 = vpop.f32.mrb[0].mxu0
  %v623 = vpop.f32.mrb[0].mxu0
  %v624 = vpop.f32.mrb[0].mxu0
  %625 = vdwg.mxu0
  %v626 = vmax.f32 %v621, 0.0
  %v627 = vpack.c.bf16 %v626, %v626
  %v628 = vld [vmem:[%s3] sm:$0xf]
  %v629 = vld [vmem:[%s3 + $0x4] sm:$0xf]
  %v630 = vld [vmem:[%s3 + $0x8] sm:$0xf]
  %v631 = vld [vmem:[%s3 + $0xc] sm:$0xf]
  %v632 = vld [vmem:[%s3 + $0x10] sm:$0xf]
  %v633 = vld [vmem:[%s3 + $0x14] sm:$0xf]
  %v634 = vld [vmem:[%s3 + $0x18] sm:$0xf]
  %v635 = vld [vmem:[%s3 + $0x1c] sm:$0xf]
  %v636 = vld [vmem:[%s3 + $0x20] sm:$0xf]
  %v637 = vld [vmem:[%s3 + $0x24] sm:$0xf]
  %v638 = vld [vmem:[%s3 + $0x28] sm:$0xf]
  %v639 = vld [vmem:[%s3 + $0x2c] sm:$0xf]
  %v640 = vld [vmem:[%s3 + $0x30] sm:$0xf]
  %v641 = vld [vmem:[%s3 + $0x34] sm:$0xf]
  %v642 = vld [vmem:[%s3 + $0x38] sm:$0xf]
  %v643 = vld [vmem:[%s3 + $0x3c] sm:$0xf]
  %v644 = vld [vmem:[%s4] sm:$0x1]
  %v646 = vlaneseq
  %v647 = vshrl.u32 %v646, 7
  %v648 = vsub.s32 0, %v647
  %v649 = vrot.slane %v644, %v648
  %v667 = vunpack.c.l.b16 %v628
  %v668 = vunpack.c.l.b16 %v629
  %v669 = vunpack.c.l.b16 %v630
  %v670 = vunpack.c.l.b16 %v631
  %v671 = vunpack.c.l.b16 %v632
  %v672 = vunpack.c.l.b16 %v633
  %v673 = vunpack.c.l.b16 %v634
  %v674 = vunpack.c.l.b16 %v635
  %v675 = vunpack.c.l.b16 %v636
  %v676 = vunpack.c.l.b16 %v637
  %v677 = vunpack.c.l.b16 %v638
  %v678 = vunpack.c.l.b16 %v639
  %v679 = vunpack.c.l.b16 %v640
  %v680 = vunpack.c.l.b16 %v641
  %v681 = vunpack.c.l.b16 %v642
  %v682 = vunpack.c.l.b16 %v643
  %v683 = vpack.c.b16 %v668, %v667
  %v684 = vpack.c.b16 %v670, %v669
  %v685 = vpack.c.b16 %v672, %v671
  %v686 = vpack.c.b16 %v674, %v673
  %v687 = vpack.c.b16 %v676, %v675
  %v688 = vpack.c.b16 %v678, %v677
  %v689 = vpack.c.b16 %v680, %v679
  %v690 = vpack.c.b16 %v682, %v681
  %699 = vmatprep.subr.bf16.mxu0 0
  %700 = vmatpush1.bf16.msra.mxu0 %v683
  %701 = vmatprep.subr.bf16.mxu0 0
  %702 = vmatpush1.bf16.msra.mxu0 %v684
  %703 = vmatprep.subr.bf16.mxu0 0
  %704 = vmatpush1.bf16.msra.mxu0 %v685
  %705 = vmatprep.subr.bf16.mxu0 0
  %706 = vmatpush1.bf16.msra.mxu0 %v686
  %707 = vmatprep.subr.bf16.mxu0 0
  %708 = vmatpush1.bf16.msra.mxu0 %v687
  %709 = vmatprep.subr.bf16.mxu0 0
  %710 = vmatpush1.bf16.msra.mxu0 %v688
  %711 = vmatprep.subr.bf16.mxu0 0
  %712 = vmatpush1.bf16.msra.mxu0 %v689
  %713 = vmatprep.subr.bf16.mxu0 0
  %714 = vmatpush1.bf16.msra.mxu0 %v690
  %715 = vmatprep.subr.bf16.mxu0 0
  %716 = vmatpush1.bf16.msra.mxu0 0
  %717 = vmatprep.subr.bf16.mxu0 0
  %718 = vmatpush1.bf16.msra.mxu0 0
  %719 = vmatprep.subr.bf16.mxu0 0
  %720 = vmatpush1.bf16.msra.mxu0 0
  %721 = vmatprep.subr.bf16.mxu0 0
  %722 = vmatpush1.bf16.msra.mxu0 0
  %723 = vmatprep.subr.bf16.mxu0 0
  %724 = vmatpush1.bf16.msra.mxu0 0
  %725 = vmatprep.subr.bf16.mxu0 0
  %726 = vmatpush1.bf16.msra.mxu0 0
  %727 = vmatprep.subr.bf16.mxu0 0
  %728 = vmatpush1.bf16.msra.mxu0 0
  %729 = vmatprep.subr.bf16.mxu0 0
  %730 = vmatpush1.bf16.msra.mxu0 0
  %731 = vmatprep.mubr.bf16.mxu0 0
  %732 = vmatmul.mubr.bf16.gmra.mrb[0].mxu0 %v627
  %v733 = vpop.f32.mrb[0].mxu0
  %v734 = vadd.f32 %v649, %v733
  %v735 = vpop.f32.mrb[0].mxu0
  %v736 = vpop.f32.mrb[0].mxu0
  %v737 = vpop.f32.mrb[0].mxu0
  %738 = vdwg.mxu0
  %v739 = vmax.f32 %v734, 0.0
  %v740 = vpack.c.bf16 %v739, %v739
  %v741 = vld [vmem:[%s5] sm:$0xf]
  %v742 = vld [vmem:[%s5 + $0x4] sm:$0xf]
  %v743 = vld [vmem:[%s5 + $0x8] sm:$0xf]
  %v744 = vld [vmem:[%s5 + $0xc] sm:$0xf]
  %v745 = vld [vmem:[%s5 + $0x10] sm:$0xf]
  %v746 = vld [vmem:[%s5 + $0x14] sm:$0xf]
  %v747 = vld [vmem:[%s5 + $0x18] sm:$0xf]
  %v748 = vld [vmem:[%s5 + $0x1c] sm:$0xf]
  %v749 = vld [vmem:[%s5 + $0x20] sm:$0xf]
  %v750 = vld [vmem:[%s5 + $0x24] sm:$0xf]
  %v751 = vld [vmem:[%s5 + $0x28] sm:$0xf]
  %v752 = vld [vmem:[%s5 + $0x2c] sm:$0xf]
  %v753 = vld [vmem:[%s5 + $0x30] sm:$0xf]
  %v754 = vld [vmem:[%s5 + $0x34] sm:$0xf]
  %v755 = vld [vmem:[%s5 + $0x38] sm:$0xf]
  %v756 = vld [vmem:[%s5 + $0x3c] sm:$0xf]
  %v757 = vld [vmem:[%s6] sm:$0x1]
  %v759 = vlaneseq
  %v760 = vshrl.u32 %v759, 7
  %v761 = vsub.s32 0, %v760
  %v762 = vrot.slane %v757, %v761
  %v780 = vunpack.c.l.b16 %v741
  %v781 = vunpack.c.l.b16 %v742
  %v782 = vunpack.c.l.b16 %v743
  %v783 = vunpack.c.l.b16 %v744
  %v784 = vunpack.c.l.b16 %v745
  %v785 = vunpack.c.l.b16 %v746
  %v786 = vunpack.c.l.b16 %v747
  %v787 = vunpack.c.l.b16 %v748
  %v788 = vunpack.c.l.b16 %v749
  %v789 = vunpack.c.l.b16 %v750
  %v790 = vunpack.c.l.b16 %v751
  %v791 = vunpack.c.l.b16 %v752
  %v792 = vunpack.c.l.b16 %v753
  %v793 = vunpack.c.l.b16 %v754
  %v794 = vunpack.c.l.b16 %v755
  %v795 = vunpack.c.l.b16 %v756
  %v796 = vpack.c.b16 %v781, %v780
  %v797 = vpack.c.b16 %v783, %v782
  %v798 = vpack.c.b16 %v785, %v784
  %v799 = vpack.c.b16 %v787, %v786
  %v800 = vpack.c.b16 %v789, %v788
  %v801 = vpack.c.b16 %v791, %v790
  %v802 = vpack.c.b16 %v793, %v792
  %v803 = vpack.c.b16 %v795, %v794
  %812 = vmatprep.subr.bf16.mxu0 0
  %813 = vmatpush1.bf16.msra.mxu0 %v796
  %814 = vmatprep.subr.bf16.mxu0 0
  %815 = vmatpush1.bf16.msra.mxu0 %v797
  %816 = vmatprep.subr.bf16.mxu0 0
  %817 = vmatpush1.bf16.msra.mxu0 %v798
  %818 = vmatprep.subr.bf16.mxu0 0
  %819 = vmatpush1.bf16.msra.mxu0 %v799
  %820 = vmatprep.subr.bf16.mxu0 0
  %821 = vmatpush1.bf16.msra.mxu0 %v800
  %822 = vmatprep.subr.bf16.mxu0 0
  %823 = vmatpush1.bf16.msra.mxu0 %v801
  %824 = vmatprep.subr.bf16.mxu0 0
  %825 = vmatpush1.bf16.msra.mxu0 %v802
  %826 = vmatprep.subr.bf16.mxu0 0
  %827 = vmatpush1.bf16.msra.mxu0 %v803
  %828 = vmatprep.subr.bf16.mxu0 0
  %829 = vmatpush1.bf16.msra.mxu0 0
  %830 = vmatprep.subr.bf16.mxu0 0
  %831 = vmatpush1.bf16.msra.mxu0 0
  %832 = vmatprep.subr.bf16.mxu0 0
  %833 = vmatpush1.bf16.msra.mxu0 0
  %834 = vmatprep.subr.bf16.mxu0 0
  %835 = vmatpush1.bf16.msra.mxu0 0
  %836 = vmatprep.subr.bf16.mxu0 0
  %837 = vmatpush1.bf16.msra.mxu0 0
  %838 = vmatprep.subr.bf16.mxu0 0
  %839 = vmatpush1.bf16.msra.mxu0 0
  %840 = vmatprep.subr.bf16.mxu0 0
  %841 = vmatpush1.bf16.msra.mxu0 0
  %842 = vmatprep.subr.bf16.mxu0 0
  %843 = vmatpush1.bf16.msra.mxu0 0
  %844 = vmatprep.mubr.bf16.mxu0 0
  %845 = vmatmul.mubr.bf16.gmra.mrb[0].mxu0 %v740
  %v846 = vpop.f32.mrb[0].mxu0
  %v847 = vadd.f32 %v762, %v846
  %v848 = vpop.f32.mrb[0].mxu0
  %v849 = vpop.f32.mrb[0].mxu0
  %v850 = vpop.f32.mrb[0].mxu0
  %851 = vdwg.mxu0
  %852 = vst [vmem:[%s7] sm:$0xff] %v847
  // Predicated region
  $region30: #{convnet_forward.5} parent=0 // pred_check
    _
  $region31: #{convnet_forward.5} parent=0 // pred_check_branch
    %854 = sbr.rel (0) target = $region33
  $region32: #{convnet_forward.5} parent=0 // pred_region
    _
  $region33: #{convnet_forward.5} parent=0 // pred_fallthru
    _
  // Predicated region
  $region34: #{convnet_forward.5} parent=0 // pred_check
    _
  $region35: #{convnet_forward.5} parent=0 // pred_check_branch
    %856 = sbr.rel (0) target = $region37
  $region36: #{convnet_forward.5} parent=0 // pred_region
    _
  $region37: #{convnet_forward.5} parent=0 // pred_fallthru
    _

</llo_original>
